<compile_context>
chip_gen: v7x
topology: tpu7x:2x2x1
jax: 0.10.0
libtpu: 0.0.40
codegen_flags: <defaults>
</compile_context>

<pallas_src>
import functools

import jax
import jax.numpy as jnp
from jax.experimental import pallas as pl
from jax.experimental.pallas import tpu as pltpu

# ----------------------------- static geometry ----------------------------- #
H = W = 28                    # input spatial size (MNIST-like, implied by fc1 = 16*20*20)
KS = 5                        # conv kernel size
KK = KS * KS                  # 25 taps
C1, C2 = 6, 16                # conv1 / conv2 output channels
OH1 = H - KS + 1              # 24
OH2 = OH1 - KS + 1            # 20
OW2 = OH2                     # 20
MAXSHIFT = (KS - 1) * W + (KS - 1)   # 116: largest tap offset in flattened coords
A2W = OH2 * W                 # 560: conv2 full-width flattened output per channel
A1W = A2W + MAXSHIFT          # 676: conv1 full-width length needed by conv2's taps
XPAD = 896                    # >= A1W + MAXSHIFT (= 792), rounded to a lane multiple
FEAT = C2 * A2W               # 8960: fc1 input width (full-width features)


def _round_up(x, m):
    return (x + m - 1) // m * m


# ------------------------------ Pallas kernels ------------------------------ #

def conv_fused_kernel(x_ref, w1_ref, b1_ref, w2_ref, b2_ref, o_ref, *, bblk):
    """Fused conv1+ReLU+conv2+ReLU for a block of `bblk` images.

    x_ref : (bblk, XPAD)     zero-padded flattened 28x28 images, bf16
    w1_ref: (C1, KK)         conv1 weights, [cout, kh*5+kw], bf16
    b1_ref: (C1, 1)          f32
    w2_ref: (C2, KK*C1)      conv2 weights, [cout, (kh*5+kw)*6+cin], bf16
    b2_ref: (C2, 1)          f32
    o_ref : (bblk, C2, A2W)  full-width conv2 features; within each 28-wide row, columns
                             >= 20 are junk and are absorbed by zero fc1 weight rows.
    """
    w1 = w1_ref[...]
    b1 = b1_ref[...]
    w2 = w2_ref[...]
    b2 = b2_ref[...]
    shifts = [kh * W + kw for kh in range(KS) for kw in range(KS)]
    for b in range(bblk):
        xb = x_ref[pl.ds(b, 1), :]                                            # (1, XPAD)
        # im2col slab for conv1: one K=25 MXU contraction (all slices in-bounds).
        slab1 = jnp.concatenate([xb[:, s:s + A1W] for s in shifts], axis=0)   # (25, A1W)
        a1 = jnp.dot(w1, slab1, preferred_element_type=jnp.float32)           # (C1, A1W)
        a1 = jnp.maximum(a1 + b1, 0.0).astype(jnp.bfloat16)
        # im2col slab for conv2: K = 25*6 = 150, spatial stays on the lane axis.
        slab2 = jnp.concatenate([a1[:, s:s + A2W] for s in shifts], axis=0)   # (150, A2W)
        a2 = jnp.dot(w2, slab2, preferred_element_type=jnp.float32)           # (C2, A2W)
        a2 = jnp.maximum(a2 + b2, 0.0)
        o_ref[b, :, :] = a2.astype(o_ref.dtype)


def fc_fused_kernel(x_ref, w1_ref, b1_ref, w2_ref, b2_ref, w3_ref, b3_ref, o_ref):
    """fc1+ReLU+fc2+ReLU+fc3 for one tile of batch rows (single pallas_call)."""
    h = jnp.dot(x_ref[...], w1_ref[...], preferred_element_type=jnp.float32)
    h = jnp.maximum(h + b1_ref[...], 0.0).astype(jnp.bfloat16)
    h = jnp.dot(h, w2_ref[...], preferred_element_type=jnp.float32)
    h = jnp.maximum(h + b2_ref[...], 0.0).astype(jnp.bfloat16)
    h = jnp.dot(h, w3_ref[...], preferred_element_type=jnp.float32)
    o_ref[...] = (h + b3_ref[...]).astype(o_ref.dtype)


# -------------------------------- wrappers ---------------------------------- #

def conv_features(x_nchw, w1, b1, w2, b2):
    """Fused conv stage. Returns (N, FEAT) bf16 full-width features."""
    N = x_nchw.shape[0]
    assert x_nchw.shape[1:] == (1, H, W)
    bblk = min(8, N)                       # several images per grid step (amortize launch)
    n_pad = _round_up(N, bblk)
    x_flat = x_nchw.reshape(N, H * W)      # Cin == 1
    x_flat = jnp.pad(x_flat, ((0, n_pad - N), (0, XPAD - H * W))).astype(jnp.bfloat16)

    out = pl.pallas_call(
        functools.partial(conv_fused_kernel, bblk=bblk),
        grid=(n_pad // bblk,),
        out_shape=jax.ShapeDtypeStruct((n_pad, C2, A2W), jnp.bfloat16),
        in_specs=[
            pl.BlockSpec((bblk, XPAD), lambda i: (i, 0)),
            pl.BlockSpec((C1, KK), lambda i: (0, 0)),
            pl.BlockSpec((C1, 1), lambda i: (0, 0)),
            pl.BlockSpec((C2, KK * C1), lambda i: (0, 0)),
            pl.BlockSpec((C2, 1), lambda i: (0, 0)),
        ],
        out_specs=pl.BlockSpec((bblk, C2, A2W), lambda i: (i, 0, 0)),
        compiler_params=pltpu.CompilerParams(dimension_semantics=("parallel",)),
    )(x_flat, w1, b1, w2, b2)
    # Contiguous merge of the last two axes (no transpose, no slice copy).
    return out.reshape(n_pad, FEAT)[:N]


def fc_head(feats, w1, b1, w2, b2, w3, b3):
    """Fused fc1/fc2/fc3, tiled over batch rows."""
    N = feats.shape[0]
    tm = min(128, _round_up(N, 8))         # conservative row tile: fits v5e/v6e/v7x VMEM
    n_pad = _round_up(N, tm)
    feats = jnp.pad(feats, ((0, n_pad - N), (0, 0)))

    out = pl.pallas_call(
        fc_fused_kernel,
        grid=(n_pad // tm,),
        out_shape=jax.ShapeDtypeStruct((n_pad, 10), jnp.float32),
        in_specs=[
            pl.BlockSpec((tm, FEAT), lambda i: (i, 0)),
            pl.BlockSpec((FEAT, 120), lambda i: (0, 0)),
            pl.BlockSpec((1, 120), lambda i: (0, 0)),
            pl.BlockSpec((120, 84), lambda i: (0, 0)),
            pl.BlockSpec((1, 84), lambda i: (0, 0)),
            pl.BlockSpec((84, 10), lambda i: (0, 0)),
            pl.BlockSpec((1, 10), lambda i: (0, 0)),
        ],
        out_specs=pl.BlockSpec((tm, 10), lambda i: (i, 0)),
        compiler_params=pltpu.CompilerParams(dimension_semantics=("parallel",)),
    )(feats, w1, b1, w2, b2, w3, b3)
    return out[:N]


# ------------------------------- parameters --------------------------------- #

def init_params(key):
    ks = jax.random.split(key, 10)

    def uni(k, shape, fan_in):
        bound = 1.0 / jnp.sqrt(fan_in)
        return jax.random.uniform(k, shape, jnp.float32, -bound, bound)

    return {
        "conv1_w": uni(ks[0], (5, 5, 1, 6), 1 * 5 * 5),       # HWIO
        "conv1_b": uni(ks[1], (6,), 1 * 5 * 5),
        "conv2_w": uni(ks[2], (5, 5, 6, 16), 6 * 5 * 5),
        "conv2_b": uni(ks[3], (16,), 6 * 5 * 5),
        "fc1_w": uni(ks[4], (16 * 20 * 20, 120), 16 * 20 * 20),
        "fc1_b": uni(ks[5], (120,), 16 * 20 * 20),
        "fc2_w": uni(ks[6], (120, 84), 120),
        "fc2_b": uni(ks[7], (84,), 120),
        "fc3_w": uni(ks[8], (84, 10), 84),
        "fc3_b": uni(ks[9], (10,), 84),
    }


def prepare_params(p):
    """One-time offline repack into kernel-friendly layouts (done once, not per forward)."""
    w1 = p["conv1_w"].reshape(KK, C1).T.astype(jnp.bfloat16)          # (6, 25)
    b1 = p["conv1_b"].reshape(C1, 1).astype(jnp.float32)
    w2 = p["conv2_w"].reshape(KK * C1, C2).T.astype(jnp.bfloat16)     # (16, 150)
    b2 = p["conv2_b"].reshape(C2, 1).astype(jnp.float32)
    # fc1 rows reordered from torch's (C,20,20) flatten to the kernel's full-width
    # (C,20,28) flatten; the 8 extra columns per row get exactly-zero weights.
    fw = p["fc1_w"].reshape(C2, OH2, OW2, 120)
    fw = jnp.pad(fw, ((0, 0), (0, 0), (0, W - OW2), (0, 0)))           # (16, 20, 28, 120)
    fc1_w = fw.reshape(FEAT, 120).astype(jnp.bfloat16)
    return {
        "c1_w": w1, "c1_b": b1, "c2_w": w2, "c2_b": b2,
        "fc1_w": fc1_w, "fc1_b": p["fc1_b"].reshape(1, 120).astype(jnp.float32),
        "fc2_w": p["fc2_w"].astype(jnp.bfloat16),
        "fc2_b": p["fc2_b"].reshape(1, 84).astype(jnp.float32),
        "fc3_w": p["fc3_w"].astype(jnp.bfloat16),
        "fc3_b": p["fc3_b"].reshape(1, 10).astype(jnp.float32),
    }


# -------------------------------- forward ----------------------------------- #

def convnet_forward(pp, x_nchw):
    feats = conv_features(x_nchw, pp["c1_w"], pp["c1_b"], pp["c2_w"], pp["c2_b"])
    return fc_head(feats, pp["fc1_w"], pp["fc1_b"], pp["fc2_w"], pp["fc2_b"],
                   pp["fc3_w"], pp["fc3_b"])


def convnet_reference(p, x_nchw):
    """Pure-JAX f32 reference for validation."""
    x = jax.lax.conv_general_dilated(
        x_nchw, jnp.transpose(p["conv1_w"], (3, 2, 0, 1)), (1, 1), "VALID")
    x = jax.nn.relu(x + p["conv1_b"][None, :, None, None])
    x = jax.lax.conv_general_dilated(
        x, jnp.transpose(p["conv2_w"], (3, 2, 0, 1)), (1, 1), "VALID")
    x = jax.nn.relu(x + p["conv2_b"][None, :, None, None])
    x = x.reshape(x.shape[0], -1)
    x = jax.nn.relu(x @ p["fc1_w"] + p["fc1_b"])
    x = jax.nn.relu(x @ p["fc2_w"] + p["fc2_b"])
    return x @ p["fc3_w"] + p["fc3_b"]


if __name__ == "__main__":
    key = jax.random.PRNGKey(0)
    k_params, k_x = jax.random.split(key)
    params = init_params(k_params)
    prepped = prepare_params(params)

    # MNIST-like input implied by the module: 28x28 single-channel, NCHW like PyTorch.
    x = jax.random.normal(k_x, (2, 1, 28, 28), jnp.float32)

    out = jax.block_until_ready(convnet_forward(prepped, x))
    assert out.shape == (2, 10)

    ref = jax.block_until_ready(convnet_reference(params, x))
    err = float(jnp.max(jnp.abs(out - ref)))
    # bf16 MXU inputs with f32 accumulation -> small numerical gap vs. the f32 reference.
    assert err < 5e-2, f"mismatch vs reference: max abs err {err}"

    print("KERNEL_OK")
</pallas_src>

<mosaic_0001>
module attributes {stable_mosaic.version = 11 : i64} {
  func.func @conv_fused_kernel(%arg0: i32, %arg1: memref<2x896xbf16, #tpu.memory_space<vmem>>, %arg2: memref<6x25xbf16, #tpu.memory_space<vmem>>, %arg3: memref<6x1xf32, #tpu.memory_space<vmem>>, %arg4: memref<16x150xbf16, #tpu.memory_space<vmem>>, %arg5: memref<16x1xf32, #tpu.memory_space<vmem>>, %arg6: memref<2x16x560xbf16, #tpu.memory_space<vmem>>) attributes {dimension_semantics = [#tpu.dimension_semantics<parallel>], iteration_bounds = array<i64: 1>, scalar_prefetch = 0 : i64, scratch_operands = 0 : i64, tpu.core_type = #tpu.core_type<tc>, window_params = [{transform_indices = @transform_0, window_bounds = array<i64: 2, 896>}, {pipeline_mode = #tpu.pipeline_mode<synchronous>, transform_indices = @transform_1, window_bounds = array<i64: 6, 25>}, {pipeline_mode = #tpu.pipeline_mode<synchronous>, transform_indices = @transform_2, window_bounds = array<i64: 6, 1>}, {pipeline_mode = #tpu.pipeline_mode<synchronous>, transform_indices = @transform_3, window_bounds = array<i64: 16, 150>}, {pipeline_mode = #tpu.pipeline_mode<synchronous>, transform_indices = @transform_4, window_bounds = array<i64: 16, 1>}, {transform_indices = @transform_5, window_bounds = array<i64: 2, 16, 560>}]} {
    %c0 = arith.constant 0 : index
    %c0_0 = arith.constant 0 : index
    %0 = vector.load %arg2[%c0, %c0_0] : memref<6x25xbf16, #tpu.memory_space<vmem>>, vector<6x25xbf16>
    %c0_1 = arith.constant 0 : index
    %c0_2 = arith.constant 0 : index
    %1 = vector.load %arg3[%c0_1, %c0_2] : memref<6x1xf32, #tpu.memory_space<vmem>>, vector<6x1xf32>
    %c0_3 = arith.constant 0 : index
    %c0_4 = arith.constant 0 : index
    %2 = vector.load %arg4[%c0_3, %c0_4] : memref<16x150xbf16, #tpu.memory_space<vmem>>, vector<16x150xbf16>
    %c0_5 = arith.constant 0 : index
    %c0_6 = arith.constant 0 : index
    %3 = vector.load %arg5[%c0_5, %c0_6] : memref<16x1xf32, #tpu.memory_space<vmem>>, vector<16x1xf32>
    %c0_7 = arith.constant 0 : index
    %c0_8 = arith.constant 0 : index
    %4 = vector.load %arg1[%c0_7, %c0_8] : memref<2x896xbf16, #tpu.memory_space<vmem>>, vector<1x896xbf16>
    %5 = vector.extract_strided_slice %4 {offsets = [0, 0], sizes = [1, 676], strides = [1, 1]} : vector<1x896xbf16> to vector<1x676xbf16>
    %6 = vector.extract_strided_slice %4 {offsets = [0, 1], sizes = [1, 676], strides = [1, 1]} : vector<1x896xbf16> to vector<1x676xbf16>
    %7 = vector.extract_strided_slice %4 {offsets = [0, 2], sizes = [1, 676], strides = [1, 1]} : vector<1x896xbf16> to vector<1x676xbf16>
    %8 = vector.extract_strided_slice %4 {offsets = [0, 3], sizes = [1, 676], strides = [1, 1]} : vector<1x896xbf16> to vector<1x676xbf16>
    %9 = vector.extract_strided_slice %4 {offsets = [0, 4], sizes = [1, 676], strides = [1, 1]} : vector<1x896xbf16> to vector<1x676xbf16>
    %10 = vector.extract_strided_slice %4 {offsets = [0, 28], sizes = [1, 676], strides = [1, 1]} : vector<1x896xbf16> to vector<1x676xbf16>
    %11 = vector.extract_strided_slice %4 {offsets = [0, 29], sizes = [1, 676], strides = [1, 1]} : vector<1x896xbf16> to vector<1x676xbf16>
    %12 = vector.extract_strided_slice %4 {offsets = [0, 30], sizes = [1, 676], strides = [1, 1]} : vector<1x896xbf16> to vector<1x676xbf16>
    %13 = vector.extract_strided_slice %4 {offsets = [0, 31], sizes = [1, 676], strides = [1, 1]} : vector<1x896xbf16> to vector<1x676xbf16>
    %14 = vector.extract_strided_slice %4 {offsets = [0, 32], sizes = [1, 676], strides = [1, 1]} : vector<1x896xbf16> to vector<1x676xbf16>
    %15 = vector.extract_strided_slice %4 {offsets = [0, 56], sizes = [1, 676], strides = [1, 1]} : vector<1x896xbf16> to vector<1x676xbf16>
    %16 = vector.extract_strided_slice %4 {offsets = [0, 57], sizes = [1, 676], strides = [1, 1]} : vector<1x896xbf16> to vector<1x676xbf16>
    %17 = vector.extract_strided_slice %4 {offsets = [0, 58], sizes = [1, 676], strides = [1, 1]} : vector<1x896xbf16> to vector<1x676xbf16>
    %18 = vector.extract_strided_slice %4 {offsets = [0, 59], sizes = [1, 676], strides = [1, 1]} : vector<1x896xbf16> to vector<1x676xbf16>
    %19 = vector.extract_strided_slice %4 {offsets = [0, 60], sizes = [1, 676], strides = [1, 1]} : vector<1x896xbf16> to vector<1x676xbf16>
    %20 = vector.extract_strided_slice %4 {offsets = [0, 84], sizes = [1, 676], strides = [1, 1]} : vector<1x896xbf16> to vector<1x676xbf16>
    %21 = vector.extract_strided_slice %4 {offsets = [0, 85], sizes = [1, 676], strides = [1, 1]} : vector<1x896xbf16> to vector<1x676xbf16>
    %22 = vector.extract_strided_slice %4 {offsets = [0, 86], sizes = [1, 676], strides = [1, 1]} : vector<1x896xbf16> to vector<1x676xbf16>
    %23 = vector.extract_strided_slice %4 {offsets = [0, 87], sizes = [1, 676], strides = [1, 1]} : vector<1x896xbf16> to vector<1x676xbf16>
    %24 = vector.extract_strided_slice %4 {offsets = [0, 88], sizes = [1, 676], strides = [1, 1]} : vector<1x896xbf16> to vector<1x676xbf16>
    %25 = vector.extract_strided_slice %4 {offsets = [0, 112], sizes = [1, 676], strides = [1, 1]} : vector<1x896xbf16> to vector<1x676xbf16>
    %26 = vector.extract_strided_slice %4 {offsets = [0, 113], sizes = [1, 676], strides = [1, 1]} : vector<1x896xbf16> to vector<1x676xbf16>
    %27 = vector.extract_strided_slice %4 {offsets = [0, 114], sizes = [1, 676], strides = [1, 1]} : vector<1x896xbf16> to vector<1x676xbf16>
    %28 = vector.extract_strided_slice %4 {offsets = [0, 115], sizes = [1, 676], strides = [1, 1]} : vector<1x896xbf16> to vector<1x676xbf16>
    %29 = vector.extract_strided_slice %4 {offsets = [0, 116], sizes = [1, 676], strides = [1, 1]} : vector<1x896xbf16> to vector<1x676xbf16>
    %30 = tpu.concatenate %5, %6, %7, %8, %9, %10, %11, %12, %13, %14, %15, %16, %17, %18, %19, %20 in 0 : vector<1x676xbf16>, vector<1x676xbf16>, vector<1x676xbf16>, vector<1x676xbf16>, vector<1x676xbf16>, vector<1x676xbf16>, vector<1x676xbf16>, vector<1x676xbf16>, vector<1x676xbf16>, vector<1x676xbf16>, vector<1x676xbf16>, vector<1x676xbf16>, vector<1x676xbf16>, vector<1x676xbf16>, vector<1x676xbf16>, vector<1x676xbf16> -> vector<16x676xbf16>
    %31 = tpu.concatenate %21, %22, %23, %24, %25, %26, %27, %28, %29 in 0 : vector<1x676xbf16>, vector<1x676xbf16>, vector<1x676xbf16>, vector<1x676xbf16>, vector<1x676xbf16>, vector<1x676xbf16>, vector<1x676xbf16>, vector<1x676xbf16>, vector<1x676xbf16> -> vector<9x676xbf16>
    %32 = tpu.concatenate %30, %31 in 0 : vector<16x676xbf16>, vector<9x676xbf16> -> vector<25x676xbf16>
    %cst = arith.constant dense<0.000000e+00> : vector<6x676xf32>
    %33 = tpu.matmul %0, %32, %cst {dimension_numbers = #tpu.dot_dimension_numbers<[1], [0], [0], [1], [0, 0, 1, 1], [], []>} : vector<6x25xbf16>, vector<25x676xbf16>, vector<6x676xf32> -> vector<6x676xf32>
    %34 = vector.broadcast %1 : vector<6x1xf32> to vector<6x676xf32>
    %35 = arith.addf %33, %34 : vector<6x676xf32>
    %cst_9 = arith.constant 0.000000e+00 : f32
    %36 = vector.broadcast %cst_9 : f32 to vector<6x676xf32>
    %37 = arith.maximumf %35, %36 : vector<6x676xf32>
    %38 = arith.truncf %37 : vector<6x676xf32> to vector<6x676xbf16>
    %39 = vector.extract_strided_slice %38 {offsets = [0, 0], sizes = [6, 560], strides = [1, 1]} : vector<6x676xbf16> to vector<6x560xbf16>
    %40 = vector.extract_strided_slice %38 {offsets = [0, 1], sizes = [6, 560], strides = [1, 1]} : vector<6x676xbf16> to vector<6x560xbf16>
    %41 = vector.extract_strided_slice %38 {offsets = [0, 2], sizes = [6, 560], strides = [1, 1]} : vector<6x676xbf16> to vector<6x560xbf16>
    %42 = vector.extract_strided_slice %38 {offsets = [0, 3], sizes = [6, 560], strides = [1, 1]} : vector<6x676xbf16> to vector<6x560xbf16>
    %43 = vector.extract_strided_slice %38 {offsets = [0, 4], sizes = [6, 560], strides = [1, 1]} : vector<6x676xbf16> to vector<6x560xbf16>
    %44 = vector.extract_strided_slice %38 {offsets = [0, 28], sizes = [6, 560], strides = [1, 1]} : vector<6x676xbf16> to vector<6x560xbf16>
    %45 = vector.extract_strided_slice %38 {offsets = [0, 29], sizes = [6, 560], strides = [1, 1]} : vector<6x676xbf16> to vector<6x560xbf16>
    %46 = vector.extract_strided_slice %38 {offsets = [0, 30], sizes = [6, 560], strides = [1, 1]} : vector<6x676xbf16> to vector<6x560xbf16>
    %47 = vector.extract_strided_slice %38 {offsets = [0, 31], sizes = [6, 560], strides = [1, 1]} : vector<6x676xbf16> to vector<6x560xbf16>
    %48 = vector.extract_strided_slice %38 {offsets = [0, 32], sizes = [6, 560], strides = [1, 1]} : vector<6x676xbf16> to vector<6x560xbf16>
    %49 = vector.extract_strided_slice %38 {offsets = [0, 56], sizes = [6, 560], strides = [1, 1]} : vector<6x676xbf16> to vector<6x560xbf16>
    %50 = vector.extract_strided_slice %38 {offsets = [0, 57], sizes = [6, 560], strides = [1, 1]} : vector<6x676xbf16> to vector<6x560xbf16>
    %51 = vector.extract_strided_slice %38 {offsets = [0, 58], sizes = [6, 560], strides = [1, 1]} : vector<6x676xbf16> to vector<6x560xbf16>
    %52 = vector.extract_strided_slice %38 {offsets = [0, 59], sizes = [6, 560], strides = [1, 1]} : vector<6x676xbf16> to vector<6x560xbf16>
    %53 = vector.extract_strided_slice %38 {offsets = [0, 60], sizes = [6, 560], strides = [1, 1]} : vector<6x676xbf16> to vector<6x560xbf16>
    %54 = vector.extract_strided_slice %38 {offsets = [0, 84], sizes = [6, 560], strides = [1, 1]} : vector<6x676xbf16> to vector<6x560xbf16>
    %55 = vector.extract_strided_slice %38 {offsets = [0, 85], sizes = [6, 560], strides = [1, 1]} : vector<6x676xbf16> to vector<6x560xbf16>
    %56 = vector.extract_strided_slice %38 {offsets = [0, 86], sizes = [6, 560], strides = [1, 1]} : vector<6x676xbf16> to vector<6x560xbf16>
    %57 = vector.extract_strided_slice %38 {offsets = [0, 87], sizes = [6, 560], strides = [1, 1]} : vector<6x676xbf16> to vector<6x560xbf16>
    %58 = vector.extract_strided_slice %38 {offsets = [0, 88], sizes = [6, 560], strides = [1, 1]} : vector<6x676xbf16> to vector<6x560xbf16>
    %59 = vector.extract_strided_slice %38 {offsets = [0, 112], sizes = [6, 560], strides = [1, 1]} : vector<6x676xbf16> to vector<6x560xbf16>
    %60 = vector.extract_strided_slice %38 {offsets = [0, 113], sizes = [6, 560], strides = [1, 1]} : vector<6x676xbf16> to vector<6x560xbf16>
    %61 = vector.extract_strided_slice %38 {offsets = [0, 114], sizes = [6, 560], strides = [1, 1]} : vector<6x676xbf16> to vector<6x560xbf16>
    %62 = vector.extract_strided_slice %38 {offsets = [0, 115], sizes = [6, 560], strides = [1, 1]} : vector<6x676xbf16> to vector<6x560xbf16>
    %63 = vector.extract_strided_slice %38 {offsets = [0, 116], sizes = [6, 560], strides = [1, 1]} : vector<6x676xbf16> to vector<6x560xbf16>
    %64 = tpu.concatenate %39, %40, %41, %42, %43, %44, %45, %46, %47, %48, %49, %50, %51, %52, %53, %54 in 0 : vector<6x560xbf16>, vector<6x560xbf16>, vector<6x560xbf16>, vector<6x560xbf16>, vector<6x560xbf16>, vector<6x560xbf16>, vector<6x560xbf16>, vector<6x560xbf16>, vector<6x560xbf16>, vector<6x560xbf16>, vector<6x560xbf16>, vector<6x560xbf16>, vector<6x560xbf16>, vector<6x560xbf16>, vector<6x560xbf16>, vector<6x560xbf16> -> vector<96x560xbf16>
    %65 = tpu.concatenate %55, %56, %57, %58, %59, %60, %61, %62, %63 in 0 : vector<6x560xbf16>, vector<6x560xbf16>, vector<6x560xbf16>, vector<6x560xbf16>, vector<6x560xbf16>, vector<6x560xbf16>, vector<6x560xbf16>, vector<6x560xbf16>, vector<6x560xbf16> -> vector<54x560xbf16>
    %66 = tpu.concatenate %64, %65 in 0 : vector<96x560xbf16>, vector<54x560xbf16> -> vector<150x560xbf16>
    %cst_10 = arith.constant dense<0.000000e+00> : vector<16x560xf32>
    %67 = tpu.matmul %2, %66, %cst_10 {dimension_numbers = #tpu.dot_dimension_numbers<[1], [0], [0], [1], [0, 0, 1, 1], [], []>} : vector<16x150xbf16>, vector<150x560xbf16>, vector<16x560xf32> -> vector<16x560xf32>
    %68 = vector.broadcast %3 : vector<16x1xf32> to vector<16x560xf32>
    %69 = arith.addf %67, %68 : vector<16x560xf32>
    %cst_11 = arith.constant 0.000000e+00 : f32
    %70 = vector.broadcast %cst_11 : f32 to vector<16x560xf32>
    %71 = arith.maximumf %69, %70 : vector<16x560xf32>
    %72 = arith.truncf %71 : vector<16x560xf32> to vector<16x560xbf16>
    %c0_12 = arith.constant 0 : index
    %c0_13 = arith.constant 0 : index
    %c0_14 = arith.constant 0 : index
    %73 = vector.load %arg6[%c0_12, %c0_13, %c0_14] : memref<2x16x560xbf16, #tpu.memory_space<vmem>>, vector<1x16x560xbf16>
    %74 = vector.shape_cast %73 : vector<1x16x560xbf16> to vector<16x560xbf16>
    %75 = vector.shape_cast %72 : vector<16x560xbf16> to vector<1x16x560xbf16>
    tpu.vector_store %arg6[%c0_12, %c0_13, %c0_14], %75 {strides = array<i32>} : memref<2x16x560xbf16, #tpu.memory_space<vmem>>, vector<1x16x560xbf16>,
    %c1 = arith.constant 1 : index
    %c0_15 = arith.constant 0 : index
    %76 = vector.load %arg1[%c1, %c0_15] : memref<2x896xbf16, #tpu.memory_space<vmem>>, vector<1x896xbf16>
    %77 = vector.extract_strided_slice %76 {offsets = [0, 0], sizes = [1, 676], strides = [1, 1]} : vector<1x896xbf16> to vector<1x676xbf16>
    %78 = vector.extract_strided_slice %76 {offsets = [0, 1], sizes = [1, 676], strides = [1, 1]} : vector<1x896xbf16> to vector<1x676xbf16>
    %79 = vector.extract_strided_slice %76 {offsets = [0, 2], sizes = [1, 676], strides = [1, 1]} : vector<1x896xbf16> to vector<1x676xbf16>
    %80 = vector.extract_strided_slice %76 {offsets = [0, 3], sizes = [1, 676], strides = [1, 1]} : vector<1x896xbf16> to vector<1x676xbf16>
    %81 = vector.extract_strided_slice %76 {offsets = [0, 4], sizes = [1, 676], strides = [1, 1]} : vector<1x896xbf16> to vector<1x676xbf16>
    %82 = vector.extract_strided_slice %76 {offsets = [0, 28], sizes = [1, 676], strides = [1, 1]} : vector<1x896xbf16> to vector<1x676xbf16>
    %83 = vector.extract_strided_slice %76 {offsets = [0, 29], sizes = [1, 676], strides = [1, 1]} : vector<1x896xbf16> to vector<1x676xbf16>
    %84 = vector.extract_strided_slice %76 {offsets = [0, 30], sizes = [1, 676], strides = [1, 1]} : vector<1x896xbf16> to vector<1x676xbf16>
    %85 = vector.extract_strided_slice %76 {offsets = [0, 31], sizes = [1, 676], strides = [1, 1]} : vector<1x896xbf16> to vector<1x676xbf16>
    %86 = vector.extract_strided_slice %76 {offsets = [0, 32], sizes = [1, 676], strides = [1, 1]} : vector<1x896xbf16> to vector<1x676xbf16>
    %87 = vector.extract_strided_slice %76 {offsets = [0, 56], sizes = [1, 676], strides = [1, 1]} : vector<1x896xbf16> to vector<1x676xbf16>
    %88 = vector.extract_strided_slice %76 {offsets = [0, 57], sizes = [1, 676], strides = [1, 1]} : vector<1x896xbf16> to vector<1x676xbf16>
    %89 = vector.extract_strided_slice %76 {offsets = [0, 58], sizes = [1, 676], strides = [1, 1]} : vector<1x896xbf16> to vector<1x676xbf16>
    %90 = vector.extract_strided_slice %76 {offsets = [0, 59], sizes = [1, 676], strides = [1, 1]} : vector<1x896xbf16> to vector<1x676xbf16>
    %91 = vector.extract_strided_slice %76 {offsets = [0, 60], sizes = [1, 676], strides = [1, 1]} : vector<1x896xbf16> to vector<1x676xbf16>
    %92 = vector.extract_strided_slice %76 {offsets = [0, 84], sizes = [1, 676], strides = [1, 1]} : vector<1x896xbf16> to vector<1x676xbf16>
    %93 = vector.extract_strided_slice %76 {offsets = [0, 85], sizes = [1, 676], strides = [1, 1]} : vector<1x896xbf16> to vector<1x676xbf16>
    %94 = vector.extract_strided_slice %76 {offsets = [0, 86], sizes = [1, 676], strides = [1, 1]} : vector<1x896xbf16> to vector<1x676xbf16>
    %95 = vector.extract_strided_slice %76 {offsets = [0, 87], sizes = [1, 676], strides = [1, 1]} : vector<1x896xbf16> to vector<1x676xbf16>
    %96 = vector.extract_strided_slice %76 {offsets = [0, 88], sizes = [1, 676], strides = [1, 1]} : vector<1x896xbf16> to vector<1x676xbf16>
    %97 = vector.extract_strided_slice %76 {offsets = [0, 112], sizes = [1, 676], strides = [1, 1]} : vector<1x896xbf16> to vector<1x676xbf16>
    %98 = vector.extract_strided_slice %76 {offsets = [0, 113], sizes = [1, 676], strides = [1, 1]} : vector<1x896xbf16> to vector<1x676xbf16>
    %99 = vector.extract_strided_slice %76 {offsets = [0, 114], sizes = [1, 676], strides = [1, 1]} : vector<1x896xbf16> to vector<1x676xbf16>
    %100 = vector.extract_strided_slice %76 {offsets = [0, 115], sizes = [1, 676], strides = [1, 1]} : vector<1x896xbf16> to vector<1x676xbf16>
    %101 = vector.extract_strided_slice %76 {offsets = [0, 116], sizes = [1, 676], strides = [1, 1]} : vector<1x896xbf16> to vector<1x676xbf16>
    %102 = tpu.concatenate %77, %78, %79, %80, %81, %82, %83, %84, %85, %86, %87, %88, %89, %90, %91, %92 in 0 : vector<1x676xbf16>, vector<1x676xbf16>, vector<1x676xbf16>, vector<1x676xbf16>, vector<1x676xbf16>, vector<1x676xbf16>, vector<1x676xbf16>, vector<1x676xbf16>, vector<1x676xbf16>, vector<1x676xbf16>, vector<1x676xbf16>, vector<1x676xbf16>, vector<1x676xbf16>, vector<1x676xbf16>, vector<1x676xbf16>, vector<1x676xbf16> -> vector<16x676xbf16>
    %103 = tpu.concatenate %93, %94, %95, %96, %97, %98, %99, %100, %101 in 0 : vector<1x676xbf16>, vector<1x676xbf16>, vector<1x676xbf16>, vector<1x676xbf16>, vector<1x676xbf16>, vector<1x676xbf16>, vector<1x676xbf16>, vector<1x676xbf16>, vector<1x676xbf16> -> vector<9x676xbf16>
    %104 = tpu.concatenate %102, %103 in 0 : vector<16x676xbf16>, vector<9x676xbf16> -> vector<25x676xbf16>
    %cst_16 = arith.constant dense<0.000000e+00> : vector<6x676xf32>
    %105 = tpu.matmul %0, %104, %cst_16 {dimension_numbers = #tpu.dot_dimension_numbers<[1], [0], [0], [1], [0, 0, 1, 1], [], []>} : vector<6x25xbf16>, vector<25x676xbf16>, vector<6x676xf32> -> vector<6x676xf32>
    %106 = vector.broadcast %1 : vector<6x1xf32> to vector<6x676xf32>
    %107 = arith.addf %105, %106 : vector<6x676xf32>
    %cst_17 = arith.constant 0.000000e+00 : f32
    %108 = vector.broadcast %cst_17 : f32 to vector<6x676xf32>
    %109 = arith.maximumf %107, %108 : vector<6x676xf32>
    %110 = arith.truncf %109 : vector<6x676xf32> to vector<6x676xbf16>
    %111 = vector.extract_strided_slice %110 {offsets = [0, 0], sizes = [6, 560], strides = [1, 1]} : vector<6x676xbf16> to vector<6x560xbf16>
    %112 = vector.extract_strided_slice %110 {offsets = [0, 1], sizes = [6, 560], strides = [1, 1]} : vector<6x676xbf16> to vector<6x560xbf16>
    %113 = vector.extract_strided_slice %110 {offsets = [0, 2], sizes = [6, 560], strides = [1, 1]} : vector<6x676xbf16> to vector<6x560xbf16>
    %114 = vector.extract_strided_slice %110 {offsets = [0, 3], sizes = [6, 560], strides = [1, 1]} : vector<6x676xbf16> to vector<6x560xbf16>
    %115 = vector.extract_strided_slice %110 {offsets = [0, 4], sizes = [6, 560], strides = [1, 1]} : vector<6x676xbf16> to vector<6x560xbf16>
    %116 = vector.extract_strided_slice %110 {offsets = [0, 28], sizes = [6, 560], strides = [1, 1]} : vector<6x676xbf16> to vector<6x560xbf16>
    %117 = vector.extract_strided_slice %110 {offsets = [0, 29], sizes = [6, 560], strides = [1, 1]} : vector<6x676xbf16> to vector<6x560xbf16>
    %118 = vector.extract_strided_slice %110 {offsets = [0, 30], sizes = [6, 560], strides = [1, 1]} : vector<6x676xbf16> to vector<6x560xbf16>
    %119 = vector.extract_strided_slice %110 {offsets = [0, 31], sizes = [6, 560], strides = [1, 1]} : vector<6x676xbf16> to vector<6x560xbf16>
    %120 = vector.extract_strided_slice %110 {offsets = [0, 32], sizes = [6, 560], strides = [1, 1]} : vector<6x676xbf16> to vector<6x560xbf16>
    %121 = vector.extract_strided_slice %110 {offsets = [0, 56], sizes = [6, 560], strides = [1, 1]} : vector<6x676xbf16> to vector<6x560xbf16>
    %122 = vector.extract_strided_slice %110 {offsets = [0, 57], sizes = [6, 560], strides = [1, 1]} : vector<6x676xbf16> to vector<6x560xbf16>
    %123 = vector.extract_strided_slice %110 {offsets = [0, 58], sizes = [6, 560], strides = [1, 1]} : vector<6x676xbf16> to vector<6x560xbf16>
    %124 = vector.extract_strided_slice %110 {offsets = [0, 59], sizes = [6, 560], strides = [1, 1]} : vector<6x676xbf16> to vector<6x560xbf16>
    %125 = vector.extract_strided_slice %110 {offsets = [0, 60], sizes = [6, 560], strides = [1, 1]} : vector<6x676xbf16> to vector<6x560xbf16>
    %126 = vector.extract_strided_slice %110 {offsets = [0, 84], sizes = [6, 560], strides = [1, 1]} : vector<6x676xbf16> to vector<6x560xbf16>
    %127 = vector.extract_strided_slice %110 {offsets = [0, 85], sizes = [6, 560], strides = [1, 1]} : vector<6x676xbf16> to vector<6x560xbf16>
    %128 = vector.extract_strided_slice %110 {offsets = [0, 86], sizes = [6, 560], strides = [1, 1]} : vector<6x676xbf16> to vector<6x560xbf16>
    %129 = vector.extract_strided_slice %110 {offsets = [0, 87], sizes = [6, 560], strides = [1, 1]} : vector<6x676xbf16> to vector<6x560xbf16>
    %130 = vector.extract_strided_slice %110 {offsets = [0, 88], sizes = [6, 560], strides = [1, 1]} : vector<6x676xbf16> to vector<6x560xbf16>
    %131 = vector.extract_strided_slice %110 {offsets = [0, 112], sizes = [6, 560], strides = [1, 1]} : vector<6x676xbf16> to vector<6x560xbf16>
    %132 = vector.extract_strided_slice %110 {offsets = [0, 113], sizes = [6, 560], strides = [1, 1]} : vector<6x676xbf16> to vector<6x560xbf16>
    %133 = vector.extract_strided_slice %110 {offsets = [0, 114], sizes = [6, 560], strides = [1, 1]} : vector<6x676xbf16> to vector<6x560xbf16>
    %134 = vector.extract_strided_slice %110 {offsets = [0, 115], sizes = [6, 560], strides = [1, 1]} : vector<6x676xbf16> to vector<6x560xbf16>
    %135 = vector.extract_strided_slice %110 {offsets = [0, 116], sizes = [6, 560], strides = [1, 1]} : vector<6x676xbf16> to vector<6x560xbf16>
    %136 = tpu.concatenate %111, %112, %113, %114, %115, %116, %117, %118, %119, %120, %121, %122, %123, %124, %125, %126 in 0 : vector<6x560xbf16>, vector<6x560xbf16>, vector<6x560xbf16>, vector<6x560xbf16>, vector<6x560xbf16>, vector<6x560xbf16>, vector<6x560xbf16>, vector<6x560xbf16>, vector<6x560xbf16>, vector<6x560xbf16>, vector<6x560xbf16>, vector<6x560xbf16>, vector<6x560xbf16>, vector<6x560xbf16>, vector<6x560xbf16>, vector<6x560xbf16> -> vector<96x560xbf16>
    %137 = tpu.concatenate %127, %128, %129, %130, %131, %132, %133, %134, %135 in 0 : vector<6x560xbf16>, vector<6x560xbf16>, vector<6x560xbf16>, vector<6x560xbf16>, vector<6x560xbf16>, vector<6x560xbf16>, vector<6x560xbf16>, vector<6x560xbf16>, vector<6x560xbf16> -> vector<54x560xbf16>
    %138 = tpu.concatenate %136, %137 in 0 : vector<96x560xbf16>, vector<54x560xbf16> -> vector<150x560xbf16>
    %cst_18 = arith.constant dense<0.000000e+00> : vector<16x560xf32>
    %139 = tpu.matmul %2, %138, %cst_18 {dimension_numbers = #tpu.dot_dimension_numbers<[1], [0], [0], [1], [0, 0, 1, 1], [], []>} : vector<16x150xbf16>, vector<150x560xbf16>, vector<16x560xf32> -> vector<16x560xf32>
    %140 = vector.broadcast %3 : vector<16x1xf32> to vector<16x560xf32>
    %141 = arith.addf %139, %140 : vector<16x560xf32>
    %cst_19 = arith.constant 0.000000e+00 : f32
    %142 = vector.broadcast %cst_19 : f32 to vector<16x560xf32>
    %143 = arith.maximumf %141, %142 : vector<16x560xf32>
    %144 = arith.truncf %143 : vector<16x560xf32> to vector<16x560xbf16>
    %c1_20 = arith.constant 1 : index
    %c0_21 = arith.constant 0 : index
    %c0_22 = arith.constant 0 : index
    %145 = vector.load %arg6[%c1_20, %c0_21, %c0_22] : memref<2x16x560xbf16, #tpu.memory_space<vmem>>, vector<1x16x560xbf16>
    %146 = vector.shape_cast %145 : vector<1x16x560xbf16> to vector<16x560xbf16>
    %147 = vector.shape_cast %144 : vector<16x560xbf16> to vector<1x16x560xbf16>
    tpu.vector_store %arg6[%c1_20, %c0_21, %c0_22], %147 {strides = array<i32>} : memref<2x16x560xbf16, #tpu.memory_space<vmem>>, vector<1x16x560xbf16>,
    return
  }
  func.func @transform_0(%arg0: i32) -> (i32, i32) {
    %c0_i32 = arith.constant 0 : i32
    %c0_i32_0 = arith.constant 0 : i32
    return %arg0, %c0_i32 : i32, i32
  }
  func.func @transform_1(%arg0: i32) -> (i32, i32) {
    %c0_i32 = arith.constant 0 : i32
    %c0_i32_0 = arith.constant 0 : i32
    %c0_i32_1 = arith.constant 0 : i32
    return %c0_i32, %c0_i32_0 : i32, i32
  }
  func.func @transform_2(%arg0: i32) -> (i32, i32) {
    %c0_i32 = arith.constant 0 : i32
    %c0_i32_0 = arith.constant 0 : i32
    %c0_i32_1 = arith.constant 0 : i32
    return %c0_i32, %c0_i32_0 : i32, i32
  }
  func.func @transform_3(%arg0: i32) -> (i32, i32) {
    %c0_i32 = arith.constant 0 : i32
    %c0_i32_0 = arith.constant 0 : i32
    %c0_i32_1 = arith.constant 0 : i32
    return %c0_i32, %c0_i32_0 : i32, i32
  }
  func.func @transform_4(%arg0: i32) -> (i32, i32) {
    %c0_i32 = arith.constant 0 : i32
    %c0_i32_0 = arith.constant 0 : i32
    %c0_i32_1 = arith.constant 0 : i32
    return %c0_i32, %c0_i32_0 : i32, i32
  }
  func.func @transform_5(%arg0: i32) -> (i32, i32, i32) {
    %c0_i32 = arith.constant 0 : i32
    %c0_i32_0 = arith.constant 0 : i32
    %c0_i32_1 = arith.constant 0 : i32
    return %arg0, %c0_i32, %c0_i32_0 : i32, i32, i32
  }
}

</mosaic_0001>

<llo_original>
// kernel: tpu_custom_call.1
$region0: #{tpu_custom_call.1}
  #allocation0 [shape = 'u32[]', space=smem, size = 0x4, offset = 0x4, fixed_abs, tag = 'smem constant byte address 0x4 - core index']
  #allocation1 [shape = 'u32[144,128]{1,0:T(1,128)}', space=vmem, size = 0x12000, scoped, tag = 'internal scratch']
  %s0 = inlined_call_operand.vmem [shape: bf16[2,896], index: 0, kind: input, shape index: {}]
  %s1 = inlined_call_operand.vmem [shape: bf16[6,25], index: 1, kind: input, shape index: {}]
  %s2 = inlined_call_operand.vmem [shape: f32[6,1], index: 2, kind: input, shape index: {}]
  %s3 = inlined_call_operand.vmem [shape: bf16[16,150], index: 3, kind: input, shape index: {}]
  %s4 = inlined_call_operand.vmem [shape: f32[16,1], index: 4, kind: input, shape index: {}]
  %s5 = inlined_call_operand.hbm [shape: bf16[2,16,560], index: 5, kind: output, shape index: {}]
  %s6 = sld [smem:[#allocation0]]
  $region30: #{tpu_custom_call.1} parent=0
    _
  %s8 = ssub.s32 1, %s6
  %s9 = scalar_select 0, %s8, %s6
  $region1: #{tpu_custom_call.1} parent=0
    #allocation2 [shape = 'u8[40960]{0}', space=vmem, size = 0xa000, scoped, tag = 'output window, operand 0, single buffered']
    #allocation3 [shape = 's32[1]{0}', space=sflag, size = 0x4, scoped, tag = 'scoped memory for tpu_custom_call.1']
    %10 = vsyncpa [#allocation3], 0
    // Predicated region
    $region2: #{tpu_custom_call.1} parent=1 // pred_check
      _
    $region3: #{tpu_custom_call.1} parent=1 // pred_check_branch
      %12 = sbr.rel (0) target = $region5
    $region4: #{tpu_custom_call.1} parent=1 // pred_region
      _
    $region5: #{tpu_custom_call.1} parent=1 // pred_fallthru
      _
    // Predicated region
    $region6: #{tpu_custom_call.1} parent=1 // pred_check
      _
    $region7: #{tpu_custom_call.1} parent=1 // pred_check_branch
      %14 = sbr.rel (0) target = $region9
    $region8: #{tpu_custom_call.1} parent=1 // pred_region
      _
    $region9: #{tpu_custom_call.1} parent=1 // pred_fallthru
      _
    // Predicated region
    $region10: #{tpu_custom_call.1} parent=1 // pred_check
      _
    $region11: #{tpu_custom_call.1} parent=1 // pred_check_branch
      %16 = sbr.rel (0) target = $region13
    $region12: #{tpu_custom_call.1} parent=1 // pred_region
      _
    $region13: #{tpu_custom_call.1} parent=1 // pred_fallthru
      _
    // Predicated region
    $region14: #{tpu_custom_call.1} parent=1 // pred_check
      _
    $region15: #{tpu_custom_call.1} parent=1 // pred_check_branch
      %18 = sbr.rel (0) target = $region17
    $region16: #{tpu_custom_call.1} parent=1 // pred_region
      _
    $region17: #{tpu_custom_call.1} parent=1 // pred_fallthru
      _
    // Predicated region
    $region18: #{tpu_custom_call.1} parent=1 // pred_check
      _
    $region19: #{tpu_custom_call.1} parent=1 // pred_check_branch
      %20 = sbr.rel (0) target = $region21
    $region20: #{tpu_custom_call.1} parent=1 // pred_region
      _
    $region21: #{tpu_custom_call.1} parent=1 // pred_fallthru
      _
    %v22 = vld [vmem:[%s1] sm:$0x7]
    %v23 = vld [vmem:[%s2] sm:$0x3f]
    %v24 = vld [vmem:[%s3] sm:$0xff]
    %v25 = vld [vmem:[%s3 + $0x8] sm:$0xff]
    %v26 = vld [vmem:[%s4] sm:$0xff]
    %v27 = vld [vmem:[%s4 + $0x8] sm:$0xff]
    %v28 = vld [vmem:[%s0] sm:$0x7f]
    %v30 = vcombine.high %v28, %v28
    %v32 = vunpack.c.l.s4 1966171168
    %v33 = vunpack.c.0.s8 %v32
    %v34 = vlaneseq
    %v35 = vshrl.u32 %v34, 7
    %v36 = vsub.s32 %v33, %v35
    %v37 = vrot.slane %v28, %v36
    %v39 = vunpack.c.l.s4 1966171168
    %v40 = vunpack.c.0.s8 %v39
    %v41 = vlaneseq
    %v42 = vshrl.u32 %v41, 7
    %v43 = vsub.s32 %v40, %v42
    %v44 = vrot.slane %v30, %v43
    %v45 = vcombine.high %v37, %v37
    %v46 = vcombine.high %v44, %v44
    %v48 = vunpack.c.l.s4 1966171168
    %v49 = vunpack.c.0.s8 %v48
    %v50 = vlaneseq
    %v51 = vshrl.u32 %v50, 7
    %v52 = vsub.s32 %v49, %v51
    %v53 = vrot.slane %v37, %v52
    %v55 = vunpack.c.l.s4 1966171168
    %v56 = vunpack.c.0.s8 %v55
    %v57 = vlaneseq
    %v58 = vshrl.u32 %v57, 7
    %v59 = vsub.s32 %v56, %v58
    %v60 = vrot.slane %v44, %v59
    %v62 = vunpack.c.l.s4 1966171168
    %v63 = vunpack.c.0.s8 %v62
    %v64 = vlaneseq
    %v65 = vshrl.u32 %v64, 7
    %v66 = vsub.s32 %v63, %v65
    %v67 = vrot.slane %v45, %v66
    %v69 = vunpack.c.l.s4 1966171168
    %v70 = vunpack.c.0.s8 %v69
    %v71 = vlaneseq
    %v72 = vshrl.u32 %v71, 7
    %v73 = vsub.s32 %v70, %v72
    %v74 = vrot.slane %v46, %v73
    %v75 = vcombine.high %v53, %v53
    %v76 = vcombine.high %v67, %v67
    %v84 = vshll.u32 %v53, 16
    %v87 = vshll.u32 %v67, 16
    %v90 = vshll.u32 %v75, 16
    %v93 = vshll.u32 %v76, 16
    %v96 = vshll.u32 %v60, 16
    %v99 = vshll.u32 %v74, 16
    %101 = vrot.lane.b32.xlu0 %v84, 127
    %v102 = vpop.permute.xlu0 %101
    %103 = vrot.lane.b32.xlu0 %v87, 127
    %v104 = vpop.permute.xlu0 %103
    %105 = vrot.lane.b32.xlu0 %v90, 127
    %v106 = vpop.permute.xlu0 %105
    %107 = vrot.lane.b32.xlu0 %v93, 127
    %v108 = vpop.permute.xlu0 %107
    %109 = vrot.lane.b32.xlu0 %v96, 127
    %v110 = vpop.permute.xlu0 %109
    %111 = vrot.lane.b32.xlu0 %v99, 127
    %v112 = vpop.permute.xlu0 %111
    %vm113 = vcmask 1039360
    %v114 = vsel %vm113, %v102, %v104
    %v115 = vsel %vm113, %v104, %v106
    %v116 = vsel %vm113, %v106, %v108
    %v117 = vsel %vm113, %v108, %v110
    %v118 = vsel %vm113, %v110, %v112
    %v125 = vcombine.low %v28, %v28
    %v127 = vunpack.c.l.s4 1966171168
    %v128 = vunpack.c.0.s8 %v127
    %v129 = vlaneseq
    %v130 = vshrl.u32 %v129, 7
    %v131 = vsub.s32 %v128, %v130
    %v132 = vrot.slane %v125, %v131
    %v133 = vcombine.high %v132, %v132
    %v135 = vunpack.c.l.s4 1966171168
    %v136 = vunpack.c.0.s8 %v135
    %v137 = vlaneseq
    %v138 = vshrl.u32 %v137, 7
    %v139 = vsub.s32 %v136, %v138
    %v140 = vrot.slane %v132, %v139
    %v142 = vunpack.c.l.s4 1966171168
    %v143 = vunpack.c.0.s8 %v142
    %v144 = vlaneseq
    %v145 = vshrl.u32 %v144, 7
    %v146 = vsub.s32 %v143, %v145
    %v147 = vrot.slane %v133, %v146
    %v148 = vcombine.high %v140, %v140
    %v149 = vcombine.high %v147, %v147
    %150 = vrot.lane.b32.xlu0 %v140, 126
    %v151 = vpop.permute.xlu0 %150
    %152 = vrot.lane.b32.xlu0 %v147, 126
    %v153 = vpop.permute.xlu0 %152
    %154 = vrot.lane.b32.xlu0 %v148, 126
    %v155 = vpop.permute.xlu0 %154
    %156 = vrot.lane.b32.xlu0 %v149, 126
    %v157 = vpop.permute.xlu0 %156
    %158 = vrot.lane.b32.xlu0 %v53, 126
    %v159 = vpop.permute.xlu0 %158
    %160 = vrot.lane.b32.xlu0 %v67, 126
    %v161 = vpop.permute.xlu0 %160
    %vm162 = vcmask 1031168
    %v163 = vsel %vm162, %v151, %v153
    %v164 = vsel %vm162, %v153, %v155
    %v165 = vsel %vm162, %v155, %v157
    %v166 = vsel %vm162, %v157, %v159
    %v167 = vsel %vm162, %v159, %v161
    %v168 = vrot.slane %v84, 7
    %v169 = vrot.slane %v87, 7
    %v170 = vrot.slane %v90, 7
    %v171 = vrot.slane %v93, 7
    %v172 = vrot.slane %v96, 7
    %v173 = vrot.slane %v99, 7
    %174 = vrot.lane.b32.xlu0 %v168, 125
    %v175 = vpop.permute.xlu0 %174
    %176 = vrot.lane.b32.xlu0 %v169, 125
    %v177 = vpop.permute.xlu0 %176
    %178 = vrot.lane.b32.xlu0 %v170, 125
    %v179 = vpop.permute.xlu0 %178
    %180 = vrot.lane.b32.xlu0 %v171, 125
    %v181 = vpop.permute.xlu0 %180
    %182 = vrot.lane.b32.xlu0 %v172, 125
    %v183 = vpop.permute.xlu0 %182
    %184 = vrot.lane.b32.xlu0 %v173, 125
    %v185 = vpop.permute.xlu0 %184
    %vm186 = vcmask 1022976
    %v187 = vsel %vm186, %v175, %v177
    %v188 = vsel %vm186, %v177, %v179
    %v189 = vsel %vm186, %v179, %v181
    %v190 = vsel %vm186, %v181, %v183
    %v191 = vsel %vm186, %v183, %v185
    %v198 = vcombine.low %v37, %v37
    %v199 = vcombine.low %v44, %v44
    %v201 = vunpack.c.l.s4 1966171168
    %v202 = vunpack.c.0.s8 %v201
    %v203 = vlaneseq
    %v204 = vshrl.u32 %v203, 7
    %v205 = vsub.s32 %v202, %v204
    %v206 = vrot.slane %v198, %v205
    %v208 = vunpack.c.l.s4 1966171168
    %v209 = vunpack.c.0.s8 %v208
    %v210 = vlaneseq
    %v211 = vshrl.u32 %v210, 7
    %v212 = vsub.s32 %v209, %v211
    %v213 = vrot.slane %v199, %v212
    %v214 = vcombine.high %v206, %v206
    %215 = vrot.lane.b32.xlu0 %v206, 124
    %v216 = vpop.permute.xlu0 %215
    %217 = vrot.lane.b32.xlu0 %v53, 124
    %v218 = vpop.permute.xlu0 %217
    %219 = vrot.lane.b32.xlu0 %v214, 124
    %v220 = vpop.permute.xlu0 %219
    %221 = vrot.lane.b32.xlu0 %v75, 124
    %v222 = vpop.permute.xlu0 %221
    %223 = vrot.lane.b32.xlu0 %v213, 124
    %v224 = vpop.permute.xlu0 %223
    %225 = vrot.lane.b32.xlu0 %v60, 124
    %v226 = vpop.permute.xlu0 %225
    %vm227 = vcmask 1014784
    %v228 = vsel %vm227, %v216, %v218
    %v229 = vsel %vm227, %v218, %v220
    %v230 = vsel %vm227, %v220, %v222
    %v231 = vsel %vm227, %v222, %v224
    %v232 = vsel %vm227, %v224, %v226
    %v233 = vrot.slane %v84, 6
    %v234 = vrot.slane %v87, 6
    %v235 = vrot.slane %v90, 6
    %v236 = vrot.slane %v93, 6
    %v237 = vrot.slane %v96, 6
    %v238 = vrot.slane %v99, 6
    %239 = vrot.lane.b32.xlu0 %v233, 100
    %v240 = vpop.permute.xlu0 %239
    %241 = vrot.lane.b32.xlu0 %v234, 100
    %v242 = vpop.permute.xlu0 %241
    %243 = vrot.lane.b32.xlu0 %v235, 100
    %v244 = vpop.permute.xlu0 %243
    %245 = vrot.lane.b32.xlu0 %v236, 100
    %v246 = vpop.permute.xlu0 %245
    %247 = vrot.lane.b32.xlu0 %v237, 100
    %v248 = vpop.permute.xlu0 %247
    %249 = vrot.lane.b32.xlu0 %v238, 100
    %v250 = vpop.permute.xlu0 %249
    %vm251 = vcmask 818176
    %v252 = vsel %vm251, %v240, %v242
    %v253 = vsel %vm251, %v242, %v244
    %v254 = vsel %vm251, %v244, %v246
    %v255 = vsel %vm251, %v246, %v248
    %v256 = vsel %vm251, %v248, %v250
    %v263 = vcombine.low %v132, %v132
    %v265 = vunpack.c.l.s4 1966171168
    %v266 = vunpack.c.0.s8 %v265
    %v267 = vlaneseq
    %v268 = vshrl.u32 %v267, 7
    %v269 = vsub.s32 %v266, %v268
    %v270 = vrot.slane %v263, %v269
    %v271 = vcombine.high %v270, %v270
    %272 = vrot.lane.b32.xlu0 %v270, 99
    %v273 = vpop.permute.xlu0 %272
    %274 = vrot.lane.b32.xlu0 %v140, 99
    %v275 = vpop.permute.xlu0 %274
    %276 = vrot.lane.b32.xlu0 %v271, 99
    %v277 = vpop.permute.xlu0 %276
    %278 = vrot.lane.b32.xlu0 %v148, 99
    %v279 = vpop.permute.xlu0 %278
    %280 = vrot.lane.b32.xlu0 %v206, 99
    %v281 = vpop.permute.xlu0 %280
    %282 = vrot.lane.b32.xlu0 %v53, 99
    %v283 = vpop.permute.xlu0 %282
    %vm284 = vcmask 809984
    %v285 = vsel %vm284, %v273, %v275
    %v286 = vsel %vm284, %v275, %v277
    %v287 = vsel %vm284, %v277, %v279
    %v288 = vsel %vm284, %v279, %v281
    %v289 = vsel %vm284, %v281, %v283
    %v290 = vrot.slane %v84, 5
    %v291 = vrot.slane %v87, 5
    %v292 = vrot.slane %v90, 5
    %v293 = vrot.slane %v93, 5
    %v294 = vrot.slane %v96, 5
    %v295 = vrot.slane %v99, 5
    %296 = vrot.lane.b32.xlu0 %v290, 98
    %v297 = vpop.permute.xlu0 %296
    %298 = vrot.lane.b32.xlu0 %v291, 98
    %v299 = vpop.permute.xlu0 %298
    %300 = vrot.lane.b32.xlu0 %v292, 98
    %v301 = vpop.permute.xlu0 %300
    %302 = vrot.lane.b32.xlu0 %v293, 98
    %v303 = vpop.permute.xlu0 %302
    %304 = vrot.lane.b32.xlu0 %v294, 98
    %v305 = vpop.permute.xlu0 %304
    %306 = vrot.lane.b32.xlu0 %v295, 98
    %v307 = vpop.permute.xlu0 %306
    %vm308 = vcmask 801792
    %v309 = vsel %vm308, %v297, %v299
    %v310 = vsel %vm308, %v299, %v301
    %v311 = vsel %vm308, %v301, %v303
    %v312 = vsel %vm308, %v303, %v305
    %v313 = vsel %vm308, %v305, %v307
    %v320 = vcombine.low %v53, %v53
    %v321 = vcombine.low %v60, %v60
    %v322 = vcombine.low %v67, %v67
    %v323 = vcombine.low %v74, %v74
    %324 = vrot.lane.b32.xlu0 %v320, 97
    %v325 = vpop.permute.xlu0 %324
    %326 = vrot.lane.b32.xlu0 %v322, 97
    %v327 = vpop.permute.xlu0 %326
    %328 = vrot.lane.b32.xlu0 %v53, 97
    %v329 = vpop.permute.xlu0 %328
    %330 = vrot.lane.b32.xlu0 %v67, 97
    %v331 = vpop.permute.xlu0 %330
    %332 = vrot.lane.b32.xlu0 %v321, 97
    %v333 = vpop.permute.xlu0 %332
    %334 = vrot.lane.b32.xlu0 %v323, 97
    %v335 = vpop.permute.xlu0 %334
    %vm336 = vcmask 793600
    %v337 = vsel %vm336, %v325, %v327
    %v338 = vsel %vm336, %v327, %v329
    %v339 = vsel %vm336, %v329, %v331
    %v340 = vsel %vm336, %v331, %v333
    %v341 = vsel %vm336, %v333, %v335
    %v342 = vrot.slane %v84, 4
    %v343 = vrot.slane %v87, 4
    %v344 = vrot.slane %v90, 4
    %v345 = vrot.slane %v93, 4
    %v346 = vrot.slane %v96, 4
    %v347 = vrot.slane %v99, 4
    %348 = vrot.lane.b32.xlu0 %v342, 96
    %v349 = vpop.permute.xlu0 %348
    %350 = vrot.lane.b32.xlu0 %v343, 96
    %v351 = vpop.permute.xlu0 %350
    %352 = vrot.lane.b32.xlu0 %v344, 96
    %v353 = vpop.permute.xlu0 %352
    %354 = vrot.lane.b32.xlu0 %v345, 96
    %v355 = vpop.permute.xlu0 %354
    %356 = vrot.lane.b32.xlu0 %v346, 96
    %v357 = vpop.permute.xlu0 %356
    %358 = vrot.lane.b32.xlu0 %v347, 96
    %v359 = vpop.permute.xlu0 %358
    %vm360 = vcmask 785408
    %v361 = vsel %vm360, %v349, %v351
    %v362 = vsel %vm360, %v351, %v353
    %v363 = vsel %vm360, %v353, %v355
    %v364 = vsel %vm360, %v355, %v357
    %v365 = vsel %vm360, %v357, %v359
    %v372 = vcombine.low %v140, %v140
    %v373 = vcombine.low %v147, %v147
    %374 = vrot.lane.b32.xlu0 %v372, 72
    %v375 = vpop.permute.xlu0 %374
    %376 = vrot.lane.b32.xlu0 %v373, 72
    %v377 = vpop.permute.xlu0 %376
    %378 = vrot.lane.b32.xlu0 %v140, 72
    %v379 = vpop.permute.xlu0 %378
    %380 = vrot.lane.b32.xlu0 %v147, 72
    %v381 = vpop.permute.xlu0 %380
    %382 = vrot.lane.b32.xlu0 %v320, 72
    %v383 = vpop.permute.xlu0 %382
    %384 = vrot.lane.b32.xlu0 %v322, 72
    %v385 = vpop.permute.xlu0 %384
    %vm386 = vcmask 588800
    %v387 = vsel %vm386, %v375, %v377
    %v388 = vsel %vm386, %v377, %v379
    %v389 = vsel %vm386, %v379, %v381
    %v390 = vsel %vm386, %v381, %v383
    %v391 = vsel %vm386, %v383, %v385
    %v392 = vrot.slane %v84, 3
    %v393 = vrot.slane %v87, 3
    %v394 = vrot.slane %v90, 3
    %v395 = vrot.slane %v93, 3
    %v396 = vrot.slane %v96, 3
    %v397 = vrot.slane %v99, 3
    %398 = vrot.lane.b32.xlu0 %v392, 71
    %v399 = vpop.permute.xlu0 %398
    %400 = vrot.lane.b32.xlu0 %v393, 71
    %v401 = vpop.permute.xlu0 %400
    %402 = vrot.lane.b32.xlu0 %v394, 71
    %v403 = vpop.permute.xlu0 %402
    %404 = vrot.lane.b32.xlu0 %v395, 71
    %v405 = vpop.permute.xlu0 %404
    %406 = vrot.lane.b32.xlu0 %v396, 71
    %v407 = vpop.permute.xlu0 %406
    %408 = vrot.lane.b32.xlu0 %v397, 71
    %v409 = vpop.permute.xlu0 %408
    %vm410 = vcmask 580608
    %v411 = vsel %vm410, %v399, %v401
    %v412 = vsel %vm410, %v401, %v403
    %v413 = vsel %vm410, %v403, %v405
    %v414 = vsel %vm410, %v405, %v407
    %v415 = vsel %vm410, %v407, %v409
    %v422 = vcombine.low %v206, %v206
    %v423 = vcombine.low %v213, %v213
    %424 = vrot.lane.b32.xlu0 %v422, 70
    %v425 = vpop.permute.xlu0 %424
    %426 = vrot.lane.b32.xlu0 %v320, 70
    %v427 = vpop.permute.xlu0 %426
    %428 = vrot.lane.b32.xlu0 %v206, 70
    %v429 = vpop.permute.xlu0 %428
    %430 = vrot.lane.b32.xlu0 %v53, 70
    %v431 = vpop.permute.xlu0 %430
    %432 = vrot.lane.b32.xlu0 %v423, 70
    %v433 = vpop.permute.xlu0 %432
    %434 = vrot.lane.b32.xlu0 %v321, 70
    %v435 = vpop.permute.xlu0 %434
    %vm436 = vcmask 572416
    %v437 = vsel %vm436, %v425, %v427
    %v438 = vsel %vm436, %v427, %v429
    %v439 = vsel %vm436, %v429, %v431
    %v440 = vsel %vm436, %v431, %v433
    %v441 = vsel %vm436, %v433, %v435
    %v442 = vrot.slane %v84, 2
    %v443 = vrot.slane %v87, 2
    %v444 = vrot.slane %v90, 2
    %v445 = vrot.slane %v93, 2
    %v446 = vrot.slane %v96, 2
    %v447 = vrot.slane %v99, 2
    %448 = vrot.lane.b32.xlu0 %v442, 69
    %v449 = vpop.permute.xlu0 %448
    %450 = vrot.lane.b32.xlu0 %v443, 69
    %v451 = vpop.permute.xlu0 %450
    %452 = vrot.lane.b32.xlu0 %v444, 69
    %v453 = vpop.permute.xlu0 %452
    %454 = vrot.lane.b32.xlu0 %v445, 69
    %v455 = vpop.permute.xlu0 %454
    %456 = vrot.lane.b32.xlu0 %v446, 69
    %v457 = vpop.permute.xlu0 %456
    %458 = vrot.lane.b32.xlu0 %v447, 69
    %v459 = vpop.permute.xlu0 %458
    %vm460 = vcmask 564224
    %v461 = vsel %vm460, %v449, %v451
    %v462 = vsel %vm460, %v451, %v453
    %v463 = vsel %vm460, %v453, %v455
    %v464 = vsel %vm460, %v455, %v457
    %v465 = vsel %vm460, %v457, %v459
    %v472 = vcombine.low %v270, %v270
    %473 = vrot.lane.b32.xlu0 %v472, 68
    %v474 = vpop.permute.xlu0 %473
    %475 = vrot.lane.b32.xlu0 %v372, 68
    %v476 = vpop.permute.xlu0 %475
    %477 = vrot.lane.b32.xlu0 %v270, 68
    %v478 = vpop.permute.xlu0 %477
    %479 = vrot.lane.b32.xlu0 %v140, 68
    %v480 = vpop.permute.xlu0 %479
    %481 = vrot.lane.b32.xlu0 %v422, 68
    %v482 = vpop.permute.xlu0 %481
    %483 = vrot.lane.b32.xlu0 %v320, 68
    %v484 = vpop.permute.xlu0 %483
    %vm485 = vcmask 556032
    %v486 = vsel %vm485, %v474, %v476
    %v487 = vsel %vm485, %v476, %v478
    %v488 = vsel %vm485, %v478, %v480
    %v489 = vsel %vm485, %v480, %v482
    %v490 = vsel %vm485, %v482, %v484
    %v491 = vrot.slane %v84, 1
    %v492 = vrot.slane %v87, 1
    %v493 = vrot.slane %v90, 1
    %v494 = vrot.slane %v93, 1
    %v495 = vrot.slane %v96, 1
    %v496 = vrot.slane %v99, 1
    %497 = vrot.lane.b32.xlu0 %v491, 44
    %v498 = vpop.permute.xlu0 %497
    %499 = vrot.lane.b32.xlu0 %v492, 44
    %v500 = vpop.permute.xlu0 %499
    %501 = vrot.lane.b32.xlu0 %v493, 44
    %v502 = vpop.permute.xlu0 %501
    %503 = vrot.lane.b32.xlu0 %v494, 44
    %v504 = vpop.permute.xlu0 %503
    %505 = vrot.lane.b32.xlu0 %v495, 44
    %v506 = vpop.permute.xlu0 %505
    %507 = vrot.lane.b32.xlu0 %v496, 44
    %v508 = vpop.permute.xlu0 %507
    %vm509 = vcmask 359424
    %v510 = vsel %vm509, %v498, %v500
    %v511 = vsel %vm509, %v500, %v502
    %v512 = vsel %vm509, %v502, %v504
    %v513 = vsel %vm509, %v504, %v506
    %v514 = vsel %vm509, %v506, %v508
    %vm521 = vcmask 1040384
    %vm522 = vsmask.f32 256
    %vm523 = vmand %vm521, %vm522
    %v524 = vsel %vm523, %v53, %v114
    %v525 = vsel %vm523, %v67, %v115
    %v526 = vsel %vm523, %v75, %v116
    %v527 = vsel %vm523, %v76, %v117
    %v528 = vsel %vm523, %v60, %v118
    %v529 = vsel %vm523, %v74, %v112
    %vm530 = vcmask 1040384
    %v533 = vsel %vm530, %v524, %v163
    %v537 = vsel %vm530, %v525, %v164
    %v541 = vsel %vm530, %v526, %v165
    %v545 = vsel %vm530, %v527, %v166
    %v549 = vsel %vm530, %v528, %v167
    %v553 = vsel %vm530, %v529, %v161
    %vm555 = vcmask 1041408
    %vm556 = vsmask.f32 1280
    %vm557 = vmand %vm555, %vm556
    %v558 = vsel %vm557, %v533, %v187
    %v559 = vsel %vm557, %v537, %v188
    %v560 = vsel %vm557, %v541, %v189
    %v561 = vsel %vm557, %v545, %v190
    %v562 = vsel %vm557, %v549, %v191
    %v563 = vsel %vm557, %v553, %v185
    %vm564 = vcmask 1041408
    %v567 = vsel %vm564, %v558, %v228
    %v571 = vsel %vm564, %v559, %v229
    %v575 = vsel %vm564, %v560, %v230
    %v579 = vsel %vm564, %v561, %v231
    %v583 = vsel %vm564, %v562, %v232
    %v587 = vsel %vm564, %v563, %v226
    %vm589 = vcmask 1042432
    %vm590 = vsmask.f32 2304
    %vm591 = vmand %vm589, %vm590
    %v592 = vsel %vm591, %v567, %v252
    %v593 = vsel %vm591, %v571, %v253
    %v594 = vsel %vm591, %v575, %v254
    %v595 = vsel %vm591, %v579, %v255
    %v596 = vsel %vm591, %v583, %v256
    %v597 = vsel %vm591, %v587, %v250
    %vm598 = vcmask 1042432
    %v601 = vsel %vm598, %v592, %v285
    %v605 = vsel %vm598, %v593, %v286
    %v609 = vsel %vm598, %v594, %v287
    %v613 = vsel %vm598, %v595, %v288
    %v617 = vsel %vm598, %v596, %v289
    %v621 = vsel %vm598, %v597, %v283
    %vm623 = vcmask 1043456
    %vm624 = vsmask.f32 3328
    %vm625 = vmand %vm623, %vm624
    %v626 = vsel %vm625, %v601, %v309
    %v627 = vsel %vm625, %v605, %v310
    %v628 = vsel %vm625, %v609, %v311
    %v629 = vsel %vm625, %v613, %v312
    %v630 = vsel %vm625, %v617, %v313
    %v631 = vsel %vm625, %v621, %v307
    %vm632 = vcmask 1043456
    %v635 = vsel %vm632, %v626, %v337
    %v639 = vsel %vm632, %v627, %v338
    %v643 = vsel %vm632, %v628, %v339
    %v647 = vsel %vm632, %v629, %v340
    %v651 = vsel %vm632, %v630, %v341
    %v655 = vsel %vm632, %v631, %v335
    %vm657 = vcmask 1044480
    %vm658 = vsmask.f32 4352
    %vm659 = vmand %vm657, %vm658
    %v660 = vsel %vm659, %v635, %v361
    %v661 = vsel %vm659, %v639, %v362
    %v662 = vsel %vm659, %v643, %v363
    %v663 = vsel %vm659, %v647, %v364
    %v664 = vsel %vm659, %v651, %v365
    %v665 = vsel %vm659, %v655, %v359
    %vm666 = vcmask 1044480
    %v669 = vsel %vm666, %v660, %v387
    %v673 = vsel %vm666, %v661, %v388
    %v677 = vsel %vm666, %v662, %v389
    %v681 = vsel %vm666, %v663, %v390
    %v685 = vsel %vm666, %v664, %v391
    %v689 = vsel %vm666, %v665, %v385
    %vm691 = vcmask 1045504
    %vm692 = vsmask.f32 5376
    %vm693 = vmand %vm691, %vm692
    %v694 = vsel %vm693, %v669, %v411
    %v695 = vsel %vm693, %v673, %v412
    %v696 = vsel %vm693, %v677, %v413
    %v697 = vsel %vm693, %v681, %v414
    %v698 = vsel %vm693, %v685, %v415
    %v699 = vsel %vm693, %v689, %v409
    %vm700 = vcmask 1045504
    %v703 = vsel %vm700, %v694, %v437
    %v707 = vsel %vm700, %v695, %v438
    %v711 = vsel %vm700, %v696, %v439
    %v715 = vsel %vm700, %v697, %v440
    %v719 = vsel %vm700, %v698, %v441
    %v723 = vsel %vm700, %v699, %v435
    %vm725 = vcmask 1046528
    %vm726 = vsmask.f32 6400
    %vm727 = vmand %vm725, %vm726
    %v728 = vsel %vm727, %v703, %v461
    %v729 = vsel %vm727, %v707, %v462
    %v730 = vsel %vm727, %v711, %v463
    %v731 = vsel %vm727, %v715, %v464
    %v732 = vsel %vm727, %v719, %v465
    %v733 = vsel %vm727, %v723, %v459
    %vm734 = vcmask 1046528
    %v737 = vsel %vm734, %v728, %v486
    %v741 = vsel %vm734, %v729, %v487
    %v745 = vsel %vm734, %v730, %v488
    %v749 = vsel %vm734, %v731, %v489
    %v753 = vsel %vm734, %v732, %v490
    %v757 = vsel %vm734, %v733, %v484
    %vm759 = vcmask 1047552
    %vm760 = vsmask.f32 7424
    %vm761 = vmand %vm759, %vm760
    %v762 = vsel %vm761, %v737, %v510
    %v763 = vsel %vm761, %v741, %v511
    %v764 = vsel %vm761, %v745, %v512
    %v765 = vsel %vm761, %v749, %v513
    %v766 = vsel %vm761, %v753, %v514
    %v767 = vsel %vm761, %v757, %v508
    %v768 = vcombine.high %v213, %v213
    %769 = vrot.lane.b32.xlu0 %v206, 101
    %v770 = vpop.permute.xlu0 %769
    %771 = vrot.lane.b32.xlu0 %v53, 101
    %v772 = vpop.permute.xlu0 %771
    %773 = vrot.lane.b32.xlu0 %v214, 101
    %v774 = vpop.permute.xlu0 %773
    %775 = vrot.lane.b32.xlu0 %v75, 101
    %v776 = vpop.permute.xlu0 %775
    %777 = vrot.lane.b32.xlu0 %v213, 101
    %v778 = vpop.permute.xlu0 %777
    %779 = vrot.lane.b32.xlu0 %v60, 101
    %v780 = vpop.permute.xlu0 %779
    %781 = vrot.lane.b32.xlu0 %v768, 101
    %v782 = vpop.permute.xlu0 %781
    %vm783 = vcmask 826368
    %v784 = vsel %vm783, %v770, %v772
    %v785 = vsel %vm783, %v772, %v774
    %v786 = vsel %vm783, %v774, %v776
    %v787 = vsel %vm783, %v776, %v778
    %v788 = vsel %vm783, %v778, %v780
    %v789 = vsel %vm783, %v780, %v782
    %v790 = vcombine.high %v60, %v60
    %v792 = vshll.u32 %v790, 16
    %v794 = vrot.slane %v792, 6
    %795 = vrot.lane.b32.xlu0 %v794, 100
    %v796 = vpop.permute.xlu0 %795
    %v797 = vsel %vm251, %v250, %v796
    %799 = vrot.lane.b32.xlu0 %v214, 99
    %v800 = vpop.permute.xlu0 %799
    %v801 = vsel %vm284, %v283, %v800
    %v802 = vrot.slane %v792, 5
    %803 = vrot.lane.b32.xlu0 %v802, 98
    %v804 = vpop.permute.xlu0 %803
    %v805 = vsel %vm308, %v307, %v804
    %807 = vrot.lane.b32.xlu0 %v60, 97
    %v808 = vpop.permute.xlu0 %807
    %v809 = vsel %vm336, %v335, %v808
    %v811 = vsel %vm564, %v558, %v784
    %v814 = vsel %vm564, %v559, %v785
    %v817 = vsel %vm564, %v560, %v786
    %v820 = vsel %vm564, %v561, %v787
    %v823 = vsel %vm564, %v562, %v788
    %v826 = vsel %vm564, %v563, %v789
    %v828 = vsel %vm591, %v811, %v252
    %v829 = vsel %vm591, %v814, %v253
    %v830 = vsel %vm591, %v817, %v254
    %v831 = vsel %vm591, %v820, %v255
    %v832 = vsel %vm591, %v823, %v256
    %v833 = vsel %vm591, %v826, %v797
    %v835 = vsel %vm598, %v828, %v285
    %v838 = vsel %vm598, %v829, %v286
    %v841 = vsel %vm598, %v830, %v287
    %v844 = vsel %vm598, %v831, %v288
    %v847 = vsel %vm598, %v832, %v289
    %v851 = vsel %vm598, %v833, %v801
    %v853 = vsel %vm625, %v835, %v309
    %v854 = vsel %vm625, %v838, %v310
    %v855 = vsel %vm625, %v841, %v311
    %v856 = vsel %vm625, %v844, %v312
    %v857 = vsel %vm625, %v847, %v313
    %v858 = vsel %vm625, %v851, %v805
    %v860 = vsel %vm632, %v853, %v337
    %v862 = vsel %vm632, %v854, %v338
    %v864 = vsel %vm632, %v855, %v339
    %v866 = vsel %vm632, %v856, %v340
    %v868 = vsel %vm632, %v857, %v341
    %v871 = vsel %vm632, %v858, %v809
    %878 = vrot.lane.b32.xlu0 %v860, 43
    %v879 = vpop.permute.xlu0 %878
    %880 = vrot.lane.b32.xlu0 %v862, 43
    %v881 = vpop.permute.xlu0 %880
    %882 = vrot.lane.b32.xlu0 %v864, 43
    %v883 = vpop.permute.xlu0 %882
    %884 = vrot.lane.b32.xlu0 %v866, 43
    %v885 = vpop.permute.xlu0 %884
    %886 = vrot.lane.b32.xlu0 %v868, 43
    %v887 = vpop.permute.xlu0 %886
    %888 = vrot.lane.b32.xlu0 %v871, 43
    %v889 = vpop.permute.xlu0 %888
    %vm890 = vcmask 351232
    %v891 = vsel %vm890, %v879, %v881
    %v892 = vsel %vm890, %v881, %v883
    %v893 = vsel %vm890, %v883, %v885
    %v894 = vsel %vm890, %v885, %v887
    %v895 = vsel %vm890, %v887, %v889
    %897 = vset.pattern.permute.xlu0 0
    %898 = vperm.xlu0 %897, %v23
    %v899 = vpop.permute.xlu0 %898
    %vm901 = vcmask 203776
    %v903 = vsel %vm901, %v22, 0
    %v905 = vsel %vm632, 4294967295, 65535
    %v906 = vsel %vm666, %v905, 0
    %v908 = vand.u32 %v891, %v906
    %v911 = vand.u32 %v892, %v906
    %v914 = vand.u32 %v893, %v906
    %v917 = vand.u32 %v894, %v906
    %v920 = vand.u32 %v895, %v906
    %v923 = vand.u32 %v889, %v906
    %925 = vmatprep.subr.bf16.mxu0 %v763
    %926 = vmatpush1.bf16.msra.mxu0 %v762
    %927 = vmatprep.subr.bf16.mxu0 %v911
    %928 = vmatpush1.bf16.msra.mxu0 %v908
    %929 = vmatprep.subr.bf16.mxu0 0
    %930 = vmatpush1.bf16.msra.mxu0 0
    %931 = vmatprep.subr.bf16.mxu0 0
    %932 = vmatpush1.bf16.msra.mxu0 0
    %933 = vmatprep.subr.bf16.mxu0 0
    %934 = vmatpush1.bf16.msra.mxu0 0
    %935 = vmatprep.subr.bf16.mxu0 0
    %936 = vmatpush1.bf16.msra.mxu0 0
    %937 = vmatprep.subr.bf16.mxu0 0
    %938 = vmatpush1.bf16.msra.mxu0 0
    %939 = vmatprep.subr.bf16.mxu0 0
    %940 = vmatpush1.bf16.msra.mxu0 0
    %941 = vmatprep.subr.bf16.mxu0 0
    %942 = vmatpush1.bf16.msra.mxu0 0
    %943 = vmatprep.subr.bf16.mxu0 0
    %944 = vmatpush1.bf16.msra.mxu0 0
    %945 = vmatprep.subr.bf16.mxu0 0
    %946 = vmatpush1.bf16.msra.mxu0 0
    %947 = vmatprep.subr.bf16.mxu0 0
    %948 = vmatpush1.bf16.msra.mxu0 0
    %949 = vmatprep.subr.bf16.mxu0 0
    %950 = vmatpush1.bf16.msra.mxu0 0
    %951 = vmatprep.subr.bf16.mxu0 0
    %952 = vmatpush1.bf16.msra.mxu0 0
    %953 = vmatprep.subr.bf16.mxu0 0
    %954 = vmatpush1.bf16.msra.mxu0 0
    %955 = vmatprep.subr.bf16.mxu0 0
    %956 = vmatpush1.bf16.msra.mxu0 0
    %957 = vmatprep.mubr.bf16.mxu0 0
    %958 = vmatmul.mubr.bf16.gmra.mrb[0].mxu0 %v903
    %v959 = vpop.f32.mrb[0].mxu0
    %v960 = vadd.f32 %v899, %v959
    %v961 = vpop.f32.mrb[0].mxu0
    %v962 = vadd.f32 %v899, %v961
    %v963 = vpop.f32.mrb[0].mxu0
    %v964 = vpop.f32.mrb[0].mxu0
    %965 = vdwg.mxu0
    %966 = vmatprep.subr.bf16.mxu0 %v765
    %967 = vmatpush1.bf16.msra.mxu0 %v764
    %968 = vmatprep.subr.bf16.mxu0 %v917
    %969 = vmatpush1.bf16.msra.mxu0 %v914
    %970 = vmatprep.subr.bf16.mxu0 0
    %971 = vmatpush1.bf16.msra.mxu0 0
    %972 = vmatprep.subr.bf16.mxu0 0
    %973 = vmatpush1.bf16.msra.mxu0 0
    %974 = vmatprep.subr.bf16.mxu0 0
    %975 = vmatpush1.bf16.msra.mxu0 0
    %976 = vmatprep.subr.bf16.mxu0 0
    %977 = vmatpush1.bf16.msra.mxu0 0
    %978 = vmatprep.subr.bf16.mxu0 0
    %979 = vmatpush1.bf16.msra.mxu0 0
    %980 = vmatprep.subr.bf16.mxu0 0
    %981 = vmatpush1.bf16.msra.mxu0 0
    %982 = vmatprep.subr.bf16.mxu0 0
    %983 = vmatpush1.bf16.msra.mxu0 0
    %984 = vmatprep.subr.bf16.mxu0 0
    %985 = vmatpush1.bf16.msra.mxu0 0
    %986 = vmatprep.subr.bf16.mxu0 0
    %987 = vmatpush1.bf16.msra.mxu0 0
    %988 = vmatprep.subr.bf16.mxu0 0
    %989 = vmatpush1.bf16.msra.mxu0 0
    %990 = vmatprep.subr.bf16.mxu0 0
    %991 = vmatpush1.bf16.msra.mxu0 0
    %992 = vmatprep.subr.bf16.mxu0 0
    %993 = vmatpush1.bf16.msra.mxu0 0
    %994 = vmatprep.subr.bf16.mxu0 0
    %995 = vmatpush1.bf16.msra.mxu0 0
    %996 = vmatprep.subr.bf16.mxu0 0
    %997 = vmatpush1.bf16.msra.mxu0 0
    %998 = vmatprep.mubr.bf16.mxu0 0
    %999 = vmatmul.mubr.bf16.gmra.mrb[0].mxu0 %v903
    %v1000 = vpop.f32.mrb[0].mxu0
    %v1001 = vadd.f32 %v899, %v1000
    %v1002 = vpop.f32.mrb[0].mxu0
    %v1003 = vadd.f32 %v899, %v1002
    %v1004 = vpop.f32.mrb[0].mxu0
    %v1005 = vpop.f32.mrb[0].mxu0
    %1006 = vdwg.mxu0
    %1007 = vmatprep.subr.bf16.mxu0 %v767
    %1008 = vmatpush1.bf16.msra.mxu0 %v766
    %1009 = vmatprep.subr.bf16.mxu0 %v923
    %1010 = vmatpush1.bf16.msra.mxu0 %v920
    %1011 = vmatprep.subr.bf16.mxu0 0
    %1012 = vmatpush1.bf16.msra.mxu0 0
    %1013 = vmatprep.subr.bf16.mxu0 0
    %1014 = vmatpush1.bf16.msra.mxu0 0
    %1015 = vmatprep.subr.bf16.mxu0 0
    %1016 = vmatpush1.bf16.msra.mxu0 0
    %1017 = vmatprep.subr.bf16.mxu0 0
    %1018 = vmatpush1.bf16.msra.mxu0 0
    %1019 = vmatprep.subr.bf16.mxu0 0
    %1020 = vmatpush1.bf16.msra.mxu0 0
    %1021 = vmatprep.subr.bf16.mxu0 0
    %1022 = vmatpush1.bf16.msra.mxu0 0
    %1023 = vmatprep.subr.bf16.mxu0 0
    %1024 = vmatpush1.bf16.msra.mxu0 0
    %1025 = vmatprep.subr.bf16.mxu0 0
    %1026 = vmatpush1.bf16.msra.mxu0 0
    %1027 = vmatprep.subr.bf16.mxu0 0
    %1028 = vmatpush1.bf16.msra.mxu0 0
    %1029 = vmatprep.subr.bf16.mxu0 0
    %1030 = vmatpush1.bf16.msra.mxu0 0
    %1031 = vmatprep.subr.bf16.mxu0 0
    %1032 = vmatpush1.bf16.msra.mxu0 0
    %1033 = vmatprep.subr.bf16.mxu0 0
    %1034 = vmatpush1.bf16.msra.mxu0 0
    %1035 = vmatprep.subr.bf16.mxu0 0
    %1036 = vmatpush1.bf16.msra.mxu0 0
    %1037 = vmatprep.subr.bf16.mxu0 0
    %1038 = vmatpush1.bf16.msra.mxu0 0
    %1039 = vmatprep.mubr.bf16.mxu0 0
    %1040 = vmatmul.mubr.bf16.gmra.mrb[0].mxu0 %v903
    %v1041 = vpop.f32.mrb[0].mxu0
    %v1042 = vadd.f32 %v899, %v1041
    %v1043 = vpop.f32.mrb[0].mxu0
    %v1044 = vadd.f32 %v899, %v1043
    %v1045 = vpop.f32.mrb[0].mxu0
    %v1046 = vpop.f32.mrb[0].mxu0
    %1047 = vdwg.mxu0
    %v1048 = vmax.f32 %v960, 0.0
    %v1049 = vmax.f32 %v962, 0.0
    %v1050 = vmax.f32 %v1001, 0.0
    %v1051 = vmax.f32 %v1003, 0.0
    %v1052 = vmax.f32 %v1042, 0.0
    %v1053 = vmax.f32 %v1044, 0.0
    %v1054 = vpack.c.bf16 %v1048, %v1048
    %v1055 = vpack.c.bf16 %v1049, %v1049
    %v1056 = vpack.c.bf16 %v1050, %v1050
    %v1057 = vpack.c.bf16 %v1051, %v1051
    %v1058 = vpack.c.bf16 %v1052, %v1052
    %v1059 = vpack.c.bf16 %v1053, %v1053
    %v1065 = vrot.slane %v1054, 5
    %v1066 = vrot.slane %v1055, 5
    %v1067 = vrot.slane %v1056, 5
    %v1068 = vrot.slane %v1057, 5
    %v1069 = vrot.slane %v1058, 5
    %1070 = vrot.lane.b32.xlu0 %v1065, 127
    %v1071 = vpop.permute.xlu0 %1070
    %1072 = vrot.lane.b32.xlu0 %v1066, 127
    %v1073 = vpop.permute.xlu0 %1072
    %1074 = vrot.lane.b32.xlu0 %v1067, 127
    %v1075 = vpop.permute.xlu0 %1074
    %1076 = vrot.lane.b32.xlu0 %v1068, 127
    %v1077 = vpop.permute.xlu0 %1076
    %1078 = vrot.lane.b32.xlu0 %v1069, 127
    %v1079 = vpop.permute.xlu0 %1078
    %v1080 = vsel %vm113, %v1071, %v1073
    %v1081 = vsel %vm113, %v1073, %v1075
    %v1082 = vsel %vm113, %v1075, %v1077
    %v1083 = vsel %vm113, %v1077, %v1079
    %v1084 = vrot.slane %v1054, 2
    %v1085 = vrot.slane %v1055, 2
    %v1086 = vrot.slane %v1056, 2
    %v1087 = vrot.slane %v1057, 2
    %v1088 = vrot.slane %v1058, 2
    %1089 = vrot.lane.b32.xlu0 %v1084, 126
    %v1090 = vpop.permute.xlu0 %1089
    %1091 = vrot.lane.b32.xlu0 %v1085, 126
    %v1092 = vpop.permute.xlu0 %1091
    %1093 = vrot.lane.b32.xlu0 %v1086, 126
    %v1094 = vpop.permute.xlu0 %1093
    %1095 = vrot.lane.b32.xlu0 %v1087, 126
    %v1096 = vpop.permute.xlu0 %1095
    %1097 = vrot.lane.b32.xlu0 %v1088, 126
    %v1098 = vpop.permute.xlu0 %1097
    %v1099 = vsel %vm162, %v1090, %v1092
    %v1100 = vsel %vm162, %v1092, %v1094
    %v1101 = vsel %vm162, %v1094, %v1096
    %v1102 = vsel %vm162, %v1096, %v1098
    %v1103 = vrot.slane %v1054, 7
    %v1104 = vrot.slane %v1055, 7
    %v1105 = vrot.slane %v1056, 7
    %v1106 = vrot.slane %v1057, 7
    %v1107 = vrot.slane %v1058, 7
    %1108 = vrot.lane.b32.xlu0 %v1103, 125
    %v1109 = vpop.permute.xlu0 %1108
    %1110 = vrot.lane.b32.xlu0 %v1104, 125
    %v1111 = vpop.permute.xlu0 %1110
    %1112 = vrot.lane.b32.xlu0 %v1105, 125
    %v1113 = vpop.permute.xlu0 %1112
    %1114 = vrot.lane.b32.xlu0 %v1106, 125
    %v1115 = vpop.permute.xlu0 %1114
    %1116 = vrot.lane.b32.xlu0 %v1107, 125
    %v1117 = vpop.permute.xlu0 %1116
    %v1118 = vsel %vm186, %v1109, %v1111
    %v1119 = vsel %vm186, %v1111, %v1113
    %v1120 = vsel %vm186, %v1113, %v1115
    %v1121 = vsel %vm186, %v1115, %v1117
    %v1122 = vrot.slane %v1054, 4
    %v1123 = vrot.slane %v1055, 4
    %v1124 = vrot.slane %v1056, 4
    %v1125 = vrot.slane %v1057, 4
    %v1126 = vrot.slane %v1058, 4
    %1127 = vrot.lane.b32.xlu0 %v1122, 124
    %v1128 = vpop.permute.xlu0 %1127
    %1129 = vrot.lane.b32.xlu0 %v1123, 124
    %v1130 = vpop.permute.xlu0 %1129
    %1131 = vrot.lane.b32.xlu0 %v1124, 124
    %v1132 = vpop.permute.xlu0 %1131
    %1133 = vrot.lane.b32.xlu0 %v1125, 124
    %v1134 = vpop.permute.xlu0 %1133
    %1135 = vrot.lane.b32.xlu0 %v1126, 124
    %v1136 = vpop.permute.xlu0 %1135
    %v1137 = vsel %vm227, %v1128, %v1130
    %v1138 = vsel %vm227, %v1130, %v1132
    %v1139 = vsel %vm227, %v1132, %v1134
    %v1140 = vsel %vm227, %v1134, %v1136
    %v1141 = vrot.slane %v1054, 1
    %v1142 = vrot.slane %v1055, 1
    %v1143 = vrot.slane %v1056, 1
    %v1144 = vrot.slane %v1057, 1
    %v1145 = vrot.slane %v1058, 1
    %1146 = vrot.lane.b32.xlu0 %v1141, 100
    %v1147 = vpop.permute.xlu0 %1146
    %1148 = vrot.lane.b32.xlu0 %v1142, 100
    %v1149 = vpop.permute.xlu0 %1148
    %1150 = vrot.lane.b32.xlu0 %v1143, 100
    %v1151 = vpop.permute.xlu0 %1150
    %1152 = vrot.lane.b32.xlu0 %v1144, 100
    %v1153 = vpop.permute.xlu0 %1152
    %1154 = vrot.lane.b32.xlu0 %v1145, 100
    %v1155 = vpop.permute.xlu0 %1154
    %v1156 = vsel %vm251, %v1147, %v1149
    %v1157 = vsel %vm251, %v1149, %v1151
    %v1158 = vsel %vm251, %v1151, %v1153
    %v1159 = vsel %vm251, %v1153, %v1155
    %v1160 = vrot.slane %v1054, 6
    %v1161 = vrot.slane %v1055, 6
    %v1162 = vrot.slane %v1056, 6
    %v1163 = vrot.slane %v1057, 6
    %v1164 = vrot.slane %v1058, 6
    %1165 = vrot.lane.b32.xlu0 %v1160, 99
    %v1166 = vpop.permute.xlu0 %1165
    %1167 = vrot.lane.b32.xlu0 %v1161, 99
    %v1168 = vpop.permute.xlu0 %1167
    %1169 = vrot.lane.b32.xlu0 %v1162, 99
    %v1170 = vpop.permute.xlu0 %1169
    %1171 = vrot.lane.b32.xlu0 %v1163, 99
    %v1172 = vpop.permute.xlu0 %1171
    %1173 = vrot.lane.b32.xlu0 %v1164, 99
    %v1174 = vpop.permute.xlu0 %1173
    %v1175 = vsel %vm284, %v1166, %v1168
    %v1176 = vsel %vm284, %v1168, %v1170
    %v1177 = vsel %vm284, %v1170, %v1172
    %v1178 = vsel %vm284, %v1172, %v1174
    %v1179 = vrot.slane %v1054, 3
    %v1180 = vrot.slane %v1055, 3
    %v1181 = vrot.slane %v1056, 3
    %v1182 = vrot.slane %v1057, 3
    %v1183 = vrot.slane %v1058, 3
    %1184 = vrot.lane.b32.xlu0 %v1179, 98
    %v1185 = vpop.permute.xlu0 %1184
    %1186 = vrot.lane.b32.xlu0 %v1180, 98
    %v1187 = vpop.permute.xlu0 %1186
    %1188 = vrot.lane.b32.xlu0 %v1181, 98
    %v1189 = vpop.permute.xlu0 %1188
    %1190 = vrot.lane.b32.xlu0 %v1182, 98
    %v1191 = vpop.permute.xlu0 %1190
    %1192 = vrot.lane.b32.xlu0 %v1183, 98
    %v1193 = vpop.permute.xlu0 %1192
    %v1194 = vsel %vm308, %v1185, %v1187
    %v1195 = vsel %vm308, %v1187, %v1189
    %v1196 = vsel %vm308, %v1189, %v1191
    %v1197 = vsel %vm308, %v1191, %v1193
    %1198 = vrot.lane.b32.xlu0 %v1054, 97
    %v1199 = vpop.permute.xlu0 %1198
    %1200 = vrot.lane.b32.xlu0 %v1055, 97
    %v1201 = vpop.permute.xlu0 %1200
    %1202 = vrot.lane.b32.xlu0 %v1056, 97
    %v1203 = vpop.permute.xlu0 %1202
    %1204 = vrot.lane.b32.xlu0 %v1057, 97
    %v1205 = vpop.permute.xlu0 %1204
    %1206 = vrot.lane.b32.xlu0 %v1058, 97
    %v1207 = vpop.permute.xlu0 %1206
    %v1208 = vsel %vm336, %v1199, %v1201
    %v1209 = vsel %vm336, %v1201, %v1203
    %v1210 = vsel %vm336, %v1203, %v1205
    %v1211 = vsel %vm336, %v1205, %v1207
    %1212 = vrot.lane.b32.xlu0 %v1065, 96
    %v1213 = vpop.permute.xlu0 %1212
    %1214 = vrot.lane.b32.xlu0 %v1066, 96
    %v1215 = vpop.permute.xlu0 %1214
    %1216 = vrot.lane.b32.xlu0 %v1067, 96
    %v1217 = vpop.permute.xlu0 %1216
    %1218 = vrot.lane.b32.xlu0 %v1068, 96
    %v1219 = vpop.permute.xlu0 %1218
    %1220 = vrot.lane.b32.xlu0 %v1069, 96
    %v1221 = vpop.permute.xlu0 %1220
    %v1222 = vsel %vm360, %v1213, %v1215
    %v1223 = vsel %vm360, %v1215, %v1217
    %v1224 = vsel %vm360, %v1217, %v1219
    %v1225 = vsel %vm360, %v1219, %v1221
    %1226 = vrot.lane.b32.xlu0 %v1084, 72
    %v1227 = vpop.permute.xlu0 %1226
    %1228 = vrot.lane.b32.xlu0 %v1085, 72
    %v1229 = vpop.permute.xlu0 %1228
    %1230 = vrot.lane.b32.xlu0 %v1086, 72
    %v1231 = vpop.permute.xlu0 %1230
    %1232 = vrot.lane.b32.xlu0 %v1087, 72
    %v1233 = vpop.permute.xlu0 %1232
    %1234 = vrot.lane.b32.xlu0 %v1088, 72
    %v1235 = vpop.permute.xlu0 %1234
    %v1236 = vsel %vm386, %v1227, %v1229
    %v1237 = vsel %vm386, %v1229, %v1231
    %v1238 = vsel %vm386, %v1231, %v1233
    %v1239 = vsel %vm386, %v1233, %v1235
    %1240 = vrot.lane.b32.xlu0 %v1103, 71
    %v1241 = vpop.permute.xlu0 %1240
    %1242 = vrot.lane.b32.xlu0 %v1104, 71
    %v1243 = vpop.permute.xlu0 %1242
    %1244 = vrot.lane.b32.xlu0 %v1105, 71
    %v1245 = vpop.permute.xlu0 %1244
    %1246 = vrot.lane.b32.xlu0 %v1106, 71
    %v1247 = vpop.permute.xlu0 %1246
    %1248 = vrot.lane.b32.xlu0 %v1107, 71
    %v1249 = vpop.permute.xlu0 %1248
    %v1250 = vsel %vm410, %v1241, %v1243
    %v1251 = vsel %vm410, %v1243, %v1245
    %v1252 = vsel %vm410, %v1245, %v1247
    %v1253 = vsel %vm410, %v1247, %v1249
    %1254 = vrot.lane.b32.xlu0 %v1122, 70
    %v1255 = vpop.permute.xlu0 %1254
    %1256 = vrot.lane.b32.xlu0 %v1123, 70
    %v1257 = vpop.permute.xlu0 %1256
    %1258 = vrot.lane.b32.xlu0 %v1124, 70
    %v1259 = vpop.permute.xlu0 %1258
    %1260 = vrot.lane.b32.xlu0 %v1125, 70
    %v1261 = vpop.permute.xlu0 %1260
    %1262 = vrot.lane.b32.xlu0 %v1126, 70
    %v1263 = vpop.permute.xlu0 %1262
    %v1264 = vsel %vm436, %v1255, %v1257
    %v1265 = vsel %vm436, %v1257, %v1259
    %v1266 = vsel %vm436, %v1259, %v1261
    %v1267 = vsel %vm436, %v1261, %v1263
    %1268 = vrot.lane.b32.xlu0 %v1141, 69
    %v1269 = vpop.permute.xlu0 %1268
    %1270 = vrot.lane.b32.xlu0 %v1142, 69
    %v1271 = vpop.permute.xlu0 %1270
    %1272 = vrot.lane.b32.xlu0 %v1143, 69
    %v1273 = vpop.permute.xlu0 %1272
    %1274 = vrot.lane.b32.xlu0 %v1144, 69
    %v1275 = vpop.permute.xlu0 %1274
    %1276 = vrot.lane.b32.xlu0 %v1145, 69
    %v1277 = vpop.permute.xlu0 %1276
    %v1278 = vsel %vm460, %v1269, %v1271
    %v1279 = vsel %vm460, %v1271, %v1273
    %v1280 = vsel %vm460, %v1273, %v1275
    %v1281 = vsel %vm460, %v1275, %v1277
    %1282 = vrot.lane.b32.xlu0 %v1160, 68
    %v1283 = vpop.permute.xlu0 %1282
    %1284 = vrot.lane.b32.xlu0 %v1161, 68
    %v1285 = vpop.permute.xlu0 %1284
    %1286 = vrot.lane.b32.xlu0 %v1162, 68
    %v1287 = vpop.permute.xlu0 %1286
    %1288 = vrot.lane.b32.xlu0 %v1163, 68
    %v1289 = vpop.permute.xlu0 %1288
    %1290 = vrot.lane.b32.xlu0 %v1164, 68
    %v1291 = vpop.permute.xlu0 %1290
    %v1292 = vsel %vm485, %v1283, %v1285
    %v1293 = vsel %vm485, %v1285, %v1287
    %v1294 = vsel %vm485, %v1287, %v1289
    %v1295 = vsel %vm485, %v1289, %v1291
    %v1297 = vrot.slane %v1059, 3
    %1298 = vrot.lane.b32.xlu0 %v1179, 44
    %v1299 = vpop.permute.xlu0 %1298
    %1300 = vrot.lane.b32.xlu0 %v1180, 44
    %v1301 = vpop.permute.xlu0 %1300
    %1302 = vrot.lane.b32.xlu0 %v1181, 44
    %v1303 = vpop.permute.xlu0 %1302
    %1304 = vrot.lane.b32.xlu0 %v1182, 44
    %v1305 = vpop.permute.xlu0 %1304
    %1306 = vrot.lane.b32.xlu0 %v1183, 44
    %v1307 = vpop.permute.xlu0 %1306
    %1308 = vrot.lane.b32.xlu0 %v1297, 44
    %v1309 = vpop.permute.xlu0 %1308
    %v1310 = vsel %vm509, %v1299, %v1301
    %v1311 = vsel %vm509, %v1301, %v1303
    %v1312 = vsel %vm509, %v1303, %v1305
    %v1313 = vsel %vm509, %v1305, %v1307
    %v1314 = vsel %vm509, %v1307, %v1309
    %v1317 = vsel %vm598, %v1054, %v1080
    %v1320 = vsel %vm598, %v1055, %v1081
    %v1323 = vsel %vm598, %v1056, %v1082
    %v1326 = vsel %vm598, %v1057, %v1083
    %v1329 = vsel %vm598, %v1058, %v1079
    %v1331 = vsel %vm700, %v1317, %v1099
    %v1334 = vsel %vm700, %v1320, %v1100
    %v1337 = vsel %vm700, %v1323, %v1101
    %v1340 = vsel %vm700, %v1326, %v1102
    %v1343 = vsel %vm700, %v1329, %v1098
    %v1346 = vsel %vm530, %v1099, %v1118
    %v1348 = vsel %vm530, %v1100, %v1119
    %v1350 = vsel %vm530, %v1101, %v1120
    %v1352 = vsel %vm530, %v1102, %v1121
    %v1354 = vsel %vm530, %v1098, %v1117
    %v1356 = vsel %vm632, %v1346, %v1137
    %v1358 = vsel %vm632, %v1348, %v1138
    %v1360 = vsel %vm632, %v1350, %v1139
    %v1362 = vsel %vm632, %v1352, %v1140
    %v1364 = vsel %vm632, %v1354, %v1136
    %v1366 = vsel %vm734, %v1356, %v1156
    %v1369 = vsel %vm734, %v1358, %v1157
    %v1372 = vsel %vm734, %v1360, %v1158
    %v1375 = vsel %vm734, %v1362, %v1159
    %v1378 = vsel %vm734, %v1364, %v1155
    %v1381 = vsel %vm564, %v1156, %v1175
    %v1383 = vsel %vm564, %v1157, %v1176
    %v1385 = vsel %vm564, %v1158, %v1177
    %v1387 = vsel %vm564, %v1159, %v1178
    %v1389 = vsel %vm564, %v1155, %v1174
    %v1391 = vsel %vm666, %v1381, %v1194
    %v1394 = vsel %vm666, %v1383, %v1195
    %v1397 = vsel %vm666, %v1385, %v1196
    %v1400 = vsel %vm666, %v1387, %v1197
    %v1403 = vsel %vm666, %v1389, %v1193
    %v1407 = vsel %vm598, %v1208, %v1222
    %v1410 = vsel %vm598, %v1209, %v1223
    %v1413 = vsel %vm598, %v1210, %v1224
    %v1416 = vsel %vm598, %v1211, %v1225
    %v1419 = vsel %vm598, %v1207, %v1221
    %v1421 = vsel %vm700, %v1407, %v1236
    %v1424 = vsel %vm700, %v1410, %v1237
    %v1427 = vsel %vm700, %v1413, %v1238
    %v1430 = vsel %vm700, %v1416, %v1239
    %v1433 = vsel %vm700, %v1419, %v1235
    %v1436 = vsel %vm530, %v1236, %v1250
    %v1438 = vsel %vm530, %v1237, %v1251
    %v1440 = vsel %vm530, %v1238, %v1252
    %v1442 = vsel %vm530, %v1239, %v1253
    %v1444 = vsel %vm530, %v1235, %v1249
    %v1446 = vsel %vm632, %v1436, %v1264
    %v1448 = vsel %vm632, %v1438, %v1265
    %v1450 = vsel %vm632, %v1440, %v1266
    %v1452 = vsel %vm632, %v1442, %v1267
    %v1454 = vsel %vm632, %v1444, %v1263
    %v1456 = vsel %vm734, %v1446, %v1278
    %v1459 = vsel %vm734, %v1448, %v1279
    %v1462 = vsel %vm734, %v1450, %v1280
    %v1465 = vsel %vm734, %v1452, %v1281
    %v1468 = vsel %vm734, %v1454, %v1277
    %v1471 = vsel %vm564, %v1278, %v1292
    %v1473 = vsel %vm564, %v1279, %v1293
    %v1475 = vsel %vm564, %v1280, %v1294
    %v1477 = vsel %vm564, %v1281, %v1295
    %v1479 = vsel %vm564, %v1277, %v1291
    %v1481 = vsel %vm666, %v1471, %v1310
    %v1484 = vsel %vm666, %v1473, %v1311
    %v1487 = vsel %vm666, %v1475, %v1312
    %v1490 = vsel %vm666, %v1477, %v1313
    %v1493 = vsel %vm666, %v1479, %v1314
    %v1495 = vrot.slane %v1059, 5
    %1496 = vrot.lane.b32.xlu0 %v1495, 127
    %v1497 = vpop.permute.xlu0 %1496
    %v1498 = vsel %vm113, %v1079, %v1497
    %v1499 = vrot.slane %v1059, 2
    %1500 = vrot.lane.b32.xlu0 %v1499, 126
    %v1501 = vpop.permute.xlu0 %1500
    %v1502 = vsel %vm162, %v1098, %v1501
    %v1503 = vrot.slane %v1059, 7
    %1504 = vrot.lane.b32.xlu0 %v1503, 125
    %v1505 = vpop.permute.xlu0 %1504
    %v1506 = vsel %vm186, %v1117, %v1505
    %v1507 = vrot.slane %v1059, 4
    %1508 = vrot.lane.b32.xlu0 %v1122, 101
    %v1509 = vpop.permute.xlu0 %1508
    %1510 = vrot.lane.b32.xlu0 %v1123, 101
    %v1511 = vpop.permute.xlu0 %1510
    %1512 = vrot.lane.b32.xlu0 %v1124, 101
    %v1513 = vpop.permute.xlu0 %1512
    %1514 = vrot.lane.b32.xlu0 %v1125, 101
    %v1515 = vpop.permute.xlu0 %1514
    %1516 = vrot.lane.b32.xlu0 %v1126, 101
    %v1517 = vpop.permute.xlu0 %1516
    %1518 = vrot.lane.b32.xlu0 %v1507, 101
    %v1519 = vpop.permute.xlu0 %1518
    %v1520 = vsel %vm783, %v1509, %v1511
    %v1521 = vsel %vm783, %v1511, %v1513
    %v1522 = vsel %vm783, %v1513, %v1515
    %v1523 = vsel %vm783, %v1515, %v1517
    %v1524 = vsel %vm783, %v1517, %v1519
    %v1525 = vrot.slane %v1059, 1
    %1526 = vrot.lane.b32.xlu0 %v1525, 100
    %v1527 = vpop.permute.xlu0 %1526
    %v1528 = vsel %vm251, %v1155, %v1527
    %v1529 = vrot.slane %v1059, 6
    %1530 = vrot.lane.b32.xlu0 %v1529, 99
    %v1531 = vpop.permute.xlu0 %1530
    %v1532 = vsel %vm284, %v1174, %v1531
    %1533 = vrot.lane.b32.xlu0 %v1297, 98
    %v1534 = vpop.permute.xlu0 %1533
    %v1535 = vsel %vm308, %v1193, %v1534
    %1536 = vrot.lane.b32.xlu0 %v1059, 97
    %v1537 = vpop.permute.xlu0 %1536
    %v1538 = vsel %vm336, %v1207, %v1537
    %v1540 = vsel %vm598, %v1058, %v1498
    %v1543 = vsel %vm598, %v1059, %v1497
    %v1545 = vsel %vm700, %v1540, %v1502
    %v1547 = vsel %vm700, %v1543, %v1501
    %v1549 = vsel %vm530, %v1502, %v1506
    %v1551 = vsel %vm530, %v1501, %v1505
    %v1553 = vsel %vm632, %v1346, %v1520
    %v1555 = vsel %vm632, %v1348, %v1521
    %v1557 = vsel %vm632, %v1350, %v1522
    %v1559 = vsel %vm632, %v1352, %v1523
    %v1561 = vsel %vm632, %v1549, %v1524
    %v1563 = vsel %vm632, %v1551, %v1519
    %v1564 = vsel %vm734, %v1553, %v1156
    %v1565 = vsel %vm734, %v1555, %v1157
    %v1566 = vsel %vm734, %v1557, %v1158
    %v1567 = vsel %vm734, %v1559, %v1159
    %v1569 = vsel %vm734, %v1561, %v1528
    %v1571 = vsel %vm734, %v1563, %v1527
    %v1573 = vsel %vm564, %v1528, %v1532
    %v1575 = vsel %vm564, %v1527, %v1531
    %v1577 = vsel %vm666, %v1573, %v1535
    %v1579 = vsel %vm666, %v1575, %v1534
    %1598 = vrot.lane.b32.xlu0 %v1331, 43
    %v1599 = vpop.permute.xlu0 %1598
    %1600 = vrot.lane.b32.xlu0 %v1334, 43
    %v1601 = vpop.permute.xlu0 %1600
    %1602 = vrot.lane.b32.xlu0 %v1337, 43
    %v1603 = vpop.permute.xlu0 %1602
    %1604 = vrot.lane.b32.xlu0 %v1340, 43
    %v1605 = vpop.permute.xlu0 %1604
    %1606 = vrot.lane.b32.xlu0 %v1545, 43
    %v1607 = vpop.permute.xlu0 %1606
    %1608 = vrot.lane.b32.xlu0 %v1547, 43
    %v1609 = vpop.permute.xlu0 %1608
    %1610 = vrot.lane.b32.xlu0 %v1564, 43
    %v1611 = vpop.permute.xlu0 %1610
    %1612 = vrot.lane.b32.xlu0 %v1565, 43
    %v1613 = vpop.permute.xlu0 %1612
    %1614 = vrot.lane.b32.xlu0 %v1566, 43
    %v1615 = vpop.permute.xlu0 %1614
    %1616 = vrot.lane.b32.xlu0 %v1567, 43
    %v1617 = vpop.permute.xlu0 %1616
    %1618 = vrot.lane.b32.xlu0 %v1569, 43
    %v1619 = vpop.permute.xlu0 %1618
    %1620 = vrot.lane.b32.xlu0 %v1571, 43
    %v1621 = vpop.permute.xlu0 %1620
    %1622 = vrot.lane.b32.xlu0 %v1391, 43
    %v1623 = vpop.permute.xlu0 %1622
    %1624 = vrot.lane.b32.xlu0 %v1394, 43
    %v1625 = vpop.permute.xlu0 %1624
    %1626 = vrot.lane.b32.xlu0 %v1397, 43
    %v1627 = vpop.permute.xlu0 %1626
    %1628 = vrot.lane.b32.xlu0 %v1400, 43
    %v1629 = vpop.permute.xlu0 %1628
    %1630 = vrot.lane.b32.xlu0 %v1577, 43
    %v1631 = vpop.permute.xlu0 %1630
    %1632 = vrot.lane.b32.xlu0 %v1579, 43
    %v1633 = vpop.permute.xlu0 %1632
    %1634 = vrot.lane.b32.xlu0 %v1208, 43
    %v1635 = vpop.permute.xlu0 %1634
    %1636 = vrot.lane.b32.xlu0 %v1209, 43
    %v1637 = vpop.permute.xlu0 %1636
    %1638 = vrot.lane.b32.xlu0 %v1210, 43
    %v1639 = vpop.permute.xlu0 %1638
    %1640 = vrot.lane.b32.xlu0 %v1211, 43
    %v1641 = vpop.permute.xlu0 %1640
    %1642 = vrot.lane.b32.xlu0 %v1538, 43
    %v1643 = vpop.permute.xlu0 %1642
    %1644 = vrot.lane.b32.xlu0 %v1537, 43
    %v1645 = vpop.permute.xlu0 %1644
    %v1646 = vsel %vm890, %v1599, %v1601
    %v1647 = vsel %vm890, %v1601, %v1603
    %v1648 = vsel %vm890, %v1603, %v1605
    %v1649 = vsel %vm890, %v1605, %v1607
    %v1650 = vsel %vm890, %v1607, %v1609
    %v1651 = vsel %vm890, %v1611, %v1613
    %v1652 = vsel %vm890, %v1613, %v1615
    %v1653 = vsel %vm890, %v1615, %v1617
    %v1654 = vsel %vm890, %v1617, %v1619
    %v1655 = vsel %vm890, %v1619, %v1621
    %v1656 = vsel %vm890, %v1623, %v1625
    %v1657 = vsel %vm890, %v1625, %v1627
    %v1658 = vsel %vm890, %v1627, %v1629
    %v1659 = vsel %vm890, %v1629, %v1631
    %v1660 = vsel %vm890, %v1631, %v1633
    %v1661 = vsel %vm890, %v1635, %v1637
    %v1662 = vsel %vm890, %v1637, %v1639
    %v1663 = vsel %vm890, %v1639, %v1641
    %v1664 = vsel %vm890, %v1641, %v1643
    %v1665 = vsel %vm890, %v1643, %v1645
    %1682 = vset.pattern.permute.xlu0 0
    %1683 = vperm.xlu0 %1682, %v26
    %v1684 = vpop.permute.xlu0 %1683
    %1687 = vset.pattern.permute.xlu0 0
    %1688 = vperm.xlu0 %1687, %v27
    %v1689 = vpop.permute.xlu0 %1688
    %v1693 = vunpack.c.l.b16 %v24
    %v1694 = vunpack.c.h.b16 %v24
    %v1695 = vunpack.c.l.b16 %v25
    %v1696 = vunpack.c.h.b16 %v25
    %v1697 = vpack.c.b16 %v1695, %v1693
    %v1698 = vpack.c.b16 %v1696, %v1694
    %vm1700 = vcmask 179200
    %v1702 = vsel %vm1700, %v1698, 0
    %v1705 = vsel %vm598, %v1661, 0
    %v1708 = vsel %vm598, %v1662, 0
    %v1711 = vsel %vm598, %v1663, 0
    %v1714 = vsel %vm598, %v1664, 0
    %v1717 = vsel %vm598, %v1665, 0
    %1719 = vmatprep.subr.bf16.mxu0 %v1334
    %1720 = vmatpush1.bf16.msra.mxu0 %v1331
    %1721 = vmatprep.subr.bf16.mxu0 %v1369
    %1722 = vmatpush1.bf16.msra.mxu0 %v1366
    %1723 = vmatprep.subr.bf16.mxu0 %v1394
    %1724 = vmatpush1.bf16.msra.mxu0 %v1391
    %1725 = vmatprep.subr.bf16.mxu0 %v1424
    %1726 = vmatpush1.bf16.msra.mxu0 %v1421
    %1727 = vmatprep.subr.bf16.mxu0 %v1459
    %1728 = vmatpush1.bf16.msra.mxu0 %v1456
    %1729 = vmatprep.subr.bf16.mxu0 %v1484
    %1730 = vmatpush1.bf16.msra.mxu0 %v1481
    %1731 = vmatprep.subr.bf16.mxu0 %v1647
    %1732 = vmatpush1.bf16.msra.mxu0 %v1646
    %1733 = vmatprep.subr.bf16.mxu0 %v1652
    %1734 = vmatpush1.bf16.msra.mxu0 %v1651
    %1735 = vmatprep.subr.bf16.mxu0 %v1657
    %1736 = vmatpush1.bf16.msra.mxu0 %v1656
    %1737 = vmatprep.subr.bf16.mxu0 %v1708
    %1738 = vmatpush1.bf16.msra.mxu0 %v1705
    %1739 = vmatprep.subr.bf16.mxu0 0
    %1740 = vmatpush1.bf16.msra.mxu0 0
    %1741 = vmatprep.subr.bf16.mxu0 0
    %1742 = vmatpush1.bf16.msra.mxu0 0
    %1743 = vmatprep.subr.bf16.mxu0 0
    %1744 = vmatpush1.bf16.msra.mxu0 0
    %1745 = vmatprep.subr.bf16.mxu0 0
    %1746 = vmatpush1.bf16.msra.mxu0 0
    %1747 = vmatprep.subr.bf16.mxu0 0
    %1748 = vmatpush1.bf16.msra.mxu0 0
    %1749 = vmatprep.subr.bf16.mxu0 0
    %1750 = vmatpush1.bf16.msra.mxu0 0
    %1751 = vmatprep.mubr.bf16.mxu0 %v1702
    %1752 = vmatmul.mubr.bf16.gmra.mrb[0].mxu0 %v1697
    %v1753 = vpop.f32.mrb[0].mxu0
    %v1754 = vadd.f32 %v1684, %v1753
    %v1755 = vpop.f32.mrb[0].mxu0
    %v1756 = vadd.f32 %v1684, %v1755
    %v1757 = vpop.f32.mrb[0].mxu0
    %v1758 = vadd.f32 %v1689, %v1757
    %v1759 = vpop.f32.mrb[0].mxu0
    %v1760 = vadd.f32 %v1689, %v1759
    %1761 = vdwg.mxu0
    %1762 = vmatprep.subr.bf16.mxu0 %v1340
    %1763 = vmatpush1.bf16.msra.mxu0 %v1337
    %1764 = vmatprep.subr.bf16.mxu0 %v1375
    %1765 = vmatpush1.bf16.msra.mxu0 %v1372
    %1766 = vmatprep.subr.bf16.mxu0 %v1400
    %1767 = vmatpush1.bf16.msra.mxu0 %v1397
    %1768 = vmatprep.subr.bf16.mxu0 %v1430
    %1769 = vmatpush1.bf16.msra.mxu0 %v1427
    %1770 = vmatprep.subr.bf16.mxu0 %v1465
    %1771 = vmatpush1.bf16.msra.mxu0 %v1462
    %1772 = vmatprep.subr.bf16.mxu0 %v1490
    %1773 = vmatpush1.bf16.msra.mxu0 %v1487
    %1774 = vmatprep.subr.bf16.mxu0 %v1649
    %1775 = vmatpush1.bf16.msra.mxu0 %v1648
    %1776 = vmatprep.subr.bf16.mxu0 %v1654
    %1777 = vmatpush1.bf16.msra.mxu0 %v1653
    %1778 = vmatprep.subr.bf16.mxu0 %v1659
    %1779 = vmatpush1.bf16.msra.mxu0 %v1658
    %1780 = vmatprep.subr.bf16.mxu0 %v1714
    %1781 = vmatpush1.bf16.msra.mxu0 %v1711
    %1782 = vmatprep.subr.bf16.mxu0 0
    %1783 = vmatpush1.bf16.msra.mxu0 0
    %1784 = vmatprep.subr.bf16.mxu0 0
    %1785 = vmatpush1.bf16.msra.mxu0 0
    %1786 = vmatprep.subr.bf16.mxu0 0
    %1787 = vmatpush1.bf16.msra.mxu0 0
    %1788 = vmatprep.subr.bf16.mxu0 0
    %1789 = vmatpush1.bf16.msra.mxu0 0
    %1790 = vmatprep.subr.bf16.mxu0 0
    %1791 = vmatpush1.bf16.msra.mxu0 0
    %1792 = vmatprep.subr.bf16.mxu0 0
    %1793 = vmatpush1.bf16.msra.mxu0 0
    %1794 = vmatprep.mubr.bf16.mxu0 %v1702
    %1795 = vmatmul.mubr.bf16.gmra.mrb[0].mxu0 %v1697
    %v1796 = vpop.f32.mrb[0].mxu0
    %v1797 = vadd.f32 %v1684, %v1796
    %v1798 = vpop.f32.mrb[0].mxu0
    %v1799 = vadd.f32 %v1684, %v1798
    %v1800 = vpop.f32.mrb[0].mxu0
    %v1801 = vadd.f32 %v1689, %v1800
    %v1802 = vpop.f32.mrb[0].mxu0
    %v1803 = vadd.f32 %v1689, %v1802
    %1804 = vdwg.mxu0
    %1805 = vmatprep.subr.bf16.mxu0 0
    %1806 = vmatpush1.bf16.msra.mxu0 %v1343
    %1807 = vmatprep.subr.bf16.mxu0 0
    %1808 = vmatpush1.bf16.msra.mxu0 %v1378
    %1809 = vmatprep.subr.bf16.mxu0 0
    %1810 = vmatpush1.bf16.msra.mxu0 %v1403
    %1811 = vmatprep.subr.bf16.mxu0 0
    %1812 = vmatpush1.bf16.msra.mxu0 %v1433
    %1813 = vmatprep.subr.bf16.mxu0 0
    %1814 = vmatpush1.bf16.msra.mxu0 %v1468
    %1815 = vmatprep.subr.bf16.mxu0 0
    %1816 = vmatpush1.bf16.msra.mxu0 %v1493
    %1817 = vmatprep.subr.bf16.mxu0 0
    %1818 = vmatpush1.bf16.msra.mxu0 %v1650
    %1819 = vmatprep.subr.bf16.mxu0 0
    %1820 = vmatpush1.bf16.msra.mxu0 %v1655
    %1821 = vmatprep.subr.bf16.mxu0 0
    %1822 = vmatpush1.bf16.msra.mxu0 %v1660
    %1823 = vmatprep.subr.bf16.mxu0 0
    %1824 = vmatpush1.bf16.msra.mxu0 %v1717
    %1825 = vmatprep.subr.bf16.mxu0 0
    %1826 = vmatpush1.bf16.msra.mxu0 0
    %1827 = vmatprep.subr.bf16.mxu0 0
    %1828 = vmatpush1.bf16.msra.mxu0 0
    %1829 = vmatprep.subr.bf16.mxu0 0
    %1830 = vmatpush1.bf16.msra.mxu0 0
    %1831 = vmatprep.subr.bf16.mxu0 0
    %1832 = vmatpush1.bf16.msra.mxu0 0
    %1833 = vmatprep.subr.bf16.mxu0 0
    %1834 = vmatpush1.bf16.msra.mxu0 0
    %1835 = vmatprep.subr.bf16.mxu0 0
    %1836 = vmatpush1.bf16.msra.mxu0 0
    %1837 = vmatprep.mubr.bf16.mxu0 %v1702
    %1838 = vmatmul.mubr.bf16.gmra.mrb[0].mxu0 %v1697
    %v1839 = vpop.f32.mrb[0].mxu0
    %v1840 = vadd.f32 %v1684, %v1839
    %v1841 = vpop.f32.mrb[0].mxu0
    %v1842 = vpop.f32.mrb[0].mxu0
    %v1843 = vadd.f32 %v1689, %v1842
    %v1844 = vpop.f32.mrb[0].mxu0
    %1845 = vdwg.mxu0
    %v1846 = vmax.f32 %v1754, 0.0
    %v1847 = vmax.f32 %v1756, 0.0
    %v1848 = vmax.f32 %v1797, 0.0
    %v1849 = vmax.f32 %v1799, 0.0
    %v1850 = vmax.f32 %v1840, 0.0
    %v1851 = vmax.f32 %v1758, 0.0
    %v1852 = vmax.f32 %v1760, 0.0
    %v1853 = vmax.f32 %v1801, 0.0
    %v1854 = vmax.f32 %v1803, 0.0
    %v1855 = vmax.f32 %v1843, 0.0
    %v1856 = vpack.c.bf16 %v1851, %v1846
    %v1857 = vpack.c.bf16 %v1852, %v1847
    %v1858 = vpack.c.bf16 %v1853, %v1848
    %v1859 = vpack.c.bf16 %v1854, %v1849
    %v1860 = vpack.c.bf16 %v1855, %v1850
    %v1866 = vunpack.c.l.b16 %v1856
    %v1867 = vunpack.c.l.b16 %v1857
    %v1868 = vunpack.c.l.b16 %v1858
    %v1869 = vunpack.c.l.b16 %v1859
    %v1870 = vunpack.c.l.b16 %v1860
    %v1871 = vunpack.c.h.b16 %v1856
    %v1872 = vunpack.c.h.b16 %v1857
    %v1873 = vunpack.c.h.b16 %v1858
    %v1874 = vunpack.c.h.b16 %v1859
    %v1875 = vunpack.c.h.b16 %v1860
    %v1876 = vpack.c.b16 %v1867, %v1866
    %v1877 = vpack.c.b16 %v1869, %v1868
    %v1878 = vpack.c.b16 %v1870, %v1870
    %v1879 = vpack.c.b16 %v1872, %v1871
    %v1880 = vpack.c.b16 %v1874, %v1873
    %v1881 = vpack.c.b16 %v1875, %v1875
    %1888 = vst [vmem:[#allocation2] sm:$0xff] %v1876
    %1889 = vst [vmem:[#allocation2 + $0x8] sm:$0xff] %v1877
    %vm1890 = vcmask 388096
    %1891 = vst.msk [vmem:[#allocation2 + $0x10] sm:$0xf] %vm1890, %v1878
    %1892 = vst [vmem:[#allocation2 + $0x14] sm:$0xff] %v1879
    %1893 = vst [vmem:[#allocation2 + $0x1c] sm:$0xff] %v1880
    %1894 = vst.msk [vmem:[#allocation2 + $0x24] sm:$0xf] %vm1890, %v1881
    %v1895 = vld [vmem:[%s0] sm:$0x7f]
    %v1897 = vcombine.high %v1895, %v1895
    %v1899 = vunpack.c.l.s4 1966171168
    %v1900 = vunpack.c.0.s8 %v1899
    %v1901 = vlaneseq
    %v1902 = vshrl.u32 %v1901, 7
    %v1903 = vsub.s32 %v1900, %v1902
    %v1904 = vrot.slane %v1895, %v1903
    %v1906 = vunpack.c.l.s4 1966171168
    %v1907 = vunpack.c.0.s8 %v1906
    %v1908 = vlaneseq
    %v1909 = vshrl.u32 %v1908, 7
    %v1910 = vsub.s32 %v1907, %v1909
    %v1911 = vrot.slane %v1897, %v1910
    %v1912 = vcombine.high %v1904, %v1904
    %v1913 = vcombine.high %v1911, %v1911
    %v1915 = vunpack.c.l.s4 1966171168
    %v1916 = vunpack.c.0.s8 %v1915
    %v1917 = vlaneseq
    %v1918 = vshrl.u32 %v1917, 7
    %v1919 = vsub.s32 %v1916, %v1918
    %v1920 = vrot.slane %v1904, %v1919
    %v1922 = vunpack.c.l.s4 1966171168
    %v1923 = vunpack.c.0.s8 %v1922
    %v1924 = vlaneseq
    %v1925 = vshrl.u32 %v1924, 7
    %v1926 = vsub.s32 %v1923, %v1925
    %v1927 = vrot.slane %v1911, %v1926
    %v1929 = vunpack.c.l.s4 1966171168
    %v1930 = vunpack.c.0.s8 %v1929
    %v1931 = vlaneseq
    %v1932 = vshrl.u32 %v1931, 7
    %v1933 = vsub.s32 %v1930, %v1932
    %v1934 = vrot.slane %v1912, %v1933
    %v1936 = vunpack.c.l.s4 1966171168
    %v1937 = vunpack.c.0.s8 %v1936
    %v1938 = vlaneseq
    %v1939 = vshrl.u32 %v1938, 7
    %v1940 = vsub.s32 %v1937, %v1939
    %v1941 = vrot.slane %v1913, %v1940
    %v1942 = vcombine.high %v1920, %v1920
    %v1943 = vcombine.high %v1934, %v1934
    %v1945 = vshrl.u32 %v1920, 16
    %v1948 = vshrl.u32 %v1934, 16
    %v1951 = vshrl.u32 %v1942, 16
    %v1954 = vshrl.u32 %v1943, 16
    %v1957 = vshrl.u32 %v1927, 16
    %v1960 = vshrl.u32 %v1941, 16
    %1968 = vrot.lane.b32.xlu0 %v1920, 127
    %v1969 = vpop.permute.xlu0 %1968
    %1970 = vrot.lane.b32.xlu0 %v1934, 127
    %v1971 = vpop.permute.xlu0 %1970
    %1972 = vrot.lane.b32.xlu0 %v1942, 127
    %v1973 = vpop.permute.xlu0 %1972
    %1974 = vrot.lane.b32.xlu0 %v1943, 127
    %v1975 = vpop.permute.xlu0 %1974
    %1976 = vrot.lane.b32.xlu0 %v1927, 127
    %v1977 = vpop.permute.xlu0 %1976
    %1978 = vrot.lane.b32.xlu0 %v1941, 127
    %v1979 = vpop.permute.xlu0 %1978
    %v1980 = vsel %vm113, %v1969, %v1971
    %v1981 = vsel %vm113, %v1971, %v1973
    %v1982 = vsel %vm113, %v1973, %v1975
    %v1983 = vsel %vm113, %v1975, %v1977
    %v1984 = vsel %vm113, %v1977, %v1979
    %v1991 = vrot.slane %v1945, 7
    %v1992 = vrot.slane %v1948, 7
    %v1993 = vrot.slane %v1951, 7
    %v1994 = vrot.slane %v1954, 7
    %v1995 = vrot.slane %v1957, 7
    %v1996 = vrot.slane %v1960, 7
    %1997 = vrot.lane.b32.xlu0 %v1991, 126
    %v1998 = vpop.permute.xlu0 %1997
    %1999 = vrot.lane.b32.xlu0 %v1992, 126
    %v2000 = vpop.permute.xlu0 %1999
    %2001 = vrot.lane.b32.xlu0 %v1993, 126
    %v2002 = vpop.permute.xlu0 %2001
    %2003 = vrot.lane.b32.xlu0 %v1994, 126
    %v2004 = vpop.permute.xlu0 %2003
    %2005 = vrot.lane.b32.xlu0 %v1995, 126
    %v2006 = vpop.permute.xlu0 %2005
    %2007 = vrot.lane.b32.xlu0 %v1996, 126
    %v2008 = vpop.permute.xlu0 %2007
    %v2009 = vsel %vm162, %v1998, %v2000
    %v2010 = vsel %vm162, %v2000, %v2002
    %v2011 = vsel %vm162, %v2002, %v2004
    %v2012 = vsel %vm162, %v2004, %v2006
    %v2013 = vsel %vm162, %v2006, %v2008
    %v2014 = vcombine.low %v1895, %v1895
    %v2016 = vunpack.c.l.s4 1966171168
    %v2017 = vunpack.c.0.s8 %v2016
    %v2018 = vlaneseq
    %v2019 = vshrl.u32 %v2018, 7
    %v2020 = vsub.s32 %v2017, %v2019
    %v2021 = vrot.slane %v2014, %v2020
    %v2022 = vcombine.high %v2021, %v2021
    %v2024 = vunpack.c.l.s4 1966171168
    %v2025 = vunpack.c.0.s8 %v2024
    %v2026 = vlaneseq
    %v2027 = vshrl.u32 %v2026, 7
    %v2028 = vsub.s32 %v2025, %v2027
    %v2029 = vrot.slane %v2021, %v2028
    %v2031 = vunpack.c.l.s4 1966171168
    %v2032 = vunpack.c.0.s8 %v2031
    %v2033 = vlaneseq
    %v2034 = vshrl.u32 %v2033, 7
    %v2035 = vsub.s32 %v2032, %v2034
    %v2036 = vrot.slane %v2022, %v2035
    %v2037 = vcombine.high %v2029, %v2029
    %v2038 = vcombine.high %v2036, %v2036
    %2039 = vrot.lane.b32.xlu0 %v2029, 125
    %v2040 = vpop.permute.xlu0 %2039
    %2041 = vrot.lane.b32.xlu0 %v2036, 125
    %v2042 = vpop.permute.xlu0 %2041
    %2043 = vrot.lane.b32.xlu0 %v2037, 125
    %v2044 = vpop.permute.xlu0 %2043
    %2045 = vrot.lane.b32.xlu0 %v2038, 125
    %v2046 = vpop.permute.xlu0 %2045
    %2047 = vrot.lane.b32.xlu0 %v1920, 125
    %v2048 = vpop.permute.xlu0 %2047
    %2049 = vrot.lane.b32.xlu0 %v1934, 125
    %v2050 = vpop.permute.xlu0 %2049
    %v2051 = vsel %vm186, %v2040, %v2042
    %v2052 = vsel %vm186, %v2042, %v2044
    %v2053 = vsel %vm186, %v2044, %v2046
    %v2054 = vsel %vm186, %v2046, %v2048
    %v2055 = vsel %vm186, %v2048, %v2050
    %v2062 = vrot.slane %v1945, 6
    %v2063 = vrot.slane %v1948, 6
    %v2064 = vrot.slane %v1951, 6
    %v2065 = vrot.slane %v1954, 6
    %v2066 = vrot.slane %v1957, 6
    %v2067 = vrot.slane %v1960, 6
    %2068 = vrot.lane.b32.xlu0 %v2062, 124
    %v2069 = vpop.permute.xlu0 %2068
    %2070 = vrot.lane.b32.xlu0 %v2063, 124
    %v2071 = vpop.permute.xlu0 %2070
    %2072 = vrot.lane.b32.xlu0 %v2064, 124
    %v2073 = vpop.permute.xlu0 %2072
    %2074 = vrot.lane.b32.xlu0 %v2065, 124
    %v2075 = vpop.permute.xlu0 %2074
    %2076 = vrot.lane.b32.xlu0 %v2066, 124
    %v2077 = vpop.permute.xlu0 %2076
    %2078 = vrot.lane.b32.xlu0 %v2067, 124
    %v2079 = vpop.permute.xlu0 %2078
    %v2080 = vsel %vm227, %v2069, %v2071
    %v2081 = vsel %vm227, %v2071, %v2073
    %v2082 = vsel %vm227, %v2073, %v2075
    %v2083 = vsel %vm227, %v2075, %v2077
    %v2084 = vsel %vm227, %v2077, %v2079
    %v2085 = vcombine.low %v1904, %v1904
    %v2086 = vcombine.low %v1911, %v1911
    %v2088 = vunpack.c.l.s4 1966171168
    %v2089 = vunpack.c.0.s8 %v2088
    %v2090 = vlaneseq
    %v2091 = vshrl.u32 %v2090, 7
    %v2092 = vsub.s32 %v2089, %v2091
    %v2093 = vrot.slane %v2085, %v2092
    %v2095 = vunpack.c.l.s4 1966171168
    %v2096 = vunpack.c.0.s8 %v2095
    %v2097 = vlaneseq
    %v2098 = vshrl.u32 %v2097, 7
    %v2099 = vsub.s32 %v2096, %v2098
    %v2100 = vrot.slane %v2086, %v2099
    %v2101 = vcombine.high %v2093, %v2093
    %2102 = vrot.lane.b32.xlu0 %v2093, 100
    %v2103 = vpop.permute.xlu0 %2102
    %2104 = vrot.lane.b32.xlu0 %v1920, 100
    %v2105 = vpop.permute.xlu0 %2104
    %2106 = vrot.lane.b32.xlu0 %v2101, 100
    %v2107 = vpop.permute.xlu0 %2106
    %2108 = vrot.lane.b32.xlu0 %v1942, 100
    %v2109 = vpop.permute.xlu0 %2108
    %2110 = vrot.lane.b32.xlu0 %v2100, 100
    %v2111 = vpop.permute.xlu0 %2110
    %2112 = vrot.lane.b32.xlu0 %v1927, 100
    %v2113 = vpop.permute.xlu0 %2112
    %v2114 = vsel %vm251, %v2103, %v2105
    %v2115 = vsel %vm251, %v2105, %v2107
    %v2116 = vsel %vm251, %v2107, %v2109
    %v2117 = vsel %vm251, %v2109, %v2111
    %v2118 = vsel %vm251, %v2111, %v2113
    %v2125 = vrot.slane %v1945, 5
    %v2126 = vrot.slane %v1948, 5
    %v2127 = vrot.slane %v1951, 5
    %v2128 = vrot.slane %v1954, 5
    %v2129 = vrot.slane %v1957, 5
    %v2130 = vrot.slane %v1960, 5
    %2131 = vrot.lane.b32.xlu0 %v2125, 99
    %v2132 = vpop.permute.xlu0 %2131
    %2133 = vrot.lane.b32.xlu0 %v2126, 99
    %v2134 = vpop.permute.xlu0 %2133
    %2135 = vrot.lane.b32.xlu0 %v2127, 99
    %v2136 = vpop.permute.xlu0 %2135
    %2137 = vrot.lane.b32.xlu0 %v2128, 99
    %v2138 = vpop.permute.xlu0 %2137
    %2139 = vrot.lane.b32.xlu0 %v2129, 99
    %v2140 = vpop.permute.xlu0 %2139
    %2141 = vrot.lane.b32.xlu0 %v2130, 99
    %v2142 = vpop.permute.xlu0 %2141
    %v2143 = vsel %vm284, %v2132, %v2134
    %v2144 = vsel %vm284, %v2134, %v2136
    %v2145 = vsel %vm284, %v2136, %v2138
    %v2146 = vsel %vm284, %v2138, %v2140
    %v2147 = vsel %vm284, %v2140, %v2142
    %v2148 = vcombine.low %v2021, %v2021
    %v2150 = vunpack.c.l.s4 1966171168
    %v2151 = vunpack.c.0.s8 %v2150
    %v2152 = vlaneseq
    %v2153 = vshrl.u32 %v2152, 7
    %v2154 = vsub.s32 %v2151, %v2153
    %v2155 = vrot.slane %v2148, %v2154
    %v2156 = vcombine.high %v2155, %v2155
    %2157 = vrot.lane.b32.xlu0 %v2155, 98
    %v2158 = vpop.permute.xlu0 %2157
    %2159 = vrot.lane.b32.xlu0 %v2029, 98
    %v2160 = vpop.permute.xlu0 %2159
    %2161 = vrot.lane.b32.xlu0 %v2156, 98
    %v2162 = vpop.permute.xlu0 %2161
    %2163 = vrot.lane.b32.xlu0 %v2037, 98
    %v2164 = vpop.permute.xlu0 %2163
    %2165 = vrot.lane.b32.xlu0 %v2093, 98
    %v2166 = vpop.permute.xlu0 %2165
    %2167 = vrot.lane.b32.xlu0 %v1920, 98
    %v2168 = vpop.permute.xlu0 %2167
    %v2169 = vsel %vm308, %v2158, %v2160
    %v2170 = vsel %vm308, %v2160, %v2162
    %v2171 = vsel %vm308, %v2162, %v2164
    %v2172 = vsel %vm308, %v2164, %v2166
    %v2173 = vsel %vm308, %v2166, %v2168
    %v2180 = vrot.slane %v1945, 4
    %v2181 = vrot.slane %v1948, 4
    %v2182 = vrot.slane %v1951, 4
    %v2183 = vrot.slane %v1954, 4
    %v2184 = vrot.slane %v1957, 4
    %v2185 = vrot.slane %v1960, 4
    %2186 = vrot.lane.b32.xlu0 %v2180, 97
    %v2187 = vpop.permute.xlu0 %2186
    %2188 = vrot.lane.b32.xlu0 %v2181, 97
    %v2189 = vpop.permute.xlu0 %2188
    %2190 = vrot.lane.b32.xlu0 %v2182, 97
    %v2191 = vpop.permute.xlu0 %2190
    %2192 = vrot.lane.b32.xlu0 %v2183, 97
    %v2193 = vpop.permute.xlu0 %2192
    %2194 = vrot.lane.b32.xlu0 %v2184, 97
    %v2195 = vpop.permute.xlu0 %2194
    %2196 = vrot.lane.b32.xlu0 %v2185, 97
    %v2197 = vpop.permute.xlu0 %2196
    %v2198 = vsel %vm336, %v2187, %v2189
    %v2199 = vsel %vm336, %v2189, %v2191
    %v2200 = vsel %vm336, %v2191, %v2193
    %v2201 = vsel %vm336, %v2193, %v2195
    %v2202 = vsel %vm336, %v2195, %v2197
    %v2203 = vcombine.low %v1920, %v1920
    %v2204 = vcombine.low %v1927, %v1927
    %v2205 = vcombine.low %v1934, %v1934
    %v2206 = vcombine.low %v1941, %v1941
    %2207 = vrot.lane.b32.xlu0 %v2203, 96
    %v2208 = vpop.permute.xlu0 %2207
    %2209 = vrot.lane.b32.xlu0 %v2205, 96
    %v2210 = vpop.permute.xlu0 %2209
    %2211 = vrot.lane.b32.xlu0 %v1920, 96
    %v2212 = vpop.permute.xlu0 %2211
    %2213 = vrot.lane.b32.xlu0 %v1934, 96
    %v2214 = vpop.permute.xlu0 %2213
    %2215 = vrot.lane.b32.xlu0 %v2204, 96
    %v2216 = vpop.permute.xlu0 %2215
    %2217 = vrot.lane.b32.xlu0 %v2206, 96
    %v2218 = vpop.permute.xlu0 %2217
    %v2219 = vsel %vm360, %v2208, %v2210
    %v2220 = vsel %vm360, %v2210, %v2212
    %v2221 = vsel %vm360, %v2212, %v2214
    %v2222 = vsel %vm360, %v2214, %v2216
    %v2223 = vsel %vm360, %v2216, %v2218
    %v2230 = vrot.slane %v1945, 3
    %v2231 = vrot.slane %v1948, 3
    %v2232 = vrot.slane %v1951, 3
    %v2233 = vrot.slane %v1954, 3
    %v2234 = vrot.slane %v1957, 3
    %v2235 = vrot.slane %v1960, 3
    %2236 = vrot.lane.b32.xlu0 %v2230, 72
    %v2237 = vpop.permute.xlu0 %2236
    %2238 = vrot.lane.b32.xlu0 %v2231, 72
    %v2239 = vpop.permute.xlu0 %2238
    %2240 = vrot.lane.b32.xlu0 %v2232, 72
    %v2241 = vpop.permute.xlu0 %2240
    %2242 = vrot.lane.b32.xlu0 %v2233, 72
    %v2243 = vpop.permute.xlu0 %2242
    %2244 = vrot.lane.b32.xlu0 %v2234, 72
    %v2245 = vpop.permute.xlu0 %2244
    %2246 = vrot.lane.b32.xlu0 %v2235, 72
    %v2247 = vpop.permute.xlu0 %2246
    %v2248 = vsel %vm386, %v2237, %v2239
    %v2249 = vsel %vm386, %v2239, %v2241
    %v2250 = vsel %vm386, %v2241, %v2243
    %v2251 = vsel %vm386, %v2243, %v2245
    %v2252 = vsel %vm386, %v2245, %v2247
    %v2253 = vcombine.low %v2029, %v2029
    %v2254 = vcombine.low %v2036, %v2036
    %2255 = vrot.lane.b32.xlu0 %v2253, 71
    %v2256 = vpop.permute.xlu0 %2255
    %2257 = vrot.lane.b32.xlu0 %v2254, 71
    %v2258 = vpop.permute.xlu0 %2257
    %2259 = vrot.lane.b32.xlu0 %v2029, 71
    %v2260 = vpop.permute.xlu0 %2259
    %2261 = vrot.lane.b32.xlu0 %v2036, 71
    %v2262 = vpop.permute.xlu0 %2261
    %2263 = vrot.lane.b32.xlu0 %v2203, 71
    %v2264 = vpop.permute.xlu0 %2263
    %2265 = vrot.lane.b32.xlu0 %v2205, 71
    %v2266 = vpop.permute.xlu0 %2265
    %v2267 = vsel %vm410, %v2256, %v2258
    %v2268 = vsel %vm410, %v2258, %v2260
    %v2269 = vsel %vm410, %v2260, %v2262
    %v2270 = vsel %vm410, %v2262, %v2264
    %v2271 = vsel %vm410, %v2264, %v2266
    %v2278 = vrot.slane %v1945, 2
    %v2279 = vrot.slane %v1948, 2
    %v2280 = vrot.slane %v1951, 2
    %v2281 = vrot.slane %v1954, 2
    %v2282 = vrot.slane %v1957, 2
    %v2283 = vrot.slane %v1960, 2
    %2284 = vrot.lane.b32.xlu0 %v2278, 70
    %v2285 = vpop.permute.xlu0 %2284
    %2286 = vrot.lane.b32.xlu0 %v2279, 70
    %v2287 = vpop.permute.xlu0 %2286
    %2288 = vrot.lane.b32.xlu0 %v2280, 70
    %v2289 = vpop.permute.xlu0 %2288
    %2290 = vrot.lane.b32.xlu0 %v2281, 70
    %v2291 = vpop.permute.xlu0 %2290
    %2292 = vrot.lane.b32.xlu0 %v2282, 70
    %v2293 = vpop.permute.xlu0 %2292
    %2294 = vrot.lane.b32.xlu0 %v2283, 70
    %v2295 = vpop.permute.xlu0 %2294
    %v2296 = vsel %vm436, %v2285, %v2287
    %v2297 = vsel %vm436, %v2287, %v2289
    %v2298 = vsel %vm436, %v2289, %v2291
    %v2299 = vsel %vm436, %v2291, %v2293
    %v2300 = vsel %vm436, %v2293, %v2295
    %v2301 = vcombine.low %v2093, %v2093
    %v2302 = vcombine.low %v2100, %v2100
    %2303 = vrot.lane.b32.xlu0 %v2301, 69
    %v2304 = vpop.permute.xlu0 %2303
    %2305 = vrot.lane.b32.xlu0 %v2203, 69
    %v2306 = vpop.permute.xlu0 %2305
    %2307 = vrot.lane.b32.xlu0 %v2093, 69
    %v2308 = vpop.permute.xlu0 %2307
    %2309 = vrot.lane.b32.xlu0 %v1920, 69
    %v2310 = vpop.permute.xlu0 %2309
    %2311 = vrot.lane.b32.xlu0 %v2302, 69
    %v2312 = vpop.permute.xlu0 %2311
    %2313 = vrot.lane.b32.xlu0 %v2204, 69
    %v2314 = vpop.permute.xlu0 %2313
    %v2315 = vsel %vm460, %v2304, %v2306
    %v2316 = vsel %vm460, %v2306, %v2308
    %v2317 = vsel %vm460, %v2308, %v2310
    %v2318 = vsel %vm460, %v2310, %v2312
    %v2319 = vsel %vm460, %v2312, %v2314
    %v2326 = vrot.slane %v1945, 1
    %v2327 = vrot.slane %v1948, 1
    %v2328 = vrot.slane %v1951, 1
    %v2329 = vrot.slane %v1954, 1
    %v2330 = vrot.slane %v1957, 1
    %v2331 = vrot.slane %v1960, 1
    %2332 = vrot.lane.b32.xlu0 %v2326, 68
    %v2333 = vpop.permute.xlu0 %2332
    %2334 = vrot.lane.b32.xlu0 %v2327, 68
    %v2335 = vpop.permute.xlu0 %2334
    %2336 = vrot.lane.b32.xlu0 %v2328, 68
    %v2337 = vpop.permute.xlu0 %2336
    %2338 = vrot.lane.b32.xlu0 %v2329, 68
    %v2339 = vpop.permute.xlu0 %2338
    %2340 = vrot.lane.b32.xlu0 %v2330, 68
    %v2341 = vpop.permute.xlu0 %2340
    %2342 = vrot.lane.b32.xlu0 %v2331, 68
    %v2343 = vpop.permute.xlu0 %2342
    %v2344 = vsel %vm485, %v2333, %v2335
    %v2345 = vsel %vm485, %v2335, %v2337
    %v2346 = vsel %vm485, %v2337, %v2339
    %v2347 = vsel %vm485, %v2339, %v2341
    %v2348 = vsel %vm485, %v2341, %v2343
    %v2349 = vcombine.low %v2155, %v2155
    %2350 = vrot.lane.b32.xlu0 %v2349, 44
    %v2351 = vpop.permute.xlu0 %2350
    %2352 = vrot.lane.b32.xlu0 %v2253, 44
    %v2353 = vpop.permute.xlu0 %2352
    %2354 = vrot.lane.b32.xlu0 %v2155, 44
    %v2355 = vpop.permute.xlu0 %2354
    %2356 = vrot.lane.b32.xlu0 %v2029, 44
    %v2357 = vpop.permute.xlu0 %2356
    %2358 = vrot.lane.b32.xlu0 %v2301, 44
    %v2359 = vpop.permute.xlu0 %2358
    %2360 = vrot.lane.b32.xlu0 %v2203, 44
    %v2361 = vpop.permute.xlu0 %2360
    %v2362 = vsel %vm509, %v2351, %v2353
    %v2363 = vsel %vm509, %v2353, %v2355
    %v2364 = vsel %vm509, %v2355, %v2357
    %v2365 = vsel %vm509, %v2357, %v2359
    %v2366 = vsel %vm509, %v2359, %v2361
    %v2373 = vsel %vm523, %v1945, %v1980
    %v2374 = vsel %vm523, %v1948, %v1981
    %v2375 = vsel %vm523, %v1951, %v1982
    %v2376 = vsel %vm523, %v1954, %v1983
    %v2377 = vsel %vm523, %v1957, %v1984
    %v2378 = vsel %vm523, %v1960, %v1979
    %v2381 = vsel %vm530, %v2373, %v2009
    %v2385 = vsel %vm530, %v2374, %v2010
    %v2389 = vsel %vm530, %v2375, %v2011
    %v2393 = vsel %vm530, %v2376, %v2012
    %v2397 = vsel %vm530, %v2377, %v2013
    %v2401 = vsel %vm530, %v2378, %v2008
    %v2403 = vsel %vm557, %v2381, %v2051
    %v2404 = vsel %vm557, %v2385, %v2052
    %v2405 = vsel %vm557, %v2389, %v2053
    %v2406 = vsel %vm557, %v2393, %v2054
    %v2407 = vsel %vm557, %v2397, %v2055
    %v2408 = vsel %vm557, %v2401, %v2050
    %v2411 = vsel %vm564, %v2403, %v2080
    %v2415 = vsel %vm564, %v2404, %v2081
    %v2419 = vsel %vm564, %v2405, %v2082
    %v2423 = vsel %vm564, %v2406, %v2083
    %v2427 = vsel %vm564, %v2407, %v2084
    %v2431 = vsel %vm564, %v2408, %v2079
    %v2433 = vsel %vm591, %v2411, %v2114
    %v2434 = vsel %vm591, %v2415, %v2115
    %v2435 = vsel %vm591, %v2419, %v2116
    %v2436 = vsel %vm591, %v2423, %v2117
    %v2437 = vsel %vm591, %v2427, %v2118
    %v2438 = vsel %vm591, %v2431, %v2113
    %v2441 = vsel %vm598, %v2433, %v2143
    %v2445 = vsel %vm598, %v2434, %v2144
    %v2449 = vsel %vm598, %v2435, %v2145
    %v2453 = vsel %vm598, %v2436, %v2146
    %v2457 = vsel %vm598, %v2437, %v2147
    %v2461 = vsel %vm598, %v2438, %v2142
    %v2463 = vsel %vm625, %v2441, %v2169
    %v2464 = vsel %vm625, %v2445, %v2170
    %v2465 = vsel %vm625, %v2449, %v2171
    %v2466 = vsel %vm625, %v2453, %v2172
    %v2467 = vsel %vm625, %v2457, %v2173
    %v2468 = vsel %vm625, %v2461, %v2168
    %v2471 = vsel %vm632, %v2463, %v2198
    %v2475 = vsel %vm632, %v2464, %v2199
    %v2479 = vsel %vm632, %v2465, %v2200
    %v2483 = vsel %vm632, %v2466, %v2201
    %v2487 = vsel %vm632, %v2467, %v2202
    %v2491 = vsel %vm632, %v2468, %v2197
    %v2493 = vsel %vm659, %v2471, %v2219
    %v2494 = vsel %vm659, %v2475, %v2220
    %v2495 = vsel %vm659, %v2479, %v2221
    %v2496 = vsel %vm659, %v2483, %v2222
    %v2497 = vsel %vm659, %v2487, %v2223
    %v2498 = vsel %vm659, %v2491, %v2218
    %v2501 = vsel %vm666, %v2493, %v2248
    %v2505 = vsel %vm666, %v2494, %v2249
    %v2509 = vsel %vm666, %v2495, %v2250
    %v2513 = vsel %vm666, %v2496, %v2251
    %v2517 = vsel %vm666, %v2497, %v2252
    %v2521 = vsel %vm666, %v2498, %v2247
    %v2523 = vsel %vm693, %v2501, %v2267
    %v2524 = vsel %vm693, %v2505, %v2268
    %v2525 = vsel %vm693, %v2509, %v2269
    %v2526 = vsel %vm693, %v2513, %v2270
    %v2527 = vsel %vm693, %v2517, %v2271
    %v2528 = vsel %vm693, %v2521, %v2266
    %v2531 = vsel %vm700, %v2523, %v2296
    %v2535 = vsel %vm700, %v2524, %v2297
    %v2539 = vsel %vm700, %v2525, %v2298
    %v2543 = vsel %vm700, %v2526, %v2299
    %v2547 = vsel %vm700, %v2527, %v2300
    %v2551 = vsel %vm700, %v2528, %v2295
    %v2553 = vsel %vm727, %v2531, %v2315
    %v2554 = vsel %vm727, %v2535, %v2316
    %v2555 = vsel %vm727, %v2539, %v2317
    %v2556 = vsel %vm727, %v2543, %v2318
    %v2557 = vsel %vm727, %v2547, %v2319
    %v2558 = vsel %vm727, %v2551, %v2314
    %v2561 = vsel %vm734, %v2553, %v2344
    %v2565 = vsel %vm734, %v2554, %v2345
    %v2569 = vsel %vm734, %v2555, %v2346
    %v2573 = vsel %vm734, %v2556, %v2347
    %v2577 = vsel %vm734, %v2557, %v2348
    %v2581 = vsel %vm734, %v2558, %v2343
    %v2583 = vsel %vm761, %v2561, %v2362
    %v2584 = vsel %vm761, %v2565, %v2363
    %v2585 = vsel %vm761, %v2569, %v2364
    %v2586 = vsel %vm761, %v2573, %v2365
    %v2587 = vsel %vm761, %v2577, %v2366
    %v2588 = vsel %vm761, %v2581, %v2361
    %v2589 = vcombine.high %v1927, %v1927
    %v2591 = vshrl.u32 %v2589, 16
    %v2593 = vrot.slane %v2591, 6
    %2594 = vrot.lane.b32.xlu0 %v2062, 101
    %v2595 = vpop.permute.xlu0 %2594
    %2596 = vrot.lane.b32.xlu0 %v2063, 101
    %v2597 = vpop.permute.xlu0 %2596
    %2598 = vrot.lane.b32.xlu0 %v2064, 101
    %v2599 = vpop.permute.xlu0 %2598
    %2600 = vrot.lane.b32.xlu0 %v2065, 101
    %v2601 = vpop.permute.xlu0 %2600
    %2602 = vrot.lane.b32.xlu0 %v2066, 101
    %v2603 = vpop.permute.xlu0 %2602
    %2604 = vrot.lane.b32.xlu0 %v2067, 101
    %v2605 = vpop.permute.xlu0 %2604
    %2606 = vrot.lane.b32.xlu0 %v2593, 101
    %v2607 = vpop.permute.xlu0 %2606
    %v2608 = vsel %vm783, %v2595, %v2597
    %v2609 = vsel %vm783, %v2597, %v2599
    %v2610 = vsel %vm783, %v2599, %v2601
    %v2611 = vsel %vm783, %v2601, %v2603
    %v2612 = vsel %vm783, %v2603, %v2605
    %v2613 = vsel %vm783, %v2605, %v2607
    %v2614 = vcombine.high %v2100, %v2100
    %2615 = vrot.lane.b32.xlu0 %v2614, 100
    %v2616 = vpop.permute.xlu0 %2615
    %v2617 = vsel %vm251, %v2113, %v2616
    %v2619 = vrot.slane %v2591, 5
    %2620 = vrot.lane.b32.xlu0 %v2619, 99
    %v2621 = vpop.permute.xlu0 %2620
    %v2622 = vsel %vm284, %v2142, %v2621
    %2623 = vrot.lane.b32.xlu0 %v2101, 98
    %v2624 = vpop.permute.xlu0 %2623
    %v2625 = vsel %vm308, %v2168, %v2624
    %v2627 = vrot.slane %v2591, 4
    %2628 = vrot.lane.b32.xlu0 %v2627, 97
    %v2629 = vpop.permute.xlu0 %2628
    %v2630 = vsel %vm336, %v2197, %v2629
    %v2632 = vsel %vm564, %v2403, %v2608
    %v2635 = vsel %vm564, %v2404, %v2609
    %v2638 = vsel %vm564, %v2405, %v2610
    %v2641 = vsel %vm564, %v2406, %v2611
    %v2644 = vsel %vm564, %v2407, %v2612
    %v2647 = vsel %vm564, %v2408, %v2613
    %v2649 = vsel %vm591, %v2632, %v2114
    %v2650 = vsel %vm591, %v2635, %v2115
    %v2651 = vsel %vm591, %v2638, %v2116
    %v2652 = vsel %vm591, %v2641, %v2117
    %v2653 = vsel %vm591, %v2644, %v2118
    %v2654 = vsel %vm591, %v2647, %v2617
    %v2656 = vsel %vm598, %v2649, %v2143
    %v2659 = vsel %vm598, %v2650, %v2144
    %v2662 = vsel %vm598, %v2651, %v2145
    %v2665 = vsel %vm598, %v2652, %v2146
    %v2668 = vsel %vm598, %v2653, %v2147
    %v2672 = vsel %vm598, %v2654, %v2622
    %v2674 = vsel %vm625, %v2656, %v2169
    %v2675 = vsel %vm625, %v2659, %v2170
    %v2676 = vsel %vm625, %v2662, %v2171
    %v2677 = vsel %vm625, %v2665, %v2172
    %v2678 = vsel %vm625, %v2668, %v2173
    %v2679 = vsel %vm625, %v2672, %v2625
    %v2681 = vsel %vm632, %v2674, %v2198
    %v2683 = vsel %vm632, %v2675, %v2199
    %v2685 = vsel %vm632, %v2676, %v2200
    %v2687 = vsel %vm632, %v2677, %v2201
    %v2689 = vsel %vm632, %v2678, %v2202
    %v2692 = vsel %vm632, %v2679, %v2630
    %2699 = vrot.lane.b32.xlu0 %v2681, 43
    %v2700 = vpop.permute.xlu0 %2699
    %2701 = vrot.lane.b32.xlu0 %v2683, 43
    %v2702 = vpop.permute.xlu0 %2701
    %2703 = vrot.lane.b32.xlu0 %v2685, 43
    %v2704 = vpop.permute.xlu0 %2703
    %2705 = vrot.lane.b32.xlu0 %v2687, 43
    %v2706 = vpop.permute.xlu0 %2705
    %2707 = vrot.lane.b32.xlu0 %v2689, 43
    %v2708 = vpop.permute.xlu0 %2707
    %2709 = vrot.lane.b32.xlu0 %v2692, 43
    %v2710 = vpop.permute.xlu0 %2709
    %v2711 = vsel %vm890, %v2700, %v2702
    %v2712 = vsel %vm890, %v2702, %v2704
    %v2713 = vsel %vm890, %v2704, %v2706
    %v2714 = vsel %vm890, %v2706, %v2708
    %v2715 = vsel %vm890, %v2708, %v2710
    %v2717 = vand.u32 %v2711, %v906
    %v2720 = vand.u32 %v2712, %v906
    %v2723 = vand.u32 %v2713, %v906
    %v2726 = vand.u32 %v2714, %v906
    %v2729 = vand.u32 %v2715, %v906
    %v2732 = vand.u32 %v2710, %v906
    %2734 = vmatprep.subr.bf16.mxu0 %v2584
    %2735 = vmatpush1.bf16.msra.mxu0 %v2583
    %2736 = vmatprep.subr.bf16.mxu0 %v2720
    %2737 = vmatpush1.bf16.msra.mxu0 %v2717
    %2738 = vmatprep.subr.bf16.mxu0 0
    %2739 = vmatpush1.bf16.msra.mxu0 0
    %2740 = vmatprep.subr.bf16.mxu0 0
    %2741 = vmatpush1.bf16.msra.mxu0 0
    %2742 = vmatprep.subr.bf16.mxu0 0
    %2743 = vmatpush1.bf16.msra.mxu0 0
    %2744 = vmatprep.subr.bf16.mxu0 0
    %2745 = vmatpush1.bf16.msra.mxu0 0
    %2746 = vmatprep.subr.bf16.mxu0 0
    %2747 = vmatpush1.bf16.msra.mxu0 0
    %2748 = vmatprep.subr.bf16.mxu0 0
    %2749 = vmatpush1.bf16.msra.mxu0 0
    %2750 = vmatprep.subr.bf16.mxu0 0
    %2751 = vmatpush1.bf16.msra.mxu0 0
    %2752 = vmatprep.subr.bf16.mxu0 0
    %2753 = vmatpush1.bf16.msra.mxu0 0
    %2754 = vmatprep.subr.bf16.mxu0 0
    %2755 = vmatpush1.bf16.msra.mxu0 0
    %2756 = vmatprep.subr.bf16.mxu0 0
    %2757 = vmatpush1.bf16.msra.mxu0 0
    %2758 = vmatprep.subr.bf16.mxu0 0
    %2759 = vmatpush1.bf16.msra.mxu0 0
    %2760 = vmatprep.subr.bf16.mxu0 0
    %2761 = vmatpush1.bf16.msra.mxu0 0
    %2762 = vmatprep.subr.bf16.mxu0 0
    %2763 = vmatpush1.bf16.msra.mxu0 0
    %2764 = vmatprep.subr.bf16.mxu0 0
    %2765 = vmatpush1.bf16.msra.mxu0 0
    %2766 = vmatprep.mubr.bf16.mxu0 0
    %2767 = vmatmul.mubr.bf16.gmra.mrb[0].mxu0 %v903
    %v2768 = vpop.f32.mrb[0].mxu0
    %v2769 = vadd.f32 %v899, %v2768
    %v2770 = vpop.f32.mrb[0].mxu0
    %v2771 = vadd.f32 %v899, %v2770
    %v2772 = vpop.f32.mrb[0].mxu0
    %v2773 = vpop.f32.mrb[0].mxu0
    %2774 = vdwg.mxu0
    %2775 = vmatprep.subr.bf16.mxu0 %v2586
    %2776 = vmatpush1.bf16.msra.mxu0 %v2585
    %2777 = vmatprep.subr.bf16.mxu0 %v2726
    %2778 = vmatpush1.bf16.msra.mxu0 %v2723
    %2779 = vmatprep.subr.bf16.mxu0 0
    %2780 = vmatpush1.bf16.msra.mxu0 0
    %2781 = vmatprep.subr.bf16.mxu0 0
    %2782 = vmatpush1.bf16.msra.mxu0 0
    %2783 = vmatprep.subr.bf16.mxu0 0
    %2784 = vmatpush1.bf16.msra.mxu0 0
    %2785 = vmatprep.subr.bf16.mxu0 0
    %2786 = vmatpush1.bf16.msra.mxu0 0
    %2787 = vmatprep.subr.bf16.mxu0 0
    %2788 = vmatpush1.bf16.msra.mxu0 0
    %2789 = vmatprep.subr.bf16.mxu0 0
    %2790 = vmatpush1.bf16.msra.mxu0 0
    %2791 = vmatprep.subr.bf16.mxu0 0
    %2792 = vmatpush1.bf16.msra.mxu0 0
    %2793 = vmatprep.subr.bf16.mxu0 0
    %2794 = vmatpush1.bf16.msra.mxu0 0
    %2795 = vmatprep.subr.bf16.mxu0 0
    %2796 = vmatpush1.bf16.msra.mxu0 0
    %2797 = vmatprep.subr.bf16.mxu0 0
    %2798 = vmatpush1.bf16.msra.mxu0 0
    %2799 = vmatprep.subr.bf16.mxu0 0
    %2800 = vmatpush1.bf16.msra.mxu0 0
    %2801 = vmatprep.subr.bf16.mxu0 0
    %2802 = vmatpush1.bf16.msra.mxu0 0
    %2803 = vmatprep.subr.bf16.mxu0 0
    %2804 = vmatpush1.bf16.msra.mxu0 0
    %2805 = vmatprep.subr.bf16.mxu0 0
    %2806 = vmatpush1.bf16.msra.mxu0 0
    %2807 = vmatprep.mubr.bf16.mxu0 0
    %2808 = vmatmul.mubr.bf16.gmra.mrb[0].mxu0 %v903
    %v2809 = vpop.f32.mrb[0].mxu0
    %v2810 = vadd.f32 %v899, %v2809
    %v2811 = vpop.f32.mrb[0].mxu0
    %v2812 = vadd.f32 %v899, %v2811
    %v2813 = vpop.f32.mrb[0].mxu0
    %v2814 = vpop.f32.mrb[0].mxu0
    %2815 = vdwg.mxu0
    %2816 = vmatprep.subr.bf16.mxu0 %v2588
    %2817 = vmatpush1.bf16.msra.mxu0 %v2587
    %2818 = vmatprep.subr.bf16.mxu0 %v2732
    %2819 = vmatpush1.bf16.msra.mxu0 %v2729
    %2820 = vmatprep.subr.bf16.mxu0 0
    %2821 = vmatpush1.bf16.msra.mxu0 0
    %2822 = vmatprep.subr.bf16.mxu0 0
    %2823 = vmatpush1.bf16.msra.mxu0 0
    %2824 = vmatprep.subr.bf16.mxu0 0
    %2825 = vmatpush1.bf16.msra.mxu0 0
    %2826 = vmatprep.subr.bf16.mxu0 0
    %2827 = vmatpush1.bf16.msra.mxu0 0
    %2828 = vmatprep.subr.bf16.mxu0 0
    %2829 = vmatpush1.bf16.msra.mxu0 0
    %2830 = vmatprep.subr.bf16.mxu0 0
    %2831 = vmatpush1.bf16.msra.mxu0 0
    %2832 = vmatprep.subr.bf16.mxu0 0
    %2833 = vmatpush1.bf16.msra.mxu0 0
    %2834 = vmatprep.subr.bf16.mxu0 0
    %2835 = vmatpush1.bf16.msra.mxu0 0
    %2836 = vmatprep.subr.bf16.mxu0 0
    %2837 = vmatpush1.bf16.msra.mxu0 0
    %2838 = vmatprep.subr.bf16.mxu0 0
    %2839 = vmatpush1.bf16.msra.mxu0 0
    %2840 = vmatprep.subr.bf16.mxu0 0
    %2841 = vmatpush1.bf16.msra.mxu0 0
    %2842 = vmatprep.subr.bf16.mxu0 0
    %2843 = vmatpush1.bf16.msra.mxu0 0
    %2844 = vmatprep.subr.bf16.mxu0 0
    %2845 = vmatpush1.bf16.msra.mxu0 0
    %2846 = vmatprep.subr.bf16.mxu0 0
    %2847 = vmatpush1.bf16.msra.mxu0 0
    %2848 = vmatprep.mubr.bf16.mxu0 0
    %2849 = vmatmul.mubr.bf16.gmra.mrb[0].mxu0 %v903
    %v2850 = vpop.f32.mrb[0].mxu0
    %v2851 = vadd.f32 %v899, %v2850
    %v2852 = vpop.f32.mrb[0].mxu0
    %v2853 = vadd.f32 %v899, %v2852
    %v2854 = vpop.f32.mrb[0].mxu0
    %v2855 = vpop.f32.mrb[0].mxu0
    %2856 = vdwg.mxu0
    %v2857 = vmax.f32 %v2769, 0.0
    %v2858 = vmax.f32 %v2771, 0.0
    %v2859 = vmax.f32 %v2810, 0.0
    %v2860 = vmax.f32 %v2812, 0.0
    %v2861 = vmax.f32 %v2851, 0.0
    %v2862 = vmax.f32 %v2853, 0.0
    %v2863 = vpack.c.bf16 %v2857, %v2857
    %v2864 = vpack.c.bf16 %v2858, %v2858
    %v2865 = vpack.c.bf16 %v2859, %v2859
    %v2866 = vpack.c.bf16 %v2860, %v2860
    %v2867 = vpack.c.bf16 %v2861, %v2861
    %v2868 = vpack.c.bf16 %v2862, %v2862
    %v2874 = vrot.slane %v2863, 5
    %v2875 = vrot.slane %v2864, 5
    %v2876 = vrot.slane %v2865, 5
    %v2877 = vrot.slane %v2866, 5
    %v2878 = vrot.slane %v2867, 5
    %2879 = vrot.lane.b32.xlu0 %v2874, 127
    %v2880 = vpop.permute.xlu0 %2879
    %2881 = vrot.lane.b32.xlu0 %v2875, 127
    %v2882 = vpop.permute.xlu0 %2881
    %2883 = vrot.lane.b32.xlu0 %v2876, 127
    %v2884 = vpop.permute.xlu0 %2883
    %2885 = vrot.lane.b32.xlu0 %v2877, 127
    %v2886 = vpop.permute.xlu0 %2885
    %2887 = vrot.lane.b32.xlu0 %v2878, 127
    %v2888 = vpop.permute.xlu0 %2887
    %v2889 = vsel %vm113, %v2880, %v2882
    %v2890 = vsel %vm113, %v2882, %v2884
    %v2891 = vsel %vm113, %v2884, %v2886
    %v2892 = vsel %vm113, %v2886, %v2888
    %v2893 = vrot.slane %v2863, 2
    %v2894 = vrot.slane %v2864, 2
    %v2895 = vrot.slane %v2865, 2
    %v2896 = vrot.slane %v2866, 2
    %v2897 = vrot.slane %v2867, 2
    %2898 = vrot.lane.b32.xlu0 %v2893, 126
    %v2899 = vpop.permute.xlu0 %2898
    %2900 = vrot.lane.b32.xlu0 %v2894, 126
    %v2901 = vpop.permute.xlu0 %2900
    %2902 = vrot.lane.b32.xlu0 %v2895, 126
    %v2903 = vpop.permute.xlu0 %2902
    %2904 = vrot.lane.b32.xlu0 %v2896, 126
    %v2905 = vpop.permute.xlu0 %2904
    %2906 = vrot.lane.b32.xlu0 %v2897, 126
    %v2907 = vpop.permute.xlu0 %2906
    %v2908 = vsel %vm162, %v2899, %v2901
    %v2909 = vsel %vm162, %v2901, %v2903
    %v2910 = vsel %vm162, %v2903, %v2905
    %v2911 = vsel %vm162, %v2905, %v2907
    %v2912 = vrot.slane %v2863, 7
    %v2913 = vrot.slane %v2864, 7
    %v2914 = vrot.slane %v2865, 7
    %v2915 = vrot.slane %v2866, 7
    %v2916 = vrot.slane %v2867, 7
    %2917 = vrot.lane.b32.xlu0 %v2912, 125
    %v2918 = vpop.permute.xlu0 %2917
    %2919 = vrot.lane.b32.xlu0 %v2913, 125
    %v2920 = vpop.permute.xlu0 %2919
    %2921 = vrot.lane.b32.xlu0 %v2914, 125
    %v2922 = vpop.permute.xlu0 %2921
    %2923 = vrot.lane.b32.xlu0 %v2915, 125
    %v2924 = vpop.permute.xlu0 %2923
    %2925 = vrot.lane.b32.xlu0 %v2916, 125
    %v2926 = vpop.permute.xlu0 %2925
    %v2927 = vsel %vm186, %v2918, %v2920
    %v2928 = vsel %vm186, %v2920, %v2922
    %v2929 = vsel %vm186, %v2922, %v2924
    %v2930 = vsel %vm186, %v2924, %v2926
    %v2931 = vrot.slane %v2863, 4
    %v2932 = vrot.slane %v2864, 4
    %v2933 = vrot.slane %v2865, 4
    %v2934 = vrot.slane %v2866, 4
    %v2935 = vrot.slane %v2867, 4
    %2936 = vrot.lane.b32.xlu0 %v2931, 124
    %v2937 = vpop.permute.xlu0 %2936
    %2938 = vrot.lane.b32.xlu0 %v2932, 124
    %v2939 = vpop.permute.xlu0 %2938
    %2940 = vrot.lane.b32.xlu0 %v2933, 124
    %v2941 = vpop.permute.xlu0 %2940
    %2942 = vrot.lane.b32.xlu0 %v2934, 124
    %v2943 = vpop.permute.xlu0 %2942
    %2944 = vrot.lane.b32.xlu0 %v2935, 124
    %v2945 = vpop.permute.xlu0 %2944
    %v2946 = vsel %vm227, %v2937, %v2939
    %v2947 = vsel %vm227, %v2939, %v2941
    %v2948 = vsel %vm227, %v2941, %v2943
    %v2949 = vsel %vm227, %v2943, %v2945
    %v2950 = vrot.slane %v2863, 1
    %v2951 = vrot.slane %v2864, 1
    %v2952 = vrot.slane %v2865, 1
    %v2953 = vrot.slane %v2866, 1
    %v2954 = vrot.slane %v2867, 1
    %2955 = vrot.lane.b32.xlu0 %v2950, 100
    %v2956 = vpop.permute.xlu0 %2955
    %2957 = vrot.lane.b32.xlu0 %v2951, 100
    %v2958 = vpop.permute.xlu0 %2957
    %2959 = vrot.lane.b32.xlu0 %v2952, 100
    %v2960 = vpop.permute.xlu0 %2959
    %2961 = vrot.lane.b32.xlu0 %v2953, 100
    %v2962 = vpop.permute.xlu0 %2961
    %2963 = vrot.lane.b32.xlu0 %v2954, 100
    %v2964 = vpop.permute.xlu0 %2963
    %v2965 = vsel %vm251, %v2956, %v2958
    %v2966 = vsel %vm251, %v2958, %v2960
    %v2967 = vsel %vm251, %v2960, %v2962
    %v2968 = vsel %vm251, %v2962, %v2964
    %v2969 = vrot.slane %v2863, 6
    %v2970 = vrot.slane %v2864, 6
    %v2971 = vrot.slane %v2865, 6
    %v2972 = vrot.slane %v2866, 6
    %v2973 = vrot.slane %v2867, 6
    %2974 = vrot.lane.b32.xlu0 %v2969, 99
    %v2975 = vpop.permute.xlu0 %2974
    %2976 = vrot.lane.b32.xlu0 %v2970, 99
    %v2977 = vpop.permute.xlu0 %2976
    %2978 = vrot.lane.b32.xlu0 %v2971, 99
    %v2979 = vpop.permute.xlu0 %2978
    %2980 = vrot.lane.b32.xlu0 %v2972, 99
    %v2981 = vpop.permute.xlu0 %2980
    %2982 = vrot.lane.b32.xlu0 %v2973, 99
    %v2983 = vpop.permute.xlu0 %2982
    %v2984 = vsel %vm284, %v2975, %v2977
    %v2985 = vsel %vm284, %v2977, %v2979
    %v2986 = vsel %vm284, %v2979, %v2981
    %v2987 = vsel %vm284, %v2981, %v2983
    %v2988 = vrot.slane %v2863, 3
    %v2989 = vrot.slane %v2864, 3
    %v2990 = vrot.slane %v2865, 3
    %v2991 = vrot.slane %v2866, 3
    %v2992 = vrot.slane %v2867, 3
    %2993 = vrot.lane.b32.xlu0 %v2988, 98
    %v2994 = vpop.permute.xlu0 %2993
    %2995 = vrot.lane.b32.xlu0 %v2989, 98
    %v2996 = vpop.permute.xlu0 %2995
    %2997 = vrot.lane.b32.xlu0 %v2990, 98
    %v2998 = vpop.permute.xlu0 %2997
    %2999 = vrot.lane.b32.xlu0 %v2991, 98
    %v3000 = vpop.permute.xlu0 %2999
    %3001 = vrot.lane.b32.xlu0 %v2992, 98
    %v3002 = vpop.permute.xlu0 %3001
    %v3003 = vsel %vm308, %v2994, %v2996
    %v3004 = vsel %vm308, %v2996, %v2998
    %v3005 = vsel %vm308, %v2998, %v3000
    %v3006 = vsel %vm308, %v3000, %v3002
    %3007 = vrot.lane.b32.xlu0 %v2863, 97
    %v3008 = vpop.permute.xlu0 %3007
    %3009 = vrot.lane.b32.xlu0 %v2864, 97
    %v3010 = vpop.permute.xlu0 %3009
    %3011 = vrot.lane.b32.xlu0 %v2865, 97
    %v3012 = vpop.permute.xlu0 %3011
    %3013 = vrot.lane.b32.xlu0 %v2866, 97
    %v3014 = vpop.permute.xlu0 %3013
    %3015 = vrot.lane.b32.xlu0 %v2867, 97
    %v3016 = vpop.permute.xlu0 %3015
    %v3017 = vsel %vm336, %v3008, %v3010
    %v3018 = vsel %vm336, %v3010, %v3012
    %v3019 = vsel %vm336, %v3012, %v3014
    %v3020 = vsel %vm336, %v3014, %v3016
    %3021 = vrot.lane.b32.xlu0 %v2874, 96
    %v3022 = vpop.permute.xlu0 %3021
    %3023 = vrot.lane.b32.xlu0 %v2875, 96
    %v3024 = vpop.permute.xlu0 %3023
    %3025 = vrot.lane.b32.xlu0 %v2876, 96
    %v3026 = vpop.permute.xlu0 %3025
    %3027 = vrot.lane.b32.xlu0 %v2877, 96
    %v3028 = vpop.permute.xlu0 %3027
    %3029 = vrot.lane.b32.xlu0 %v2878, 96
    %v3030 = vpop.permute.xlu0 %3029
    %v3031 = vsel %vm360, %v3022, %v3024
    %v3032 = vsel %vm360, %v3024, %v3026
    %v3033 = vsel %vm360, %v3026, %v3028
    %v3034 = vsel %vm360, %v3028, %v3030
    %3035 = vrot.lane.b32.xlu0 %v2893, 72
    %v3036 = vpop.permute.xlu0 %3035
    %3037 = vrot.lane.b32.xlu0 %v2894, 72
    %v3038 = vpop.permute.xlu0 %3037
    %3039 = vrot.lane.b32.xlu0 %v2895, 72
    %v3040 = vpop.permute.xlu0 %3039
    %3041 = vrot.lane.b32.xlu0 %v2896, 72
    %v3042 = vpop.permute.xlu0 %3041
    %3043 = vrot.lane.b32.xlu0 %v2897, 72
    %v3044 = vpop.permute.xlu0 %3043
    %v3045 = vsel %vm386, %v3036, %v3038
    %v3046 = vsel %vm386, %v3038, %v3040
    %v3047 = vsel %vm386, %v3040, %v3042
    %v3048 = vsel %vm386, %v3042, %v3044
    %3049 = vrot.lane.b32.xlu0 %v2912, 71
    %v3050 = vpop.permute.xlu0 %3049
    %3051 = vrot.lane.b32.xlu0 %v2913, 71
    %v3052 = vpop.permute.xlu0 %3051
    %3053 = vrot.lane.b32.xlu0 %v2914, 71
    %v3054 = vpop.permute.xlu0 %3053
    %3055 = vrot.lane.b32.xlu0 %v2915, 71
    %v3056 = vpop.permute.xlu0 %3055
    %3057 = vrot.lane.b32.xlu0 %v2916, 71
    %v3058 = vpop.permute.xlu0 %3057
    %v3059 = vsel %vm410, %v3050, %v3052
    %v3060 = vsel %vm410, %v3052, %v3054
    %v3061 = vsel %vm410, %v3054, %v3056
    %v3062 = vsel %vm410, %v3056, %v3058
    %3063 = vrot.lane.b32.xlu0 %v2931, 70
    %v3064 = vpop.permute.xlu0 %3063
    %3065 = vrot.lane.b32.xlu0 %v2932, 70
    %v3066 = vpop.permute.xlu0 %3065
    %3067 = vrot.lane.b32.xlu0 %v2933, 70
    %v3068 = vpop.permute.xlu0 %3067
    %3069 = vrot.lane.b32.xlu0 %v2934, 70
    %v3070 = vpop.permute.xlu0 %3069
    %3071 = vrot.lane.b32.xlu0 %v2935, 70
    %v3072 = vpop.permute.xlu0 %3071
    %v3073 = vsel %vm436, %v3064, %v3066
    %v3074 = vsel %vm436, %v3066, %v3068
    %v3075 = vsel %vm436, %v3068, %v3070
    %v3076 = vsel %vm436, %v3070, %v3072
    %3077 = vrot.lane.b32.xlu0 %v2950, 69
    %v3078 = vpop.permute.xlu0 %3077
    %3079 = vrot.lane.b32.xlu0 %v2951, 69
    %v3080 = vpop.permute.xlu0 %3079
    %3081 = vrot.lane.b32.xlu0 %v2952, 69
    %v3082 = vpop.permute.xlu0 %3081
    %3083 = vrot.lane.b32.xlu0 %v2953, 69
    %v3084 = vpop.permute.xlu0 %3083
    %3085 = vrot.lane.b32.xlu0 %v2954, 69
    %v3086 = vpop.permute.xlu0 %3085
    %v3087 = vsel %vm460, %v3078, %v3080
    %v3088 = vsel %vm460, %v3080, %v3082
    %v3089 = vsel %vm460, %v3082, %v3084
    %v3090 = vsel %vm460, %v3084, %v3086
    %3091 = vrot.lane.b32.xlu0 %v2969, 68
    %v3092 = vpop.permute.xlu0 %3091
    %3093 = vrot.lane.b32.xlu0 %v2970, 68
    %v3094 = vpop.permute.xlu0 %3093
    %3095 = vrot.lane.b32.xlu0 %v2971, 68
    %v3096 = vpop.permute.xlu0 %3095
    %3097 = vrot.lane.b32.xlu0 %v2972, 68
    %v3098 = vpop.permute.xlu0 %3097
    %3099 = vrot.lane.b32.xlu0 %v2973, 68
    %v3100 = vpop.permute.xlu0 %3099
    %v3101 = vsel %vm485, %v3092, %v3094
    %v3102 = vsel %vm485, %v3094, %v3096
    %v3103 = vsel %vm485, %v3096, %v3098
    %v3104 = vsel %vm485, %v3098, %v3100
    %v3106 = vrot.slane %v2868, 3
    %3107 = vrot.lane.b32.xlu0 %v2988, 44
    %v3108 = vpop.permute.xlu0 %3107
    %3109 = vrot.lane.b32.xlu0 %v2989, 44
    %v3110 = vpop.permute.xlu0 %3109
    %3111 = vrot.lane.b32.xlu0 %v2990, 44
    %v3112 = vpop.permute.xlu0 %3111
    %3113 = vrot.lane.b32.xlu0 %v2991, 44
    %v3114 = vpop.permute.xlu0 %3113
    %3115 = vrot.lane.b32.xlu0 %v2992, 44
    %v3116 = vpop.permute.xlu0 %3115
    %3117 = vrot.lane.b32.xlu0 %v3106, 44
    %v3118 = vpop.permute.xlu0 %3117
    %v3119 = vsel %vm509, %v3108, %v3110
    %v3120 = vsel %vm509, %v3110, %v3112
    %v3121 = vsel %vm509, %v3112, %v3114
    %v3122 = vsel %vm509, %v3114, %v3116
    %v3123 = vsel %vm509, %v3116, %v3118
    %v3126 = vsel %vm598, %v2863, %v2889
    %v3129 = vsel %vm598, %v2864, %v2890
    %v3132 = vsel %vm598, %v2865, %v2891
    %v3135 = vsel %vm598, %v2866, %v2892
    %v3138 = vsel %vm598, %v2867, %v2888
    %v3140 = vsel %vm700, %v3126, %v2908
    %v3143 = vsel %vm700, %v3129, %v2909
    %v3146 = vsel %vm700, %v3132, %v2910
    %v3149 = vsel %vm700, %v3135, %v2911
    %v3152 = vsel %vm700, %v3138, %v2907
    %v3155 = vsel %vm530, %v2908, %v2927
    %v3157 = vsel %vm530, %v2909, %v2928
    %v3159 = vsel %vm530, %v2910, %v2929
    %v3161 = vsel %vm530, %v2911, %v2930
    %v3163 = vsel %vm530, %v2907, %v2926
    %v3165 = vsel %vm632, %v3155, %v2946
    %v3167 = vsel %vm632, %v3157, %v2947
    %v3169 = vsel %vm632, %v3159, %v2948
    %v3171 = vsel %vm632, %v3161, %v2949
    %v3173 = vsel %vm632, %v3163, %v2945
    %v3175 = vsel %vm734, %v3165, %v2965
    %v3178 = vsel %vm734, %v3167, %v2966
    %v3181 = vsel %vm734, %v3169, %v2967
    %v3184 = vsel %vm734, %v3171, %v2968
    %v3187 = vsel %vm734, %v3173, %v2964
    %v3190 = vsel %vm564, %v2965, %v2984
    %v3192 = vsel %vm564, %v2966, %v2985
    %v3194 = vsel %vm564, %v2967, %v2986
    %v3196 = vsel %vm564, %v2968, %v2987
    %v3198 = vsel %vm564, %v2964, %v2983
    %v3200 = vsel %vm666, %v3190, %v3003
    %v3203 = vsel %vm666, %v3192, %v3004
    %v3206 = vsel %vm666, %v3194, %v3005
    %v3209 = vsel %vm666, %v3196, %v3006
    %v3212 = vsel %vm666, %v3198, %v3002
    %v3216 = vsel %vm598, %v3017, %v3031
    %v3219 = vsel %vm598, %v3018, %v3032
    %v3222 = vsel %vm598, %v3019, %v3033
    %v3225 = vsel %vm598, %v3020, %v3034
    %v3228 = vsel %vm598, %v3016, %v3030
    %v3230 = vsel %vm700, %v3216, %v3045
    %v3233 = vsel %vm700, %v3219, %v3046
    %v3236 = vsel %vm700, %v3222, %v3047
    %v3239 = vsel %vm700, %v3225, %v3048
    %v3242 = vsel %vm700, %v3228, %v3044
    %v3245 = vsel %vm530, %v3045, %v3059
    %v3247 = vsel %vm530, %v3046, %v3060
    %v3249 = vsel %vm530, %v3047, %v3061
    %v3251 = vsel %vm530, %v3048, %v3062
    %v3253 = vsel %vm530, %v3044, %v3058
    %v3255 = vsel %vm632, %v3245, %v3073
    %v3257 = vsel %vm632, %v3247, %v3074
    %v3259 = vsel %vm632, %v3249, %v3075
    %v3261 = vsel %vm632, %v3251, %v3076
    %v3263 = vsel %vm632, %v3253, %v3072
    %v3265 = vsel %vm734, %v3255, %v3087
    %v3268 = vsel %vm734, %v3257, %v3088
    %v3271 = vsel %vm734, %v3259, %v3089
    %v3274 = vsel %vm734, %v3261, %v3090
    %v3277 = vsel %vm734, %v3263, %v3086
    %v3280 = vsel %vm564, %v3087, %v3101
    %v3282 = vsel %vm564, %v3088, %v3102
    %v3284 = vsel %vm564, %v3089, %v3103
    %v3286 = vsel %vm564, %v3090, %v3104
    %v3288 = vsel %vm564, %v3086, %v3100
    %v3290 = vsel %vm666, %v3280, %v3119
    %v3293 = vsel %vm666, %v3282, %v3120
    %v3296 = vsel %vm666, %v3284, %v3121
    %v3299 = vsel %vm666, %v3286, %v3122
    %v3302 = vsel %vm666, %v3288, %v3123
    %v3304 = vrot.slane %v2868, 5
    %3305 = vrot.lane.b32.xlu0 %v3304, 127
    %v3306 = vpop.permute.xlu0 %3305
    %v3307 = vsel %vm113, %v2888, %v3306
    %v3308 = vrot.slane %v2868, 2
    %3309 = vrot.lane.b32.xlu0 %v3308, 126
    %v3310 = vpop.permute.xlu0 %3309
    %v3311 = vsel %vm162, %v2907, %v3310
    %v3312 = vrot.slane %v2868, 7
    %3313 = vrot.lane.b32.xlu0 %v3312, 125
    %v3314 = vpop.permute.xlu0 %3313
    %v3315 = vsel %vm186, %v2926, %v3314
    %v3316 = vrot.slane %v2868, 4
    %3317 = vrot.lane.b32.xlu0 %v2931, 101
    %v3318 = vpop.permute.xlu0 %3317
    %3319 = vrot.lane.b32.xlu0 %v2932, 101
    %v3320 = vpop.permute.xlu0 %3319
    %3321 = vrot.lane.b32.xlu0 %v2933, 101
    %v3322 = vpop.permute.xlu0 %3321
    %3323 = vrot.lane.b32.xlu0 %v2934, 101
    %v3324 = vpop.permute.xlu0 %3323
    %3325 = vrot.lane.b32.xlu0 %v2935, 101
    %v3326 = vpop.permute.xlu0 %3325
    %3327 = vrot.lane.b32.xlu0 %v3316, 101
    %v3328 = vpop.permute.xlu0 %3327
    %v3329 = vsel %vm783, %v3318, %v3320
    %v3330 = vsel %vm783, %v3320, %v3322
    %v3331 = vsel %vm783, %v3322, %v3324
    %v3332 = vsel %vm783, %v3324, %v3326
    %v3333 = vsel %vm783, %v3326, %v3328
    %v3334 = vrot.slane %v2868, 1
    %3335 = vrot.lane.b32.xlu0 %v3334, 100
    %v3336 = vpop.permute.xlu0 %3335
    %v3337 = vsel %vm251, %v2964, %v3336
    %v3338 = vrot.slane %v2868, 6
    %3339 = vrot.lane.b32.xlu0 %v3338, 99
    %v3340 = vpop.permute.xlu0 %3339
    %v3341 = vsel %vm284, %v2983, %v3340
    %3342 = vrot.lane.b32.xlu0 %v3106, 98
    %v3343 = vpop.permute.xlu0 %3342
    %v3344 = vsel %vm308, %v3002, %v3343
    %3345 = vrot.lane.b32.xlu0 %v2868, 97
    %v3346 = vpop.permute.xlu0 %3345
    %v3347 = vsel %vm336, %v3016, %v3346
    %v3349 = vsel %vm598, %v2867, %v3307
    %v3352 = vsel %vm598, %v2868, %v3306
    %v3354 = vsel %vm700, %v3349, %v3311
    %v3356 = vsel %vm700, %v3352, %v3310
    %v3358 = vsel %vm530, %v3311, %v3315
    %v3360 = vsel %vm530, %v3310, %v3314
    %v3362 = vsel %vm632, %v3155, %v3329
    %v3364 = vsel %vm632, %v3157, %v3330
    %v3366 = vsel %vm632, %v3159, %v3331
    %v3368 = vsel %vm632, %v3161, %v3332
    %v3370 = vsel %vm632, %v3358, %v3333
    %v3372 = vsel %vm632, %v3360, %v3328
    %v3373 = vsel %vm734, %v3362, %v2965
    %v3374 = vsel %vm734, %v3364, %v2966
    %v3375 = vsel %vm734, %v3366, %v2967
    %v3376 = vsel %vm734, %v3368, %v2968
    %v3378 = vsel %vm734, %v3370, %v3337
    %v3380 = vsel %vm734, %v3372, %v3336
    %v3382 = vsel %vm564, %v3337, %v3341
    %v3384 = vsel %vm564, %v3336, %v3340
    %v3386 = vsel %vm666, %v3382, %v3344
    %v3388 = vsel %vm666, %v3384, %v3343
    %3407 = vrot.lane.b32.xlu0 %v3140, 43
    %v3408 = vpop.permute.xlu0 %3407
    %3409 = vrot.lane.b32.xlu0 %v3143, 43
    %v3410 = vpop.permute.xlu0 %3409
    %3411 = vrot.lane.b32.xlu0 %v3146, 43
    %v3412 = vpop.permute.xlu0 %3411
    %3413 = vrot.lane.b32.xlu0 %v3149, 43
    %v3414 = vpop.permute.xlu0 %3413
    %3415 = vrot.lane.b32.xlu0 %v3354, 43
    %v3416 = vpop.permute.xlu0 %3415
    %3417 = vrot.lane.b32.xlu0 %v3356, 43
    %v3418 = vpop.permute.xlu0 %3417
    %3419 = vrot.lane.b32.xlu0 %v3373, 43
    %v3420 = vpop.permute.xlu0 %3419
    %3421 = vrot.lane.b32.xlu0 %v3374, 43
    %v3422 = vpop.permute.xlu0 %3421
    %3423 = vrot.lane.b32.xlu0 %v3375, 43
    %v3424 = vpop.permute.xlu0 %3423
    %3425 = vrot.lane.b32.xlu0 %v3376, 43
    %v3426 = vpop.permute.xlu0 %3425
    %3427 = vrot.lane.b32.xlu0 %v3378, 43
    %v3428 = vpop.permute.xlu0 %3427
    %3429 = vrot.lane.b32.xlu0 %v3380, 43
    %v3430 = vpop.permute.xlu0 %3429
    %3431 = vrot.lane.b32.xlu0 %v3200, 43
    %v3432 = vpop.permute.xlu0 %3431
    %3433 = vrot.lane.b32.xlu0 %v3203, 43
    %v3434 = vpop.permute.xlu0 %3433
    %3435 = vrot.lane.b32.xlu0 %v3206, 43
    %v3436 = vpop.permute.xlu0 %3435
    %3437 = vrot.lane.b32.xlu0 %v3209, 43
    %v3438 = vpop.permute.xlu0 %3437
    %3439 = vrot.lane.b32.xlu0 %v3386, 43
    %v3440 = vpop.permute.xlu0 %3439
    %3441 = vrot.lane.b32.xlu0 %v3388, 43
    %v3442 = vpop.permute.xlu0 %3441
    %3443 = vrot.lane.b32.xlu0 %v3017, 43
    %v3444 = vpop.permute.xlu0 %3443
    %3445 = vrot.lane.b32.xlu0 %v3018, 43
    %v3446 = vpop.permute.xlu0 %3445
    %3447 = vrot.lane.b32.xlu0 %v3019, 43
    %v3448 = vpop.permute.xlu0 %3447
    %3449 = vrot.lane.b32.xlu0 %v3020, 43
    %v3450 = vpop.permute.xlu0 %3449
    %3451 = vrot.lane.b32.xlu0 %v3347, 43
    %v3452 = vpop.permute.xlu0 %3451
    %3453 = vrot.lane.b32.xlu0 %v3346, 43
    %v3454 = vpop.permute.xlu0 %3453
    %v3455 = vsel %vm890, %v3408, %v3410
    %v3456 = vsel %vm890, %v3410, %v3412
    %v3457 = vsel %vm890, %v3412, %v3414
    %v3458 = vsel %vm890, %v3414, %v3416
    %v3459 = vsel %vm890, %v3416, %v3418
    %v3460 = vsel %vm890, %v3420, %v3422
    %v3461 = vsel %vm890, %v3422, %v3424
    %v3462 = vsel %vm890, %v3424, %v3426
    %v3463 = vsel %vm890, %v3426, %v3428
    %v3464 = vsel %vm890, %v3428, %v3430
    %v3465 = vsel %vm890, %v3432, %v3434
    %v3466 = vsel %vm890, %v3434, %v3436
    %v3467 = vsel %vm890, %v3436, %v3438
    %v3468 = vsel %vm890, %v3438, %v3440
    %v3469 = vsel %vm890, %v3440, %v3442
    %v3470 = vsel %vm890, %v3444, %v3446
    %v3471 = vsel %vm890, %v3446, %v3448
    %v3472 = vsel %vm890, %v3448, %v3450
    %v3473 = vsel %vm890, %v3450, %v3452
    %v3474 = vsel %vm890, %v3452, %v3454
    %v3491 = vsel %vm598, %v3470, 0
    %v3494 = vsel %vm598, %v3471, 0
    %v3497 = vsel %vm598, %v3472, 0
    %v3500 = vsel %vm598, %v3473, 0
    %v3503 = vsel %vm598, %v3474, 0
    %3505 = vmatprep.subr.bf16.mxu0 %v3143
    %3506 = vmatpush1.bf16.msra.mxu0 %v3140
    %3507 = vmatprep.subr.bf16.mxu0 %v3178
    %3508 = vmatpush1.bf16.msra.mxu0 %v3175
    %3509 = vmatprep.subr.bf16.mxu0 %v3203
    %3510 = vmatpush1.bf16.msra.mxu0 %v3200
    %3511 = vmatprep.subr.bf16.mxu0 %v3233
    %3512 = vmatpush1.bf16.msra.mxu0 %v3230
    %3513 = vmatprep.subr.bf16.mxu0 %v3268
    %3514 = vmatpush1.bf16.msra.mxu0 %v3265
    %3515 = vmatprep.subr.bf16.mxu0 %v3293
    %3516 = vmatpush1.bf16.msra.mxu0 %v3290
    %3517 = vmatprep.subr.bf16.mxu0 %v3456
    %3518 = vmatpush1.bf16.msra.mxu0 %v3455
    %3519 = vmatprep.subr.bf16.mxu0 %v3461
    %3520 = vmatpush1.bf16.msra.mxu0 %v3460
    %3521 = vmatprep.subr.bf16.mxu0 %v3466
    %3522 = vmatpush1.bf16.msra.mxu0 %v3465
    %3523 = vmatprep.subr.bf16.mxu0 %v3494
    %3524 = vmatpush1.bf16.msra.mxu0 %v3491
    %3525 = vmatprep.subr.bf16.mxu0 0
    %3526 = vmatpush1.bf16.msra.mxu0 0
    %3527 = vmatprep.subr.bf16.mxu0 0
    %3528 = vmatpush1.bf16.msra.mxu0 0
    %3529 = vmatprep.subr.bf16.mxu0 0
    %3530 = vmatpush1.bf16.msra.mxu0 0
    %3531 = vmatprep.subr.bf16.mxu0 0
    %3532 = vmatpush1.bf16.msra.mxu0 0
    %3533 = vmatprep.subr.bf16.mxu0 0
    %3534 = vmatpush1.bf16.msra.mxu0 0
    %3535 = vmatprep.subr.bf16.mxu0 0
    %3536 = vmatpush1.bf16.msra.mxu0 0
    %3537 = vmatprep.mubr.bf16.mxu0 %v1702
    %3538 = vmatmul.mubr.bf16.gmra.mrb[0].mxu0 %v1697
    %v3539 = vpop.f32.mrb[0].mxu0
    %v3540 = vadd.f32 %v1684, %v3539
    %v3541 = vpop.f32.mrb[0].mxu0
    %v3542 = vadd.f32 %v1684, %v3541
    %v3543 = vpop.f32.mrb[0].mxu0
    %v3544 = vadd.f32 %v1689, %v3543
    %v3545 = vpop.f32.mrb[0].mxu0
    %v3546 = vadd.f32 %v1689, %v3545
    %3547 = vdwg.mxu0
    %3548 = vmatprep.subr.bf16.mxu0 %v3149
    %3549 = vmatpush1.bf16.msra.mxu0 %v3146
    %3550 = vmatprep.subr.bf16.mxu0 %v3184
    %3551 = vmatpush1.bf16.msra.mxu0 %v3181
    %3552 = vmatprep.subr.bf16.mxu0 %v3209
    %3553 = vmatpush1.bf16.msra.mxu0 %v3206
    %3554 = vmatprep.subr.bf16.mxu0 %v3239
    %3555 = vmatpush1.bf16.msra.mxu0 %v3236
    %3556 = vmatprep.subr.bf16.mxu0 %v3274
    %3557 = vmatpush1.bf16.msra.mxu0 %v3271
    %3558 = vmatprep.subr.bf16.mxu0 %v3299
    %3559 = vmatpush1.bf16.msra.mxu0 %v3296
    %3560 = vmatprep.subr.bf16.mxu0 %v3458
    %3561 = vmatpush1.bf16.msra.mxu0 %v3457
    %3562 = vmatprep.subr.bf16.mxu0 %v3463
    %3563 = vmatpush1.bf16.msra.mxu0 %v3462
    %3564 = vmatprep.subr.bf16.mxu0 %v3468
    %3565 = vmatpush1.bf16.msra.mxu0 %v3467
    %3566 = vmatprep.subr.bf16.mxu0 %v3500
    %3567 = vmatpush1.bf16.msra.mxu0 %v3497
    %3568 = vmatprep.subr.bf16.mxu0 0
    %3569 = vmatpush1.bf16.msra.mxu0 0
    %3570 = vmatprep.subr.bf16.mxu0 0
    %3571 = vmatpush1.bf16.msra.mxu0 0
    %3572 = vmatprep.subr.bf16.mxu0 0
    %3573 = vmatpush1.bf16.msra.mxu0 0
    %3574 = vmatprep.subr.bf16.mxu0 0
    %3575 = vmatpush1.bf16.msra.mxu0 0
    %3576 = vmatprep.subr.bf16.mxu0 0
    %3577 = vmatpush1.bf16.msra.mxu0 0
    %3578 = vmatprep.subr.bf16.mxu0 0
    %3579 = vmatpush1.bf16.msra.mxu0 0
    %3580 = vmatprep.mubr.bf16.mxu0 %v1702
    %3581 = vmatmul.mubr.bf16.gmra.mrb[0].mxu0 %v1697
    %v3582 = vpop.f32.mrb[0].mxu0
    %v3583 = vadd.f32 %v1684, %v3582
    %v3584 = vpop.f32.mrb[0].mxu0
    %v3585 = vadd.f32 %v1684, %v3584
    %v3586 = vpop.f32.mrb[0].mxu0
    %v3587 = vadd.f32 %v1689, %v3586
    %v3588 = vpop.f32.mrb[0].mxu0
    %v3589 = vadd.f32 %v1689, %v3588
    %3590 = vdwg.mxu0
    %3591 = vmatprep.subr.bf16.mxu0 0
    %3592 = vmatpush1.bf16.msra.mxu0 %v3152
    %3593 = vmatprep.subr.bf16.mxu0 0
    %3594 = vmatpush1.bf16.msra.mxu0 %v3187
    %3595 = vmatprep.subr.bf16.mxu0 0
    %3596 = vmatpush1.bf16.msra.mxu0 %v3212
    %3597 = vmatprep.subr.bf16.mxu0 0
    %3598 = vmatpush1.bf16.msra.mxu0 %v3242
    %3599 = vmatprep.subr.bf16.mxu0 0
    %3600 = vmatpush1.bf16.msra.mxu0 %v3277
    %3601 = vmatprep.subr.bf16.mxu0 0
    %3602 = vmatpush1.bf16.msra.mxu0 %v3302
    %3603 = vmatprep.subr.bf16.mxu0 0
    %3604 = vmatpush1.bf16.msra.mxu0 %v3459
    %3605 = vmatprep.subr.bf16.mxu0 0
    %3606 = vmatpush1.bf16.msra.mxu0 %v3464
    %3607 = vmatprep.subr.bf16.mxu0 0
    %3608 = vmatpush1.bf16.msra.mxu0 %v3469
    %3609 = vmatprep.subr.bf16.mxu0 0
    %3610 = vmatpush1.bf16.msra.mxu0 %v3503
    %3611 = vmatprep.subr.bf16.mxu0 0
    %3612 = vmatpush1.bf16.msra.mxu0 0
    %3613 = vmatprep.subr.bf16.mxu0 0
    %3614 = vmatpush1.bf16.msra.mxu0 0
    %3615 = vmatprep.subr.bf16.mxu0 0
    %3616 = vmatpush1.bf16.msra.mxu0 0
    %3617 = vmatprep.subr.bf16.mxu0 0
    %3618 = vmatpush1.bf16.msra.mxu0 0
    %3619 = vmatprep.subr.bf16.mxu0 0
    %3620 = vmatpush1.bf16.msra.mxu0 0
    %3621 = vmatprep.subr.bf16.mxu0 0
    %3622 = vmatpush1.bf16.msra.mxu0 0
    %3623 = vmatprep.mubr.bf16.mxu0 %v1702
    %3624 = vmatmul.mubr.bf16.gmra.mrb[0].mxu0 %v1697
    %v3625 = vpop.f32.mrb[0].mxu0
    %v3626 = vadd.f32 %v1684, %v3625
    %v3627 = vpop.f32.mrb[0].mxu0
    %v3628 = vpop.f32.mrb[0].mxu0
    %v3629 = vadd.f32 %v1689, %v3628
    %v3630 = vpop.f32.mrb[0].mxu0
    %3631 = vdwg.mxu0
    %v3632 = vmax.f32 %v3540, 0.0
    %v3633 = vmax.f32 %v3542, 0.0
    %v3634 = vmax.f32 %v3583, 0.0
    %v3635 = vmax.f32 %v3585, 0.0
    %v3636 = vmax.f32 %v3626, 0.0
    %v3637 = vmax.f32 %v3544, 0.0
    %v3638 = vmax.f32 %v3546, 0.0
    %v3639 = vmax.f32 %v3587, 0.0
    %v3640 = vmax.f32 %v3589, 0.0
    %v3641 = vmax.f32 %v3629, 0.0
    %v3642 = vpack.c.bf16 %v3637, %v3632
    %v3643 = vpack.c.bf16 %v3638, %v3633
    %v3644 = vpack.c.bf16 %v3639, %v3634
    %v3645 = vpack.c.bf16 %v3640, %v3635
    %v3646 = vpack.c.bf16 %v3641, %v3636
    %v3652 = vunpack.c.l.b16 %v3642
    %v3653 = vunpack.c.l.b16 %v3643
    %v3654 = vunpack.c.l.b16 %v3644
    %v3655 = vunpack.c.l.b16 %v3645
    %v3656 = vunpack.c.l.b16 %v3646
    %v3657 = vunpack.c.h.b16 %v3642
    %v3658 = vunpack.c.h.b16 %v3643
    %v3659 = vunpack.c.h.b16 %v3644
    %v3660 = vunpack.c.h.b16 %v3645
    %v3661 = vunpack.c.h.b16 %v3646
    %v3662 = vpack.c.b16 %v3653, %v3652
    %v3663 = vpack.c.b16 %v3655, %v3654
    %v3664 = vpack.c.b16 %v3656, %v3656
    %v3665 = vpack.c.b16 %v3658, %v3657
    %v3666 = vpack.c.b16 %v3660, %v3659
    %v3667 = vpack.c.b16 %v3661, %v3661
    %s3674 = scalar_lea.vmem [#allocation2], 40
    %3675 = vst [vmem:[%s3674] sm:$0xff] %v3662
    %3676 = vst [vmem:[%s3674 + $0x8] sm:$0xff] %v3663
    %3677 = vst.msk [vmem:[%s3674 + $0x10] sm:$0xf] %vm1890, %v3664
    %3678 = vst [vmem:[%s3674 + $0x14] sm:$0xff] %v3665
    %3679 = vst [vmem:[%s3674 + $0x1c] sm:$0xff] %v3666
    %3680 = vst.msk [vmem:[%s3674 + $0x24] sm:$0xf] %vm1890, %v3667
    // Predicated region
    $region22: #{tpu_custom_call.1} parent=1 // pred_check
      _
    $region23: #{tpu_custom_call.1} parent=1 // pred_check_branch
      %3682 = sbr.rel (0) target = $region25
    $region24: #{tpu_custom_call.1} parent=1 // pred_region
      %s3684 = ssub.s32 1280, 1280
      %3685 = vsyncadd [#allocation3], %s3684
      %s3686 = sshll.u32 [#allocation2], 4
      %s3687 = int_to_ptr.vmem [resolvable:$true] %s3686
      %3692 = dma.vmem_to_hbm [thread:$0]  %s3687, 1280, %s5, [#allocation3], 320, 320, 20
    $region25: #{tpu_custom_call.1} parent=1 // pred_fallthru
      _
    // Predicated region
    $region26: #{tpu_custom_call.1} parent=1 // pred_check
      _
    $region27: #{tpu_custom_call.1} parent=1 // pred_check_branch
      %3694 = sbr.rel (0) target = $region29
    $region28: #{tpu_custom_call.1} parent=1 // pred_region
      %3695 = dma.done [#allocation3], 1280
    $region29: #{tpu_custom_call.1} parent=1 // pred_fallthru
      _
    %3696 = vsyncpa [#allocation3], 1

</llo_original>
